<compile_context>
chip_gen: v7x
topology: tpu7x:2x2x1
jax: 0.10.0
libtpu: 0.0.40
codegen_flags: <defaults>
</compile_context>

<pallas_src>
import functools
import math

import jax
import jax.numpy as jnp
from jax import lax
from jax.experimental import pallas as pl
from jax.experimental.pallas import tpu as pltpu

NORM_EPS = 1e-6
WINDOW = 8  # sliding-window size for swa


def _rmsnorm(v, g, eps=NORM_EPS):
    ms = jnp.mean(v * v, axis=-1, keepdims=True)
    return v * lax.rsqrt(ms + eps) * g


def mal_layer_kernel(
    x_ref, xprev_tail_ref,
    g_nm_ref, g_swa_ref, g_ff_ref,
    nm_w1_ref, nm_w2_ref,
    wqkv_ref, wo_ref,
    ff_w1_ref, ff_w2_ref,
    out_ref, kcache_ref, vcache_ref,
    *, window, halo, tq, dim,
):
    i = pl.program_id(0)
    g_nm = g_nm_ref[...]
    g_swa = g_swa_ref[...]
    w_qkv = wqkv_ref[...]          # bf16, VMEM-resident across grid steps

    bf16 = jnp.bfloat16

    def nm_block(rows):
        # residual + RMSNorm + SiLU-MLP "memory retrieval" (row-wise)
        xn = _rmsnorm(rows, g_nm).astype(bf16)
        h = jnp.dot(xn, nm_w1_ref[...], preferred_element_type=jnp.float32)
        h = h * jax.nn.sigmoid(h)                     # SiLU in f32
        y = jnp.dot(h.astype(bf16), nm_w2_ref[...], preferred_element_type=jnp.float32)
        return rows + y

    def qkv_proj(rows_after_nm):
        xn = _rmsnorm(rows_after_nm, g_swa).astype(bf16)
        qkv = jnp.dot(xn, w_qkv, preferred_element_type=jnp.float32)   # fused (tq, 3D)
        return qkv[:, :dim], qkv[:, dim:2 * dim], qkv[:, 2 * dim:]

    # ---- current tile: nm block + q/k/v -------------------------------------
    x = x_ref[...]                                    # (tq, D) f32
    x_nm = nm_block(x)                                # x_after_nm
    q, k, v = qkv_proj(x_nm)
    kcache_ref[...] = k                               # swa_kv_cache_out
    vcache_ref[...] = v

    # ---- halo K/V: recompute from the last `halo` rows of the previous tile --
    # (nm / rmsnorm / projections are per-token, so recompute is exact & cheap)
    x_tail = xprev_tail_ref[...]                      # (halo, D)
    _, k_h, v_h = qkv_proj(nm_block(x_tail))

    k_ctx = jnp.concatenate([k_h, k], axis=0).astype(bf16)   # (halo+tq, D)
    v_ctx = jnp.concatenate([v_h, v], axis=0).astype(bf16)

    # ---- sliding-window attention on this tile --------------------------------
    scale = 1.0 / math.sqrt(dim)
    qs = (q * scale).astype(bf16)                     # fold scale into q (O(S*D))
    # scores: contract last dims of q and k_ctx (no explicit transpose / XLU work)
    s = lax.dot_general(qs, k_ctx, (((1,), (1,)), ((), ())),
                        preferred_element_type=jnp.float32)   # (tq, tq+halo)

    row_abs = i * tq + lax.broadcasted_iota(jnp.int32, s.shape, 0)
    col_loc = lax.broadcasted_iota(jnp.int32, s.shape, 1)
    # halo columns map to absolute positions i*tq - halo + j when a previous tile
    # exists; for i == 0 push them far into the "past" so the window mask kills them.
    halo_base = jnp.where(i > 0, i * tq - halo, -(2 ** 30))
    col_abs = jnp.where(col_loc < halo, halo_base + col_loc, i * tq + (col_loc - halo))
    mask = (col_abs <= row_abs) & ((row_abs - col_abs) < window)
    s = jnp.where(mask, s, -1e30)

    m = jnp.max(s, axis=-1, keepdims=True)
    p = jnp.exp(s - m)
    l = jnp.sum(p, axis=-1, keepdims=True)
    attn = (p * pl.reciprocal(l, approx=True)).astype(bf16)
    o = jnp.dot(attn, v_ctx, preferred_element_type=jnp.float32)
    y_swa = jnp.dot(o.astype(bf16), wo_ref[...], preferred_element_type=jnp.float32)
    x = x_nm + y_swa                                  # x_after_swa

    # ---- feed-forward block ----------------------------------------------------
    xn = _rmsnorm(x, g_ff_ref[...]).astype(bf16)
    h = jnp.dot(xn, ff_w1_ref[...], preferred_element_type=jnp.float32)
    h = jax.nn.gelu(h, approximate=True)              # tanh GELU -> EUP
    y_ff = jnp.dot(h.astype(bf16), ff_w2_ref[...], preferred_element_type=jnp.float32)
    out_ref[...] = x + y_ff                           # x_after_ff


def mal_layer(x, params, *, window=WINDOW, tq=128):
    S, D = x.shape
    tq = min(tq, S)
    halo = max(8, ((window - 1 + 7) // 8) * 8)        # halo rows, rounded to sublane=8
    assert D % 128 == 0, "dim must be a multiple of 128 (lane-dense layout)"
    assert S % tq == 0 and tq % halo == 0 and window <= halo + 1 <= tq + 1

    bf = lambda w: w.astype(jnp.bfloat16)
    weights = (
        bf(params["nm_w1"]), bf(params["nm_w2"]),
        bf(params["wqkv"]), bf(params["wo"]),
        bf(params["ff_w1"]), bf(params["ff_w2"]),
    )

    def full_spec(arr):
        nd = arr.ndim
        return pl.BlockSpec(arr.shape, lambda i, _nd=nd: (0,) * _nd)

    tile_spec = pl.BlockSpec((tq, D), lambda i: (i, 0))
    blocks_per_tile = tq // halo
    # last `halo` rows of the previous tile (clamped to tile 0; masked there anyway)
    prev_tail_spec = pl.BlockSpec(
        (halo, D), lambda i: (jnp.maximum(i * blocks_per_tile - 1, 0), 0))

    kernel = functools.partial(mal_layer_kernel, window=window, halo=halo, tq=tq, dim=D)
    out, k_cache, v_cache = pl.pallas_call(
        kernel,
        grid=(S // tq,),
        in_specs=[
            tile_spec, prev_tail_spec,
            full_spec(params["g_nm"]), full_spec(params["g_swa"]), full_spec(params["g_ff"]),
            *[full_spec(w) for w in weights],
        ],
        out_specs=(tile_spec, tile_spec, tile_spec),
        out_shape=(
            jax.ShapeDtypeStruct((S, D), jnp.float32),   # x_after_ff
            jax.ShapeDtypeStruct((S, D), jnp.float32),   # k cache
            jax.ShapeDtypeStruct((S, D), jnp.float32),   # v cache
        ),
        compiler_params=pltpu.CompilerParams(dimension_semantics=("parallel",)),
    )(x, x, params["g_nm"], params["g_swa"], params["g_ff"], *weights)

    # MALLayerCache equivalent: (nm_state, swa_kv_cache)
    # TODO(synk): nm_state_out (per-token memory weights / momentum) not modeled; returned as None.
    layer_cache = {"nm_state": None, "swa_kv_cache": (k_cache, v_cache)}
    return out, layer_cache


def mal_layer_reference(x, params, *, window=WINDOW):
    """Pure-JAX reference with the same precision policy (bf16 MXU operands, f32 accum)."""
    def mxu(a, b):
        return jnp.dot(a.astype(jnp.bfloat16), b.astype(jnp.bfloat16),
                       preferred_element_type=jnp.float32)

    S, D = x.shape
    xn = _rmsnorm(x, params["g_nm"])
    h = mxu(xn, params["nm_w1"])
    h = h * jax.nn.sigmoid(h)
    x = x + mxu(h, params["nm_w2"])

    xn = _rmsnorm(x, params["g_swa"])
    qkv = mxu(xn, params["wqkv"])
    q, k, v = qkv[:, :D], qkv[:, D:2 * D], qkv[:, 2 * D:]
    s = mxu(q / math.sqrt(D), k.T)
    row = jnp.arange(S)[:, None]
    col = jnp.arange(S)[None, :]
    mask = (col <= row) & ((row - col) < window)
    s = jnp.where(mask, s, -1e30)
    attn = jax.nn.softmax(s, axis=-1)
    x = x + mxu(mxu(attn, v), params["wo"])

    xn = _rmsnorm(x, params["g_ff"])
    h = jax.nn.gelu(mxu(xn, params["ff_w1"]), approximate=True)
    return x + mxu(h, params["ff_w2"]), (k, v)


def init_params(key, dim, nm_hidden, ff_hidden):
    ks = jax.random.split(key, 6)
    scale = lambda fan_in: 1.0 / math.sqrt(fan_in)
    return {
        # RMSNorm weights init to ones (matches nn.RMSNorm default)
        "g_nm": jnp.ones((1, dim), jnp.float32),
        "g_swa": jnp.ones((1, dim), jnp.float32),
        "g_ff": jnp.ones((1, dim), jnp.float32),
        "nm_w1": jax.random.normal(ks[0], (dim, nm_hidden), jnp.float32) * scale(dim),
        "nm_w2": jax.random.normal(ks[1], (nm_hidden, dim), jnp.float32) * scale(nm_hidden),
        "wqkv": jax.random.normal(ks[2], (dim, 3 * dim), jnp.float32) * scale(dim),
        "wo": jax.random.normal(ks[3], (dim, dim), jnp.float32) * scale(dim),
        "ff_w1": jax.random.normal(ks[4], (dim, ff_hidden), jnp.float32) * scale(dim),
        "ff_w2": jax.random.normal(ks[5], (ff_hidden, dim), jnp.float32) * scale(ff_hidden),
    }


if __name__ == "__main__":
    SEQ, DIM = 256, 128            # 2 query tiles of 128 -> exercises the halo path
    NM_HIDDEN, FF_HIDDEN = 128, 4 * DIM

    key = jax.random.PRNGKey(0)
    k_x, k_p = jax.random.split(key)
    x = jax.random.normal(k_x, (SEQ, DIM), jnp.float32)
    params = init_params(k_p, DIM, NM_HIDDEN, FF_HIDDEN)

    out, cache = mal_layer(x, params)
    out = jax.block_until_ready(out)
    k_cache, v_cache = cache["swa_kv_cache"]
    jax.block_until_ready(k_cache)
    jax.block_until_ready(v_cache)

    ref_out, (ref_k, ref_v) = mal_layer_reference(x, params)
    # Tolerances account for bf16 MXU operands, approx reciprocal and tanh GELU.
    assert jnp.allclose(out, ref_out, rtol=2e-2, atol=2e-2), "output mismatch"
    assert jnp.allclose(k_cache, ref_k, rtol=2e-2, atol=2e-2), "k cache mismatch"
    assert jnp.allclose(v_cache, ref_v, rtol=2e-2, atol=2e-2), "v cache mismatch"

    print("KERNEL_OK")
</pallas_src>

<mosaic_0001>
module attributes {stable_mosaic.version = 11 : i64} {
  func.func @mal_layer_kernel(%arg0: i32, %arg1: memref<128x128xf32, #tpu.memory_space<vmem>>, %arg2: memref<8x128xf32, #tpu.memory_space<vmem>>, %arg3: memref<1x128xf32, #tpu.memory_space<vmem>>, %arg4: memref<1x128xf32, #tpu.memory_space<vmem>>, %arg5: memref<1x128xf32, #tpu.memory_space<vmem>>, %arg6: memref<128x128xbf16, #tpu.memory_space<vmem>>, %arg7: memref<128x128xbf16, #tpu.memory_space<vmem>>, %arg8: memref<128x384xbf16, #tpu.memory_space<vmem>>, %arg9: memref<128x128xbf16, #tpu.memory_space<vmem>>, %arg10: memref<128x512xbf16, #tpu.memory_space<vmem>>, %arg11: memref<512x128xbf16, #tpu.memory_space<vmem>>, %arg12: memref<128x128xf32, #tpu.memory_space<vmem>>, %arg13: memref<128x128xf32, #tpu.memory_space<vmem>>, %arg14: memref<128x128xf32, #tpu.memory_space<vmem>>) attributes {dimension_semantics = [#tpu.dimension_semantics<parallel>], iteration_bounds = array<i64: 2>, scalar_prefetch = 0 : i64, scratch_operands = 0 : i64, tpu.core_type = #tpu.core_type<tc>, window_params = [{transform_indices = @transform_0, window_bounds = array<i64: 128, 128>}, {transform_indices = @transform_1, window_bounds = array<i64: 8, 128>}, {pipeline_mode = #tpu.pipeline_mode<synchronous>, transform_indices = @transform_2, window_bounds = array<i64: 1, 128>}, {pipeline_mode = #tpu.pipeline_mode<synchronous>, transform_indices = @transform_3, window_bounds = array<i64: 1, 128>}, {pipeline_mode = #tpu.pipeline_mode<synchronous>, transform_indices = @transform_4, window_bounds = array<i64: 1, 128>}, {pipeline_mode = #tpu.pipeline_mode<synchronous>, transform_indices = @transform_5, window_bounds = array<i64: 128, 128>}, {pipeline_mode = #tpu.pipeline_mode<synchronous>, transform_indices = @transform_6, window_bounds = array<i64: 128, 128>}, {pipeline_mode = #tpu.pipeline_mode<synchronous>, transform_indices = @transform_7, window_bounds = array<i64: 128, 384>}, {pipeline_mode = #tpu.pipeline_mode<synchronous>, transform_indices = @transform_8, window_bounds = array<i64: 128, 128>}, {pipeline_mode = #tpu.pipeline_mode<synchronous>, transform_indices = @transform_9, window_bounds = array<i64: 128, 512>}, {pipeline_mode = #tpu.pipeline_mode<synchronous>, transform_indices = @transform_10, window_bounds = array<i64: 512, 128>}, {transform_indices = @transform_11, window_bounds = array<i64: 128, 128>}, {transform_indices = @transform_12, window_bounds = array<i64: 128, 128>}, {transform_indices = @transform_13, window_bounds = array<i64: 128, 128>}]} {
    %c0 = arith.constant 0 : index
    %c0_0 = arith.constant 0 : index
    %0 = vector.load %arg3[%c0, %c0_0] : memref<1x128xf32, #tpu.memory_space<vmem>>, vector<1x128xf32>
    %c0_1 = arith.constant 0 : index
    %c0_2 = arith.constant 0 : index
    %1 = vector.load %arg4[%c0_1, %c0_2] : memref<1x128xf32, #tpu.memory_space<vmem>>, vector<1x128xf32>
    %c0_3 = arith.constant 0 : index
    %c0_4 = arith.constant 0 : index
    %2 = vector.load %arg8[%c0_3, %c0_4] : memref<128x384xbf16, #tpu.memory_space<vmem>>, vector<128x384xbf16>
    %c0_5 = arith.constant 0 : index
    %c0_6 = arith.constant 0 : index
    %3 = vector.load %arg1[%c0_5, %c0_6] : memref<128x128xf32, #tpu.memory_space<vmem>>, vector<128x128xf32>
    %4 = arith.mulf %3, %3 : vector<128x128xf32>
    %cst = arith.constant dense<0.000000e+00> : vector<128xf32>
    %5 = vector.multi_reduction <add>, %4, %cst [1] : vector<128x128xf32> to vector<128xf32>
    %6 = vector.shape_cast %5 : vector<128xf32> to vector<128x1xf32>
    %cst_7 = arith.constant 1.280000e+02 : f32
    %7 = vector.broadcast %cst_7 : f32 to vector<128x1xf32>
    %8 = arith.divf %6, %7 : vector<128x1xf32>
    %cst_8 = arith.constant 9.99999997E-7 : f32
    %9 = vector.broadcast %cst_8 : f32 to vector<128x1xf32>
    %10 = arith.addf %8, %9 : vector<128x1xf32>
    %11 = math.rsqrt %10 : vector<128x1xf32>
    %12 = vector.broadcast %11 : vector<128x1xf32> to vector<128x128xf32>
    %13 = arith.mulf %3, %12 : vector<128x128xf32>
    %14 = vector.broadcast %0 : vector<1x128xf32> to vector<128x128xf32>
    %15 = arith.mulf %13, %14 : vector<128x128xf32>
    %16 = arith.truncf %15 : vector<128x128xf32> to vector<128x128xbf16>
    %c0_9 = arith.constant 0 : index
    %c0_10 = arith.constant 0 : index
    %17 = vector.load %arg6[%c0_9, %c0_10] : memref<128x128xbf16, #tpu.memory_space<vmem>>, vector<128x128xbf16>
    %cst_11 = arith.constant dense<0.000000e+00> : vector<128x128xf32>
    %18 = tpu.matmul %16, %17, %cst_11 {dimension_numbers = #tpu.dot_dimension_numbers<[1], [0], [0], [1], [0, 0, 1, 1], [], []>} : vector<128x128xbf16>, vector<128x128xbf16>, vector<128x128xf32> -> vector<128x128xf32>
    %19 = arith.negf %18 : vector<128x128xf32>
    %20 = math.exp %19 : vector<128x128xf32>
    %cst_12 = arith.constant 1.000000e+00 : f32
    %21 = vector.broadcast %cst_12 : f32 to vector<128x128xf32>
    %22 = arith.addf %21, %20 : vector<128x128xf32>
    %23 = arith.divf %21, %22 : vector<128x128xf32>
    %24 = arith.mulf %18, %23 : vector<128x128xf32>
    %25 = arith.truncf %24 : vector<128x128xf32> to vector<128x128xbf16>
    %c0_13 = arith.constant 0 : index
    %c0_14 = arith.constant 0 : index
    %26 = vector.load %arg7[%c0_13, %c0_14] : memref<128x128xbf16, #tpu.memory_space<vmem>>, vector<128x128xbf16>
    %cst_15 = arith.constant dense<0.000000e+00> : vector<128x128xf32>
    %27 = tpu.matmul %25, %26, %cst_15 {dimension_numbers = #tpu.dot_dimension_numbers<[1], [0], [0], [1], [0, 0, 1, 1], [], []>} : vector<128x128xbf16>, vector<128x128xbf16>, vector<128x128xf32> -> vector<128x128xf32>
    %28 = arith.addf %3, %27 : vector<128x128xf32>
    %29 = arith.mulf %28, %28 : vector<128x128xf32>
    %cst_16 = arith.constant dense<0.000000e+00> : vector<128xf32>
    %30 = vector.multi_reduction <add>, %29, %cst_16 [1] : vector<128x128xf32> to vector<128xf32>
    %31 = vector.shape_cast %30 : vector<128xf32> to vector<128x1xf32>
    %cst_17 = arith.constant 1.280000e+02 : f32
    %32 = vector.broadcast %cst_17 : f32 to vector<128x1xf32>
    %33 = arith.divf %31, %32 : vector<128x1xf32>
    %cst_18 = arith.constant 9.99999997E-7 : f32
    %34 = vector.broadcast %cst_18 : f32 to vector<128x1xf32>
    %35 = arith.addf %33, %34 : vector<128x1xf32>
    %36 = math.rsqrt %35 : vector<128x1xf32>
    %37 = vector.broadcast %36 : vector<128x1xf32> to vector<128x128xf32>
    %38 = arith.mulf %28, %37 : vector<128x128xf32>
    %39 = vector.broadcast %1 : vector<1x128xf32> to vector<128x128xf32>
    %40 = arith.mulf %38, %39 : vector<128x128xf32>
    %41 = arith.truncf %40 : vector<128x128xf32> to vector<128x128xbf16>
    %cst_19 = arith.constant dense<0.000000e+00> : vector<128x384xf32>
    %42 = tpu.matmul %41, %2, %cst_19 {dimension_numbers = #tpu.dot_dimension_numbers<[1], [0], [0], [1], [0, 0, 1, 1], [], []>} : vector<128x128xbf16>, vector<128x384xbf16>, vector<128x384xf32> -> vector<128x384xf32>
    %43 = vector.extract_strided_slice %42 {offsets = [0, 0], sizes = [128, 128], strides = [1, 1]} : vector<128x384xf32> to vector<128x128xf32>
    %44 = vector.extract_strided_slice %42 {offsets = [0, 128], sizes = [128, 128], strides = [1, 1]} : vector<128x384xf32> to vector<128x128xf32>
    %45 = vector.extract_strided_slice %42 {offsets = [0, 256], sizes = [128, 128], strides = [1, 1]} : vector<128x384xf32> to vector<128x128xf32>
    %c0_20 = arith.constant 0 : index
    %c0_21 = arith.constant 0 : index
    %46 = vector.load %arg13[%c0_20, %c0_21] : memref<128x128xf32, #tpu.memory_space<vmem>>, vector<128x128xf32>
    tpu.vector_store %arg13[%c0_20, %c0_21], %44 {strides = array<i32>} : memref<128x128xf32, #tpu.memory_space<vmem>>, vector<128x128xf32>,
    %c0_22 = arith.constant 0 : index
    %c0_23 = arith.constant 0 : index
    %47 = vector.load %arg14[%c0_22, %c0_23] : memref<128x128xf32, #tpu.memory_space<vmem>>, vector<128x128xf32>
    tpu.vector_store %arg14[%c0_22, %c0_23], %45 {strides = array<i32>} : memref<128x128xf32, #tpu.memory_space<vmem>>, vector<128x128xf32>,
    %c0_24 = arith.constant 0 : index
    %c0_25 = arith.constant 0 : index
    %48 = vector.load %arg2[%c0_24, %c0_25] : memref<8x128xf32, #tpu.memory_space<vmem>>, vector<8x128xf32>
    %49 = arith.mulf %48, %48 : vector<8x128xf32>
    %cst_26 = arith.constant dense<0.000000e+00> : vector<8xf32>
    %50 = vector.multi_reduction <add>, %49, %cst_26 [1] : vector<8x128xf32> to vector<8xf32>
    %51 = vector.shape_cast %50 : vector<8xf32> to vector<8x1xf32>
    %cst_27 = arith.constant 1.280000e+02 : f32
    %52 = vector.broadcast %cst_27 : f32 to vector<8x1xf32>
    %53 = arith.divf %51, %52 : vector<8x1xf32>
    %cst_28 = arith.constant 9.99999997E-7 : f32
    %54 = vector.broadcast %cst_28 : f32 to vector<8x1xf32>
    %55 = arith.addf %53, %54 : vector<8x1xf32>
    %56 = math.rsqrt %55 : vector<8x1xf32>
    %57 = vector.broadcast %56 : vector<8x1xf32> to vector<8x128xf32>
    %58 = arith.mulf %48, %57 : vector<8x128xf32>
    %59 = vector.broadcast %0 : vector<1x128xf32> to vector<8x128xf32>
    %60 = arith.mulf %58, %59 : vector<8x128xf32>
    %61 = arith.truncf %60 : vector<8x128xf32> to vector<8x128xbf16>
    %c0_29 = arith.constant 0 : index
    %c0_30 = arith.constant 0 : index
    %62 = vector.load %arg6[%c0_29, %c0_30] : memref<128x128xbf16, #tpu.memory_space<vmem>>, vector<128x128xbf16>
    %cst_31 = arith.constant dense<0.000000e+00> : vector<8x128xf32>
    %63 = tpu.matmul %61, %62, %cst_31 {dimension_numbers = #tpu.dot_dimension_numbers<[1], [0], [0], [1], [0, 0, 1, 1], [], []>} : vector<8x128xbf16>, vector<128x128xbf16>, vector<8x128xf32> -> vector<8x128xf32>
    %64 = arith.negf %63 : vector<8x128xf32>
    %65 = math.exp %64 : vector<8x128xf32>
    %cst_32 = arith.constant 1.000000e+00 : f32
    %66 = vector.broadcast %cst_32 : f32 to vector<8x128xf32>
    %67 = arith.addf %66, %65 : vector<8x128xf32>
    %68 = arith.divf %66, %67 : vector<8x128xf32>
    %69 = arith.mulf %63, %68 : vector<8x128xf32>
    %70 = arith.truncf %69 : vector<8x128xf32> to vector<8x128xbf16>
    %c0_33 = arith.constant 0 : index
    %c0_34 = arith.constant 0 : index
    %71 = vector.load %arg7[%c0_33, %c0_34] : memref<128x128xbf16, #tpu.memory_space<vmem>>, vector<128x128xbf16>
    %cst_35 = arith.constant dense<0.000000e+00> : vector<8x128xf32>
    %72 = tpu.matmul %70, %71, %cst_35 {dimension_numbers = #tpu.dot_dimension_numbers<[1], [0], [0], [1], [0, 0, 1, 1], [], []>} : vector<8x128xbf16>, vector<128x128xbf16>, vector<8x128xf32> -> vector<8x128xf32>
    %73 = arith.addf %48, %72 : vector<8x128xf32>
    %74 = arith.mulf %73, %73 : vector<8x128xf32>
    %cst_36 = arith.constant dense<0.000000e+00> : vector<8xf32>
    %75 = vector.multi_reduction <add>, %74, %cst_36 [1] : vector<8x128xf32> to vector<8xf32>
    %76 = vector.shape_cast %75 : vector<8xf32> to vector<8x1xf32>
    %cst_37 = arith.constant 1.280000e+02 : f32
    %77 = vector.broadcast %cst_37 : f32 to vector<8x1xf32>
    %78 = arith.divf %76, %77 : vector<8x1xf32>
    %cst_38 = arith.constant 9.99999997E-7 : f32
    %79 = vector.broadcast %cst_38 : f32 to vector<8x1xf32>
    %80 = arith.addf %78, %79 : vector<8x1xf32>
    %81 = math.rsqrt %80 : vector<8x1xf32>
    %82 = vector.broadcast %81 : vector<8x1xf32> to vector<8x128xf32>
    %83 = arith.mulf %73, %82 : vector<8x128xf32>
    %84 = vector.broadcast %1 : vector<1x128xf32> to vector<8x128xf32>
    %85 = arith.mulf %83, %84 : vector<8x128xf32>
    %86 = arith.truncf %85 : vector<8x128xf32> to vector<8x128xbf16>
    %cst_39 = arith.constant dense<0.000000e+00> : vector<8x384xf32>
    %87 = tpu.matmul %86, %2, %cst_39 {dimension_numbers = #tpu.dot_dimension_numbers<[1], [0], [0], [1], [0, 0, 1, 1], [], []>} : vector<8x128xbf16>, vector<128x384xbf16>, vector<8x384xf32> -> vector<8x384xf32>
    %88 = vector.extract_strided_slice %87 {offsets = [0, 128], sizes = [8, 128], strides = [1, 1]} : vector<8x384xf32> to vector<8x128xf32>
    %89 = vector.extract_strided_slice %87 {offsets = [0, 256], sizes = [8, 128], strides = [1, 1]} : vector<8x384xf32> to vector<8x128xf32>
    %90 = tpu.concatenate %88, %44 in 0 : vector<8x128xf32>, vector<128x128xf32> -> vector<136x128xf32>
    %91 = arith.truncf %90 : vector<136x128xf32> to vector<136x128xbf16>
    %92 = tpu.concatenate %89, %45 in 0 : vector<8x128xf32>, vector<128x128xf32> -> vector<136x128xf32>
    %93 = arith.truncf %92 : vector<136x128xf32> to vector<136x128xbf16>
    %cst_40 = arith.constant 0.0883883461 : f32
    %94 = vector.broadcast %cst_40 : f32 to vector<128x128xf32>
    %95 = arith.mulf %43, %94 : vector<128x128xf32>
    %96 = arith.truncf %95 : vector<128x128xf32> to vector<128x128xbf16>
    %cst_41 = arith.constant dense<0.000000e+00> : vector<128x136xf32>
    %97 = tpu.matmul %96, %91, %cst_41 {dimension_numbers = #tpu.dot_dimension_numbers<[1], [1], [0], [0], [0, 0, 1, 0], [], []>} : vector<128x128xbf16>, vector<136x128xbf16>, vector<128x136xf32> -> vector<128x136xf32>
    %c128_i32 = arith.constant 128 : i32
    %98 = arith.muli %arg0, %c128_i32 : i32
    %99 = tpu.iota {dimensions = array<i32: 0>} : vector<128x136xi32>
    %100 = vector.broadcast %98 : i32 to vector<128x136xi32>
    %101 = arith.addi %100, %99 : vector<128x136xi32>
    %102 = tpu.iota {dimensions = array<i32: 1>} : vector<128x136xi32>
    %c0_i32 = arith.constant 0 : i32
    %103 = arith.cmpi sgt, %arg0, %c0_i32 : i32
    %c128_i32_42 = arith.constant 128 : i32
    %104 = arith.muli %arg0, %c128_i32_42 : i32
    %c8_i32 = arith.constant 8 : i32
    %105 = arith.subi %104, %c8_i32 : i32
    %c-1073741824_i32 = arith.constant -1073741824 : i32
    %106 = arith.select %103, %105, %c-1073741824_i32 : i32
    %c8_i32_43 = arith.constant 8 : i32
    %107 = vector.broadcast %c8_i32_43 : i32 to vector<128x136xi32>
    %108 = arith.cmpi slt, %102, %107 : vector<128x136xi32>
    %109 = vector.broadcast %106 : i32 to vector<128x136xi32>
    %110 = arith.addi %109, %102 : vector<128x136xi32>
    %c128_i32_44 = arith.constant 128 : i32
    %111 = arith.muli %arg0, %c128_i32_44 : i32
    %c8_i32_45 = arith.constant 8 : i32
    %112 = vector.broadcast %c8_i32_45 : i32 to vector<128x136xi32>
    %113 = arith.subi %102, %112 : vector<128x136xi32>
    %114 = vector.broadcast %111 : i32 to vector<128x136xi32>
    %115 = arith.addi %114, %113 : vector<128x136xi32>
    %116 = arith.select %108, %110, %115 : vector<128x136xi1>, vector<128x136xi32>
    %117 = arith.cmpi sle, %116, %101 : vector<128x136xi32>
    %118 = arith.subi %101, %116 : vector<128x136xi32>
    %c8_i32_46 = arith.constant 8 : i32
    %119 = vector.broadcast %c8_i32_46 : i32 to vector<128x136xi32>
    %120 = arith.cmpi slt, %118, %119 : vector<128x136xi32>
    %121 = arith.andi %117, %120 : vector<128x136xi1>
    %cst_47 = arith.constant -1.000000e+30 : f32
    %122 = vector.broadcast %cst_47 : f32 to vector<128x136xf32>
    %123 = arith.select %121, %97, %122 : vector<128x136xi1>, vector<128x136xf32>
    %cst_48 = arith.constant dense<0xFF800000> : vector<128xf32>
    %124 = vector.multi_reduction <maximumf>, %123, %cst_48 [1] : vector<128x136xf32> to vector<128xf32>
    %125 = vector.shape_cast %124 : vector<128xf32> to vector<128x1xf32>
    %126 = vector.broadcast %125 : vector<128x1xf32> to vector<128x136xf32>
    %127 = arith.subf %123, %126 : vector<128x136xf32>
    %128 = math.exp %127 : vector<128x136xf32>
    %cst_49 = arith.constant dense<0.000000e+00> : vector<128xf32>
    %129 = vector.multi_reduction <add>, %128, %cst_49 [1] : vector<128x136xf32> to vector<128xf32>
    %130 = vector.shape_cast %129 : vector<128xf32> to vector<128x1xf32>
    %131 = tpu.reciprocal %130 {approx = true} : vector<128x1xf32> -> vector<128x1xf32>
    %132 = vector.broadcast %131 : vector<128x1xf32> to vector<128x136xf32>
    %133 = arith.mulf %128, %132 : vector<128x136xf32>
    %134 = arith.truncf %133 : vector<128x136xf32> to vector<128x136xbf16>
    %cst_50 = arith.constant dense<0.000000e+00> : vector<128x128xf32>
    %135 = tpu.matmul %134, %93, %cst_50 {dimension_numbers = #tpu.dot_dimension_numbers<[1], [0], [0], [1], [0, 0, 1, 1], [], []>} : vector<128x136xbf16>, vector<136x128xbf16>, vector<128x128xf32> -> vector<128x128xf32>
    %136 = arith.truncf %135 : vector<128x128xf32> to vector<128x128xbf16>
    %c0_51 = arith.constant 0 : index
    %c0_52 = arith.constant 0 : index
    %137 = vector.load %arg9[%c0_51, %c0_52] : memref<128x128xbf16, #tpu.memory_space<vmem>>, vector<128x128xbf16>
    %cst_53 = arith.constant dense<0.000000e+00> : vector<128x128xf32>
    %138 = tpu.matmul %136, %137, %cst_53 {dimension_numbers = #tpu.dot_dimension_numbers<[1], [0], [0], [1], [0, 0, 1, 1], [], []>} : vector<128x128xbf16>, vector<128x128xbf16>, vector<128x128xf32> -> vector<128x128xf32>
    %139 = arith.addf %28, %138 : vector<128x128xf32>
    %c0_54 = arith.constant 0 : index
    %c0_55 = arith.constant 0 : index
    %140 = vector.load %arg5[%c0_54, %c0_55] : memref<1x128xf32, #tpu.memory_space<vmem>>, vector<1x128xf32>
    %141 = arith.mulf %139, %139 : vector<128x128xf32>
    %cst_56 = arith.constant dense<0.000000e+00> : vector<128xf32>
    %142 = vector.multi_reduction <add>, %141, %cst_56 [1] : vector<128x128xf32> to vector<128xf32>
    %143 = vector.shape_cast %142 : vector<128xf32> to vector<128x1xf32>
    %cst_57 = arith.constant 1.280000e+02 : f32
    %144 = vector.broadcast %cst_57 : f32 to vector<128x1xf32>
    %145 = arith.divf %143, %144 : vector<128x1xf32>
    %cst_58 = arith.constant 9.99999997E-7 : f32
    %146 = vector.broadcast %cst_58 : f32 to vector<128x1xf32>
    %147 = arith.addf %145, %146 : vector<128x1xf32>
    %148 = math.rsqrt %147 : vector<128x1xf32>
    %149 = vector.broadcast %148 : vector<128x1xf32> to vector<128x128xf32>
    %150 = arith.mulf %139, %149 : vector<128x128xf32>
    %151 = vector.broadcast %140 : vector<1x128xf32> to vector<128x128xf32>
    %152 = arith.mulf %150, %151 : vector<128x128xf32>
    %153 = arith.truncf %152 : vector<128x128xf32> to vector<128x128xbf16>
    %c0_59 = arith.constant 0 : index
    %c0_60 = arith.constant 0 : index
    %154 = vector.load %arg10[%c0_59, %c0_60] : memref<128x512xbf16, #tpu.memory_space<vmem>>, vector<128x512xbf16>
    %cst_61 = arith.constant dense<0.000000e+00> : vector<128x512xf32>
    %155 = tpu.matmul %153, %154, %cst_61 {dimension_numbers = #tpu.dot_dimension_numbers<[1], [0], [0], [1], [0, 0, 1, 1], [], []>} : vector<128x128xbf16>, vector<128x512xbf16>, vector<128x512xf32> -> vector<128x512xf32>
    %156 = arith.mulf %155, %155 : vector<128x512xf32>
    %157 = arith.mulf %155, %156 : vector<128x512xf32>
    %cst_62 = arith.constant 4.471500e-02 : f32
    %158 = vector.broadcast %cst_62 : f32 to vector<128x512xf32>
    %159 = arith.mulf %158, %157 : vector<128x512xf32>
    %160 = arith.addf %155, %159 : vector<128x512xf32>
    %cst_63 = arith.constant 0.797884583 : f32
    %161 = vector.broadcast %cst_63 : f32 to vector<128x512xf32>
    %162 = arith.mulf %161, %160 : vector<128x512xf32>
    %163 = math.tanh %162 : vector<128x512xf32>
    %cst_64 = arith.constant 1.000000e+00 : f32
    %164 = vector.broadcast %cst_64 : f32 to vector<128x512xf32>
    %165 = arith.addf %164, %163 : vector<128x512xf32>
    %cst_65 = arith.constant 5.000000e-01 : f32
    %166 = vector.broadcast %cst_65 : f32 to vector<128x512xf32>
    %167 = arith.mulf %166, %165 : vector<128x512xf32>
    %168 = arith.mulf %155, %167 : vector<128x512xf32>
    %169 = arith.truncf %168 : vector<128x512xf32> to vector<128x512xbf16>
    %c0_66 = arith.constant 0 : index
    %c0_67 = arith.constant 0 : index
    %170 = vector.load %arg11[%c0_66, %c0_67] : memref<512x128xbf16, #tpu.memory_space<vmem>>, vector<512x128xbf16>
    %cst_68 = arith.constant dense<0.000000e+00> : vector<128x128xf32>
    %171 = tpu.matmul %169, %170, %cst_68 {dimension_numbers = #tpu.dot_dimension_numbers<[1], [0], [0], [1], [0, 0, 1, 1], [], []>} : vector<128x512xbf16>, vector<512x128xbf16>, vector<128x128xf32> -> vector<128x128xf32>
    %172 = arith.addf %139, %171 : vector<128x128xf32>
    %c0_69 = arith.constant 0 : index
    %c0_70 = arith.constant 0 : index
    %173 = vector.load %arg12[%c0_69, %c0_70] : memref<128x128xf32, #tpu.memory_space<vmem>>, vector<128x128xf32>
    tpu.vector_store %arg12[%c0_69, %c0_70], %172 {strides = array<i32>} : memref<128x128xf32, #tpu.memory_space<vmem>>, vector<128x128xf32>,
    return
  }
  func.func @transform_0(%arg0: i32) -> (i32, i32) {
    %c0_i32 = arith.constant 0 : i32
    %c0_i32_0 = arith.constant 0 : i32
    return %arg0, %c0_i32 : i32, i32
  }
  func.func @transform_1(%arg0: i32) -> (i32, i32) {
    %c16_i32 = arith.constant 16 : i32
    %0 = arith.muli %arg0, %c16_i32 : i32
    %c1_i32 = arith.constant 1 : i32
    %1 = arith.subi %0, %c1_i32 : i32
    %c0_i32 = arith.constant 0 : i32
    %2 = arith.maxsi %1, %c0_i32 : i32
    %c0_i32_0 = arith.constant 0 : i32
    %c0_i32_1 = arith.constant 0 : i32
    return %2, %c0_i32_0 : i32, i32
  }
  func.func @transform_2(%arg0: i32) -> (i32, i32) {
    %c0_i32 = arith.constant 0 : i32
    %c0_i32_0 = arith.constant 0 : i32
    %c0_i32_1 = arith.constant 0 : i32
    return %c0_i32, %c0_i32_0 : i32, i32
  }
  func.func @transform_3(%arg0: i32) -> (i32, i32) {
    %c0_i32 = arith.constant 0 : i32
    %c0_i32_0 = arith.constant 0 : i32
    %c0_i32_1 = arith.constant 0 : i32
    return %c0_i32, %c0_i32_0 : i32, i32
  }
  func.func @transform_4(%arg0: i32) -> (i32, i32) {
    %c0_i32 = arith.constant 0 : i32
    %c0_i32_0 = arith.constant 0 : i32
    %c0_i32_1 = arith.constant 0 : i32
    return %c0_i32, %c0_i32_0 : i32, i32
  }
  func.func @transform_5(%arg0: i32) -> (i32, i32) {
    %c0_i32 = arith.constant 0 : i32
    %c0_i32_0 = arith.constant 0 : i32
    %c0_i32_1 = arith.constant 0 : i32
    return %c0_i32, %c0_i32_0 : i32, i32
  }
  func.func @transform_6(%arg0: i32) -> (i32, i32) {
    %c0_i32 = arith.constant 0 : i32
    %c0_i32_0 = arith.constant 0 : i32
    %c0_i32_1 = arith.constant 0 : i32
    return %c0_i32, %c0_i32_0 : i32, i32
  }
  func.func @transform_7(%arg0: i32) -> (i32, i32) {
    %c0_i32 = arith.constant 0 : i32
    %c0_i32_0 = arith.constant 0 : i32
    %c0_i32_1 = arith.constant 0 : i32
    return %c0_i32, %c0_i32_0 : i32, i32
  }
  func.func @transform_8(%arg0: i32) -> (i32, i32) {
    %c0_i32 = arith.constant 0 : i32
    %c0_i32_0 = arith.constant 0 : i32
    %c0_i32_1 = arith.constant 0 : i32
    return %c0_i32, %c0_i32_0 : i32, i32
  }
  func.func @transform_9(%arg0: i32) -> (i32, i32) {
    %c0_i32 = arith.constant 0 : i32
    %c0_i32_0 = arith.constant 0 : i32
    %c0_i32_1 = arith.constant 0 : i32
    return %c0_i32, %c0_i32_0 : i32, i32
  }
  func.func @transform_10(%arg0: i32) -> (i32, i32) {
    %c0_i32 = arith.constant 0 : i32
    %c0_i32_0 = arith.constant 0 : i32
    %c0_i32_1 = arith.constant 0 : i32
    return %c0_i32, %c0_i32_0 : i32, i32
  }
  func.func @transform_11(%arg0: i32) -> (i32, i32) {
    %c0_i32 = arith.constant 0 : i32
    %c0_i32_0 = arith.constant 0 : i32
    return %arg0, %c0_i32 : i32, i32
  }
  func.func @transform_12(%arg0: i32) -> (i32, i32) {
    %c0_i32 = arith.constant 0 : i32
    %c0_i32_0 = arith.constant 0 : i32
    return %arg0, %c0_i32 : i32, i32
  }
  func.func @transform_13(%arg0: i32) -> (i32, i32) {
    %c0_i32 = arith.constant 0 : i32
    %c0_i32_0 = arith.constant 0 : i32
    return %arg0, %c0_i32 : i32, i32
  }
}

</mosaic_0001>

<llo_original>
// kernel: tpu_custom_call.1
$region0: #{tpu_custom_call.1}
  #allocation0 [shape = 'u32[]', space=smem, size = 0x4, offset = 0x4, fixed_abs, tag = 'smem constant byte address 0x4 - core index']
  #allocation1 [shape = 'u32[144,128]{1,0:T(1,128)}', space=vmem, size = 0x12000, scoped, tag = 'internal scratch']
  %s0 = inlined_call_operand.hbm [shape: f32[256,128], index: 0, kind: input, shape index: {}]
  %s1 = inlined_call_operand.hbm [shape: f32[256,128], index: 1, kind: input, shape index: {}]
  %s2 = inlined_call_operand.vmem [shape: f32[1,128], index: 2, kind: input, shape index: {}]
  %s3 = inlined_call_operand.vmem [shape: f32[1,128], index: 3, kind: input, shape index: {}]
  %s4 = inlined_call_operand.vmem [shape: f32[1,128], index: 4, kind: input, shape index: {}]
  %s5 = inlined_call_operand.hbm [shape: bf16[128,128], index: 5, kind: input, shape index: {}]
  %s6 = inlined_call_operand.hbm [shape: bf16[128,128], index: 6, kind: input, shape index: {}]
  %s7 = inlined_call_operand.hbm [shape: bf16[128,384], index: 7, kind: input, shape index: {}]
  %s8 = inlined_call_operand.hbm [shape: bf16[128,128], index: 8, kind: input, shape index: {}]
  %s9 = inlined_call_operand.hbm [shape: bf16[128,512], index: 9, kind: input, shape index: {}]
  %s10 = inlined_call_operand.hbm [shape: bf16[512,128], index: 10, kind: input, shape index: {}]
  %s11 = inlined_call_operand.hbm [shape: f32[256,128], index: 11, kind: output, shape index: {0}]
  %s12 = inlined_call_operand.hbm [shape: f32[256,128], index: 12, kind: output, shape index: {1}]
  %s13 = inlined_call_operand.hbm [shape: f32[256,128], index: 13, kind: output, shape index: {2}]
  %14 = xla_tuple %s11, %s12, %s13
  %s15 = sld [smem:[#allocation0]]
  $region125: #{tpu_custom_call.1} parent=0
    _
  %s17 = ssub.s32 1, %s15
  %s18 = scalar_select 0, %s17, %s15
  $region1: #{tpu_custom_call.1} parent=0
    #allocation2 [shape = 'u8[131072]{0}', space=vmem, size = 0x20000, scoped, tag = 'input window, operand 0']
    #allocation3 [shape = 's32[2]{0}', space=sflag, size = 0x8, scoped, tag = 'scoped memory for tpu_custom_call.1']
    #allocation4 [shape = 's32[2]{0}', space=sflag, size = 0x8, scoped, tag = 'scoped memory for tpu_custom_call.1']
    #allocation5 [shape = 'u8[8192]{0}', space=vmem, size = 0x2000, scoped, tag = 'input window, operand 1']
    #allocation6 [shape = 's32[2]{0}', space=sflag, size = 0x8, scoped, tag = 'scoped memory for tpu_custom_call.1']
    #allocation7 [shape = 'u8[32768]{0}', space=vmem, size = 0x8000, scoped, tag = 'input window, operand 5, single buffered']
    #allocation8 [shape = 'u8[32768]{0}', space=vmem, size = 0x8000, scoped, tag = 'input window, operand 6, single buffered']
    #allocation9 [shape = 's32[1]{0}', space=sflag, size = 0x4, scoped, tag = 'scoped memory for tpu_custom_call.1']
    #allocation10 [shape = 'u8[98304]{0}', space=vmem, size = 0x18000, scoped, tag = 'input window, operand 7, single buffered']
    #allocation11 [shape = 'u8[32768]{0}', space=vmem, size = 0x8000, scoped, tag = 'input window, operand 8, single buffered']
    #allocation12 [shape = 's32[1]{0}', space=sflag, size = 0x4, scoped, tag = 'scoped memory for tpu_custom_call.1']
    #allocation13 [shape = 'u8[131072]{0}', space=vmem, size = 0x20000, scoped, tag = 'input window, operand 9, single buffered']
    #allocation14 [shape = 'u8[131072]{0}', space=vmem, size = 0x20000, scoped, tag = 'input window, operand 10, single buffered']
    #allocation15 [shape = 's32[1]{0}', space=sflag, size = 0x4, scoped, tag = 'scoped memory for tpu_custom_call.1']
    #allocation16 [shape = 'u8[131072]{0}', space=vmem, size = 0x20000, scoped, tag = 'output window, operand 0']
    #allocation17 [shape = 'u8[131072]{0}', space=vmem, size = 0x20000, scoped, tag = 'output window, operand 1']
    #allocation18 [shape = 's32[2]{0}', space=sflag, size = 0x8, scoped, tag = 'scoped memory for tpu_custom_call.1']
    #allocation19 [shape = 'u8[131072]{0}', space=vmem, size = 0x20000, scoped, tag = 'output window, operand 2']
    %19 = vsyncpa [#allocation3], 0
    %s20 = scalar_lea.sflag [#allocation3], 1
    %21 = vsyncpa %s20, 0
    %22 = vsyncpa [#allocation6], 0
    %s23 = scalar_lea.sflag [#allocation6], 1
    %24 = vsyncpa %s23, 0
    %25 = vsyncpa [#allocation9], 0
    %26 = vsyncpa [#allocation12], 0
    %27 = vsyncpa [#allocation15], 0
    %28 = vsyncpa [#allocation4], 0
    %s29 = scalar_lea.sflag [#allocation4], 1
    %30 = vsyncpa %s29, 0
    %31 = vsyncpa [#allocation18], 0
    %s32 = scalar_lea.sflag [#allocation18], 1
    %33 = vsyncpa %s32, 0
    loop: start=0, step=1, limit=4
    $region2: #{tpu_custom_call.1} parent=1 // loop_pre_header
      _
    $region3: #{tpu_custom_call.1} parent=1 // loop_header
      %s35 = sphi 0, %s39
      %p36 = scmp.ge.s32.totalorder %s35, 4
      %s45 = sphi 0, %s47
      %s48 = sphi 0, %s45
      %s49 = sphi 0, %s48
      %s65 = sphi 0, %s49
      %s79 = sphi 0, %s81
      %s82 = sphi 0, %s79
      %s83 = sphi 0, %s82
      %s99 = sphi 0, %s83
      %s103 = sphi 0, %s103
      %s105 = sphi 0, %s103
      %s106 = sphi 0, %s105
      %s120 = sphi 0, %s106
      %s124 = sphi 0, %s124
      %s126 = sphi 0, %s124
      %s127 = sphi 0, %s126
      %s141 = sphi 0, %s127
      %s145 = sphi 0, %s145
      %s147 = sphi 0, %s145
      %s148 = sphi 0, %s147
      %s162 = sphi 0, %s148
      %s166 = sphi 0, %s166
      %s168 = sphi 0, %s166
      %s169 = sphi 0, %s168
      %s183 = sphi 0, %s169
      %s187 = sphi 0, %s187
      %s189 = sphi 0, %s187
      %s190 = sphi 0, %s189
      %s204 = sphi 0, %s190
      %s208 = sphi 0, %s208
      %s210 = sphi 0, %s208
      %s211 = sphi 0, %s210
      %s225 = sphi 0, %s211
      %s229 = sphi 0, %s229
      %s231 = sphi 0, %s229
      %s232 = sphi 0, %s231
      %s246 = sphi 0, %s232
      %s250 = sphi 0, %s250
      %s252 = sphi 0, %s250
      %s253 = sphi 0, %s252
      %s267 = sphi 0, %s253
      %s271 = sphi 0, %s271
      %s273 = sphi 0, %s271
      %s274 = sphi 0, %s273
      %s288 = sphi 0, %s274
      %s294 = sphi 0, %s296
      %s297 = sphi 0, %s294
      %s298 = sphi 0, %s297
      %s314 = sphi 0, %s298
      %s320 = sphi 0, %s322
      %s323 = sphi 0, %s320
      %s324 = sphi 0, %s323
      %s340 = sphi 0, %s324
      %s346 = sphi 0, %s348
      %s349 = sphi 0, %s346
      %s350 = sphi 0, %s349
      %s366 = sphi 0, %s350
    $region4: #{tpu_custom_call.1} parent=1 // loop_header_branch
      %38 = sbr.rel (%p36) target = $region8
    $region5: #{tpu_custom_call.1} parent=1 // loop_body
      %s40 = ssub.s32 %s35, 1
      %s41 = ssub.s32 %s35, 2
      %s42 = sadd.s32 %s35, 1
      %s43 = ssub.s32 %s35, %s42
      %p44 = scmp.eq.s32.totalorder %s43, 0
      %s46 = sadd.s32 %s45, 1
      %s47 = scalar_select %p44, %s45, %s46
      %p50 = pneg %p44
      %p51 = scmp.eq.s32.totalorder %s35, 1
      %p52 = por %p50, %p51
      %p53 = scmp.ne.s32.totalorder %s45, %s48
      %p54 = scmp.eq.s32.totalorder %s35, 0
      %p55 = por %p53, %p54
      %p56 = scmp.ne.s32.totalorder %s45, %s48
      %p57 = scmp.eq.s32.totalorder %s40, 1
      %p58 = por %p56, %p57
      %p59 = scmp.ne.s32.totalorder %s48, %s49
      %p60 = scmp.eq.s32.totalorder %s40, 0
      %p61 = por %p59, %p60
      %p62 = scmp.ne.s32.totalorder %s48, %s49
      %p63 = scmp.eq.s32.totalorder %s41, 1
      %p64 = por %p62, %p63
      %p66 = scmp.ne.s32.totalorder %s49, %s65
      %p67 = scmp.eq.s32.totalorder %s41, 0
      %p68 = por %p66, %p67
      %s69 = smul.u32 %s35, 16
      %s70 = ssub.s32 %s69, 1
      %p71 = scmp.gt.s32.totalorder %s70, 0
      %s72 = scalar_select %p71, %s70, 0
      %s73 = smul.u32 %s42, 16
      %s74 = ssub.s32 %s73, 1
      %p75 = scmp.gt.s32.totalorder %s74, 0
      %s76 = scalar_select %p75, %s74, 0
      %s77 = ssub.s32 %s72, %s76
      %p78 = scmp.eq.s32.totalorder %s77, 0
      %s80 = sadd.s32 %s79, 1
      %s81 = scalar_select %p78, %s79, %s80
      %p84 = pneg %p78
      %p85 = scmp.eq.s32.totalorder %s35, 1
      %p86 = por %p84, %p85
      %p87 = scmp.ne.s32.totalorder %s79, %s82
      %p88 = scmp.eq.s32.totalorder %s35, 0
      %p89 = por %p87, %p88
      %p90 = scmp.ne.s32.totalorder %s79, %s82
      %p91 = scmp.eq.s32.totalorder %s40, 1
      %p92 = por %p90, %p91
      %p93 = scmp.ne.s32.totalorder %s82, %s83
      %p94 = scmp.eq.s32.totalorder %s40, 0
      %p95 = por %p93, %p94
      %p96 = scmp.ne.s32.totalorder %s82, %s83
      %p97 = scmp.eq.s32.totalorder %s41, 1
      %p98 = por %p96, %p97
      %p100 = scmp.ne.s32.totalorder %s83, %s99
      %p101 = scmp.eq.s32.totalorder %s41, 0
      %p102 = por %p100, %p101
      %s104 = sadd.s32 %s103, 1
      %p107 = scmp.eq.s32.totalorder %s35, 1
      %p108 = scmp.ne.s32.totalorder %s103, %s105
      %p109 = scmp.eq.s32.totalorder %s35, 0
      %p110 = por %p108, %p109
      %p111 = scmp.ne.s32.totalorder %s103, %s105
      %p112 = scmp.eq.s32.totalorder %s40, 1
      %p113 = por %p111, %p112
      %p114 = scmp.ne.s32.totalorder %s105, %s106
      %p115 = scmp.eq.s32.totalorder %s40, 0
      %p116 = por %p114, %p115
      %p117 = scmp.ne.s32.totalorder %s105, %s106
      %p118 = scmp.eq.s32.totalorder %s41, 1
      %p119 = por %p117, %p118
      %p121 = scmp.ne.s32.totalorder %s106, %s120
      %p122 = scmp.eq.s32.totalorder %s41, 0
      %p123 = por %p121, %p122
      %s125 = sadd.s32 %s124, 1
      %p128 = scmp.eq.s32.totalorder %s35, 1
      %p129 = scmp.ne.s32.totalorder %s124, %s126
      %p130 = scmp.eq.s32.totalorder %s35, 0
      %p131 = por %p129, %p130
      %p132 = scmp.ne.s32.totalorder %s124, %s126
      %p133 = scmp.eq.s32.totalorder %s40, 1
      %p134 = por %p132, %p133
      %p135 = scmp.ne.s32.totalorder %s126, %s127
      %p136 = scmp.eq.s32.totalorder %s40, 0
      %p137 = por %p135, %p136
      %p138 = scmp.ne.s32.totalorder %s126, %s127
      %p139 = scmp.eq.s32.totalorder %s41, 1
      %p140 = por %p138, %p139
      %p142 = scmp.ne.s32.totalorder %s127, %s141
      %p143 = scmp.eq.s32.totalorder %s41, 0
      %p144 = por %p142, %p143
      %s146 = sadd.s32 %s145, 1
      %p149 = scmp.eq.s32.totalorder %s35, 1
      %p150 = scmp.ne.s32.totalorder %s145, %s147
      %p151 = scmp.eq.s32.totalorder %s35, 0
      %p152 = por %p150, %p151
      %p153 = scmp.ne.s32.totalorder %s145, %s147
      %p154 = scmp.eq.s32.totalorder %s40, 1
      %p155 = por %p153, %p154
      %p156 = scmp.ne.s32.totalorder %s147, %s148
      %p157 = scmp.eq.s32.totalorder %s40, 0
      %p158 = por %p156, %p157
      %p159 = scmp.ne.s32.totalorder %s147, %s148
      %p160 = scmp.eq.s32.totalorder %s41, 1
      %p161 = por %p159, %p160
      %p163 = scmp.ne.s32.totalorder %s148, %s162
      %p164 = scmp.eq.s32.totalorder %s41, 0
      %p165 = por %p163, %p164
      %s167 = sadd.s32 %s166, 1
      %p170 = scmp.eq.s32.totalorder %s35, 1
      %p171 = scmp.ne.s32.totalorder %s166, %s168
      %p172 = scmp.eq.s32.totalorder %s35, 0
      %p173 = por %p171, %p172
      %p174 = scmp.ne.s32.totalorder %s166, %s168
      %p175 = scmp.eq.s32.totalorder %s40, 1
      %p176 = por %p174, %p175
      %p177 = scmp.ne.s32.totalorder %s168, %s169
      %p178 = scmp.eq.s32.totalorder %s40, 0
      %p179 = por %p177, %p178
      %p180 = scmp.ne.s32.totalorder %s168, %s169
      %p181 = scmp.eq.s32.totalorder %s41, 1
      %p182 = por %p180, %p181
      %p184 = scmp.ne.s32.totalorder %s169, %s183
      %p185 = scmp.eq.s32.totalorder %s41, 0
      %p186 = por %p184, %p185
      %s188 = sadd.s32 %s187, 1
      %p191 = scmp.eq.s32.totalorder %s35, 1
      %p192 = scmp.ne.s32.totalorder %s187, %s189
      %p193 = scmp.eq.s32.totalorder %s35, 0
      %p194 = por %p192, %p193
      %p195 = scmp.ne.s32.totalorder %s187, %s189
      %p196 = scmp.eq.s32.totalorder %s40, 1
      %p197 = por %p195, %p196
      %p198 = scmp.ne.s32.totalorder %s189, %s190
      %p199 = scmp.eq.s32.totalorder %s40, 0
      %p200 = por %p198, %p199
      %p201 = scmp.ne.s32.totalorder %s189, %s190
      %p202 = scmp.eq.s32.totalorder %s41, 1
      %p203 = por %p201, %p202
      %p205 = scmp.ne.s32.totalorder %s190, %s204
      %p206 = scmp.eq.s32.totalorder %s41, 0
      %p207 = por %p205, %p206
      %s209 = sadd.s32 %s208, 1
      %p212 = scmp.eq.s32.totalorder %s35, 1
      %p213 = scmp.ne.s32.totalorder %s208, %s210
      %p214 = scmp.eq.s32.totalorder %s35, 0
      %p215 = por %p213, %p214
      %p216 = scmp.ne.s32.totalorder %s208, %s210
      %p217 = scmp.eq.s32.totalorder %s40, 1
      %p218 = por %p216, %p217
      %p219 = scmp.ne.s32.totalorder %s210, %s211
      %p220 = scmp.eq.s32.totalorder %s40, 0
      %p221 = por %p219, %p220
      %p222 = scmp.ne.s32.totalorder %s210, %s211
      %p223 = scmp.eq.s32.totalorder %s41, 1
      %p224 = por %p222, %p223
      %p226 = scmp.ne.s32.totalorder %s211, %s225
      %p227 = scmp.eq.s32.totalorder %s41, 0
      %p228 = por %p226, %p227
      %s230 = sadd.s32 %s229, 1
      %p233 = scmp.eq.s32.totalorder %s35, 1
      %p234 = scmp.ne.s32.totalorder %s229, %s231
      %p235 = scmp.eq.s32.totalorder %s35, 0
      %p236 = por %p234, %p235
      %p237 = scmp.ne.s32.totalorder %s229, %s231
      %p238 = scmp.eq.s32.totalorder %s40, 1
      %p239 = por %p237, %p238
      %p240 = scmp.ne.s32.totalorder %s231, %s232
      %p241 = scmp.eq.s32.totalorder %s40, 0
      %p242 = por %p240, %p241
      %p243 = scmp.ne.s32.totalorder %s231, %s232
      %p244 = scmp.eq.s32.totalorder %s41, 1
      %p245 = por %p243, %p244
      %p247 = scmp.ne.s32.totalorder %s232, %s246
      %p248 = scmp.eq.s32.totalorder %s41, 0
      %p249 = por %p247, %p248
      %s251 = sadd.s32 %s250, 1
      %p254 = scmp.eq.s32.totalorder %s35, 1
      %p255 = scmp.ne.s32.totalorder %s250, %s252
      %p256 = scmp.eq.s32.totalorder %s35, 0
      %p257 = por %p255, %p256
      %p258 = scmp.ne.s32.totalorder %s250, %s252
      %p259 = scmp.eq.s32.totalorder %s40, 1
      %p260 = por %p258, %p259
      %p261 = scmp.ne.s32.totalorder %s252, %s253
      %p262 = scmp.eq.s32.totalorder %s40, 0
      %p263 = por %p261, %p262
      %p264 = scmp.ne.s32.totalorder %s252, %s253
      %p265 = scmp.eq.s32.totalorder %s41, 1
      %p266 = por %p264, %p265
      %p268 = scmp.ne.s32.totalorder %s253, %s267
      %p269 = scmp.eq.s32.totalorder %s41, 0
      %p270 = por %p268, %p269
      %s272 = sadd.s32 %s271, 1
      %p275 = scmp.eq.s32.totalorder %s35, 1
      %p276 = scmp.ne.s32.totalorder %s271, %s273
      %p277 = scmp.eq.s32.totalorder %s35, 0
      %p278 = por %p276, %p277
      %p279 = scmp.ne.s32.totalorder %s271, %s273
      %p280 = scmp.eq.s32.totalorder %s40, 1
      %p281 = por %p279, %p280
      %p282 = scmp.ne.s32.totalorder %s273, %s274
      %p283 = scmp.eq.s32.totalorder %s40, 0
      %p284 = por %p282, %p283
      %p285 = scmp.ne.s32.totalorder %s273, %s274
      %p286 = scmp.eq.s32.totalorder %s41, 1
      %p287 = por %p285, %p286
      %p289 = scmp.ne.s32.totalorder %s274, %s288
      %p290 = scmp.eq.s32.totalorder %s41, 0
      %p291 = por %p289, %p290
      %s292 = ssub.s32 %s35, %s42
      %p293 = scmp.eq.s32.totalorder %s292, 0
      %s295 = sadd.s32 %s294, 1
      %s296 = scalar_select %p293, %s294, %s295
      %p299 = pneg %p293
      %p300 = scmp.eq.s32.totalorder %s35, 1
      %p301 = por %p299, %p300
      %p302 = scmp.ne.s32.totalorder %s294, %s297
      %p303 = scmp.eq.s32.totalorder %s35, 0
      %p304 = por %p302, %p303
      %p305 = scmp.ne.s32.totalorder %s294, %s297
      %p306 = scmp.eq.s32.totalorder %s40, 1
      %p307 = por %p305, %p306
      %p308 = scmp.ne.s32.totalorder %s297, %s298
      %p309 = scmp.eq.s32.totalorder %s40, 0
      %p310 = por %p308, %p309
      %p311 = scmp.ne.s32.totalorder %s297, %s298
      %p312 = scmp.eq.s32.totalorder %s41, 1
      %p313 = por %p311, %p312
      %p315 = scmp.ne.s32.totalorder %s298, %s314
      %p316 = scmp.eq.s32.totalorder %s41, 0
      %p317 = por %p315, %p316
      %s318 = ssub.s32 %s35, %s42
      %p319 = scmp.eq.s32.totalorder %s318, 0
      %s321 = sadd.s32 %s320, 1
      %s322 = scalar_select %p319, %s320, %s321
      %p325 = pneg %p319
      %p326 = scmp.eq.s32.totalorder %s35, 1
      %p327 = por %p325, %p326
      %p328 = scmp.ne.s32.totalorder %s320, %s323
      %p329 = scmp.eq.s32.totalorder %s35, 0
      %p330 = por %p328, %p329
      %p331 = scmp.ne.s32.totalorder %s320, %s323
      %p332 = scmp.eq.s32.totalorder %s40, 1
      %p333 = por %p331, %p332
      %p334 = scmp.ne.s32.totalorder %s323, %s324
      %p335 = scmp.eq.s32.totalorder %s40, 0
      %p336 = por %p334, %p335
      %p337 = scmp.ne.s32.totalorder %s323, %s324
      %p338 = scmp.eq.s32.totalorder %s41, 1
      %p339 = por %p337, %p338
      %p341 = scmp.ne.s32.totalorder %s324, %s340
      %p342 = scmp.eq.s32.totalorder %s41, 0
      %p343 = por %p341, %p342
      %s344 = ssub.s32 %s35, %s42
      %p345 = scmp.eq.s32.totalorder %s344, 0
      %s347 = sadd.s32 %s346, 1
      %s348 = scalar_select %p345, %s346, %s347
      %p351 = pneg %p345
      %p352 = scmp.eq.s32.totalorder %s35, 1
      %p353 = por %p351, %p352
      %p354 = scmp.ne.s32.totalorder %s346, %s349
      %p355 = scmp.eq.s32.totalorder %s35, 0
      %p356 = por %p354, %p355
      %p357 = scmp.ne.s32.totalorder %s346, %s349
      %p358 = scmp.eq.s32.totalorder %s40, 1
      %p359 = por %p357, %p358
      %p360 = scmp.ne.s32.totalorder %s349, %s350
      %p361 = scmp.eq.s32.totalorder %s40, 0
      %p362 = por %p360, %p361
      %p363 = scmp.ne.s32.totalorder %s349, %s350
      %p364 = scmp.eq.s32.totalorder %s41, 1
      %p365 = por %p363, %p364
      %p367 = scmp.ne.s32.totalorder %s350, %s366
      %p368 = scmp.eq.s32.totalorder %s41, 0
      %p369 = por %p367, %p368
      %p370 = scmp.le.s32.totalorder 1, %s35
      %p371 = scmp.lt.s32.totalorder %s35, 3
      %p372 = pnand %p370, %p371
      %p373 = pneg %p372
      // Predicated region
      $region9: #{tpu_custom_call.1} parent=5 // pred_check
        _
      $region10: #{tpu_custom_call.1} parent=5 // pred_check_branch
        %375 = sbr.rel (%p372) target = $region12
      $region11: #{tpu_custom_call.1} parent=5 // pred_region
        %s376 = ssub.s32 %s35, 1
        // Predicated region
        $region13: #{tpu_custom_call.1} parent=11 // pred_check
          %p377 = pneg %p116
        $region14: #{tpu_custom_call.1} parent=11 // pred_check_branch
          %379 = sbr.rel (%p377) target = $region16
        $region15: #{tpu_custom_call.1} parent=11 // pred_region
          _
        $region16: #{tpu_custom_call.1} parent=11 // pred_fallthru
          _
        // Predicated region
        $region17: #{tpu_custom_call.1} parent=11 // pred_check
          %p380 = pneg %p137
        $region18: #{tpu_custom_call.1} parent=11 // pred_check_branch
          %382 = sbr.rel (%p380) target = $region20
        $region19: #{tpu_custom_call.1} parent=11 // pred_region
          _
        $region20: #{tpu_custom_call.1} parent=11 // pred_fallthru
          _
        // Predicated region
        $region21: #{tpu_custom_call.1} parent=11 // pred_check
          %p383 = pneg %p158
        $region22: #{tpu_custom_call.1} parent=11 // pred_check_branch
          %385 = sbr.rel (%p383) target = $region24
        $region23: #{tpu_custom_call.1} parent=11 // pred_region
          _
        $region24: #{tpu_custom_call.1} parent=11 // pred_fallthru
          _
        // Predicated region
        $region25: #{tpu_custom_call.1} parent=11 // pred_check
          %p386 = pneg %p179
        $region26: #{tpu_custom_call.1} parent=11 // pred_check_branch
          %388 = sbr.rel (%p386) target = $region28
        $region27: #{tpu_custom_call.1} parent=11 // pred_region
          %s390 = ssub.s32 1024, 1024
          %391 = vsyncadd [#allocation6], %s390
          %s392 = sshll.u32 [#allocation7], 4
          %s393 = int_to_ptr.vmem [resolvable:$true] %s392
          %398 = dma.hbm_to_vmem [thread:$0]  %s5, 1024, %s393, [#allocation6], 64, 64, 4
        $region28: #{tpu_custom_call.1} parent=11 // pred_fallthru
          _
        // Predicated region
        $region29: #{tpu_custom_call.1} parent=11 // pred_check
          %p399 = pneg %p200
        $region30: #{tpu_custom_call.1} parent=11 // pred_check_branch
          %401 = sbr.rel (%p399) target = $region32
        $region31: #{tpu_custom_call.1} parent=11 // pred_region
          %s403 = ssub.s32 1024, 1024
          %404 = vsyncadd [#allocation9], %s403
          %s405 = sshll.u32 [#allocation8], 4
          %s406 = int_to_ptr.vmem [resolvable:$true] %s405
          %411 = dma.hbm_to_vmem [thread:$0]  %s6, 1024, %s406, [#allocation9], 64, 64, 4
        $region32: #{tpu_custom_call.1} parent=11 // pred_fallthru
          _
        // Predicated region
        $region33: #{tpu_custom_call.1} parent=11 // pred_check
          %p412 = pneg %p221
        $region34: #{tpu_custom_call.1} parent=11 // pred_check_branch
          %414 = sbr.rel (%p412) target = $region36
        $region35: #{tpu_custom_call.1} parent=11 // pred_region
          %s416 = ssub.s32 3072, 3072
          %417 = vsyncadd [#allocation9], %s416
          %s418 = sshll.u32 [#allocation10], 4
          %s419 = int_to_ptr.vmem [resolvable:$true] %s418
          %424 = dma.hbm_to_vmem [thread:$0]  %s7, 3072, %s419, [#allocation9], 192, 192, 12
        $region36: #{tpu_custom_call.1} parent=11 // pred_fallthru
          _
        // Predicated region
        $region37: #{tpu_custom_call.1} parent=11 // pred_check
          %p425 = pneg %p242
        $region38: #{tpu_custom_call.1} parent=11 // pred_check_branch
          %427 = sbr.rel (%p425) target = $region40
        $region39: #{tpu_custom_call.1} parent=11 // pred_region
          %s429 = ssub.s32 1024, 1024
          %430 = vsyncadd [#allocation12], %s429
          %s431 = sshll.u32 [#allocation11], 4
          %s432 = int_to_ptr.vmem [resolvable:$true] %s431
          %437 = dma.hbm_to_vmem [thread:$0]  %s8, 1024, %s432, [#allocation12], 64, 64, 4
        $region40: #{tpu_custom_call.1} parent=11 // pred_fallthru
          _
        // Predicated region
        $region41: #{tpu_custom_call.1} parent=11 // pred_check
          %p438 = pneg %p263
        $region42: #{tpu_custom_call.1} parent=11 // pred_check_branch
          %440 = sbr.rel (%p438) target = $region44
        $region43: #{tpu_custom_call.1} parent=11 // pred_region
          %s442 = ssub.s32 4096, 4096
          %443 = vsyncadd [#allocation12], %s442
          %s444 = sshll.u32 [#allocation13], 4
          %s445 = int_to_ptr.vmem [resolvable:$true] %s444
          %450 = dma.hbm_to_vmem [thread:$0]  %s9, 4096, %s445, [#allocation12], 256, 256, 16
        $region44: #{tpu_custom_call.1} parent=11 // pred_fallthru
          _
        // Predicated region
        $region45: #{tpu_custom_call.1} parent=11 // pred_check
          %p451 = pneg %p284
        $region46: #{tpu_custom_call.1} parent=11 // pred_check_branch
          %453 = sbr.rel (%p451) target = $region48
        $region47: #{tpu_custom_call.1} parent=11 // pred_region
          %s455 = ssub.s32 4096, 4096
          %456 = vsyncadd [#allocation15], %s455
          %s457 = sshll.u32 [#allocation14], 4
          %s458 = int_to_ptr.vmem [resolvable:$true] %s457
          %463 = dma.hbm_to_vmem [thread:$0]  %s10, 4096, %s458, [#allocation15], 64, 64, 4
        $region48: #{tpu_custom_call.1} parent=11 // pred_fallthru
          _
      $region12: #{tpu_custom_call.1} parent=5 // pred_fallthru
        _
      %p464 = scmp.lt.s32.totalorder %s35, 2
      // Predicated region
      $region49: #{tpu_custom_call.1} parent=5 // pred_check
        %p465 = pneg %p464
      $region50: #{tpu_custom_call.1} parent=5 // pred_check_branch
        %467 = sbr.rel (%p465) target = $region52
      $region51: #{tpu_custom_call.1} parent=5 // pred_region
        // Predicated region
        $region53: #{tpu_custom_call.1} parent=51 // pred_check
          %p468 = pneg %p55
        $region54: #{tpu_custom_call.1} parent=51 // pred_check_branch
          %470 = sbr.rel (%p468) target = $region56
        $region55: #{tpu_custom_call.1} parent=51 // pred_region
          %s471 = sand.u32 %s45, 1
          %s472 = scalar_lea.sflag [#allocation3], %s471
          %s473 = sand.u32 %s45, 1
          %s474 = smul.addr %s473, 128
          %s475 = scalar_lea.vmem [#allocation2], %s474
          %s476 = smul.u32 16, %s35
          %s478 = ssub.s32 2048, 2048
          %479 = vsyncadd %s472, %s478
          %s480 = smul.addr %s476, 128
          %s481 = scalar_lea.hbm %s0, %s480
          %s482 = sshll.u32 %s475, 4
          %s483 = int_to_ptr.vmem [resolvable:$true] %s482
          %488 = dma.hbm_to_vmem [thread:$0]  %s481, 2048, %s483, %s472, 128, 128, 8
        $region56: #{tpu_custom_call.1} parent=51 // pred_fallthru
          _
        // Predicated region
        $region57: #{tpu_custom_call.1} parent=51 // pred_check
          %p489 = pneg %p89
        $region58: #{tpu_custom_call.1} parent=51 // pred_check_branch
          %491 = sbr.rel (%p489) target = $region60
        $region59: #{tpu_custom_call.1} parent=51 // pred_region
          %s492 = sand.u32 %s35, 1
          %s493 = scalar_lea.sflag [#allocation6], %s492
          %s494 = sand.u32 %s79, 1
          %s495 = smul.addr %s494, 8
          %s496 = scalar_lea.vmem [#allocation5], %s495
          %s497 = smul.u32 %s35, 16
          %s498 = ssub.s32 %s497, 1
          %p499 = scmp.gt.s32.totalorder %s498, 0
          %s500 = scalar_select %p499, %s498, 0
          %s502 = ssub.s32 128, 128
          %503 = vsyncadd %s493, %s502
          %s504 = smul.addr %s500, 128
          %s505 = scalar_lea.hbm %s1, %s504
          %s507 = sshll.u32 %s496, 4
          %s508 = int_to_ptr.vmem [resolvable:$true] %s507
          %510 = dma.hbm_to_vmem [thread:$0]  %s505, 128, %s508, %s493
        $region60: #{tpu_custom_call.1} parent=51 // pred_fallthru
          _
      $region52: #{tpu_custom_call.1} parent=5 // pred_fallthru
        _
      %p511 = scmp.le.s32.totalorder 1, %s35
      %p512 = scmp.lt.s32.totalorder %s35, 3
      %p513 = pnand %p511, %p512
      %p514 = pneg %p513
      // Predicated region
      $region61: #{tpu_custom_call.1} parent=5 // pred_check
        _
      $region62: #{tpu_custom_call.1} parent=5 // pred_check_branch
        %516 = sbr.rel (%p513) target = $region64
      $region63: #{tpu_custom_call.1} parent=5 // pred_region
        %s517 = ssub.s32 %s35, 1
        %s518 = sand.u32 %s48, 1
        %s519 = scalar_lea.sflag [#allocation3], %s518
        %s520 = sand.u32 %s48, 1
        %s521 = smul.addr %s520, 128
        %s522 = scalar_lea.vmem [#allocation2], %s521
        // Predicated region
        $region65: #{tpu_custom_call.1} parent=63 // pred_check
          %p523 = pneg %p61
        $region66: #{tpu_custom_call.1} parent=63 // pred_check_branch
          %525 = sbr.rel (%p523) target = $region68
        $region67: #{tpu_custom_call.1} parent=63 // pred_region
          %526 = dma.done %s519, 2048
        $region68: #{tpu_custom_call.1} parent=63 // pred_fallthru
          _
        %s527 = sand.u32 %s40, 1
        %s528 = scalar_lea.sflag [#allocation6], %s527
        %s529 = sand.u32 %s82, 1
        %s530 = smul.addr %s529, 8
        %s531 = scalar_lea.vmem [#allocation5], %s530
        // Predicated region
        $region69: #{tpu_custom_call.1} parent=63 // pred_check
          %p532 = pneg %p95
        $region70: #{tpu_custom_call.1} parent=63 // pred_check_branch
          %534 = sbr.rel (%p532) target = $region72
        $region71: #{tpu_custom_call.1} parent=63 // pred_region
          %535 = dma.done %s528, 128
        $region72: #{tpu_custom_call.1} parent=63 // pred_fallthru
          _
        // Predicated region
        $region73: #{tpu_custom_call.1} parent=63 // pred_check
          %p536 = pneg %p179
        $region74: #{tpu_custom_call.1} parent=63 // pred_check_branch
          %538 = sbr.rel (%p536) target = $region76
        $region75: #{tpu_custom_call.1} parent=63 // pred_region
          %539 = dma.done [#allocation6], 1024
        $region76: #{tpu_custom_call.1} parent=63 // pred_fallthru
          _
        // Predicated region
        $region77: #{tpu_custom_call.1} parent=63 // pred_check
          %p540 = pneg %p200
        $region78: #{tpu_custom_call.1} parent=63 // pred_check_branch
          %542 = sbr.rel (%p540) target = $region80
        $region79: #{tpu_custom_call.1} parent=63 // pred_region
          %543 = dma.done [#allocation9], 1024
        $region80: #{tpu_custom_call.1} parent=63 // pred_fallthru
          _
        // Predicated region
        $region81: #{tpu_custom_call.1} parent=63 // pred_check
          %p544 = pneg %p221
        $region82: #{tpu_custom_call.1} parent=63 // pred_check_branch
          %546 = sbr.rel (%p544) target = $region84
        $region83: #{tpu_custom_call.1} parent=63 // pred_region
          %547 = dma.done [#allocation9], 3072
        $region84: #{tpu_custom_call.1} parent=63 // pred_fallthru
          _
        // Predicated region
        $region85: #{tpu_custom_call.1} parent=63 // pred_check
          %p548 = pneg %p242
        $region86: #{tpu_custom_call.1} parent=63 // pred_check_branch
          %550 = sbr.rel (%p548) target = $region88
        $region87: #{tpu_custom_call.1} parent=63 // pred_region
          %551 = dma.done [#allocation12], 1024
        $region88: #{tpu_custom_call.1} parent=63 // pred_fallthru
          _
        // Predicated region
        $region89: #{tpu_custom_call.1} parent=63 // pred_check
          %p552 = pneg %p263
        $region90: #{tpu_custom_call.1} parent=63 // pred_check_branch
          %554 = sbr.rel (%p552) target = $region92
        $region91: #{tpu_custom_call.1} parent=63 // pred_region
          %555 = dma.done [#allocation12], 4096
        $region92: #{tpu_custom_call.1} parent=63 // pred_fallthru
          _
        // Predicated region
        $region93: #{tpu_custom_call.1} parent=63 // pred_check
          %p556 = pneg %p284
        $region94: #{tpu_custom_call.1} parent=63 // pred_check_branch
          %558 = sbr.rel (%p556) target = $region96
        $region95: #{tpu_custom_call.1} parent=63 // pred_region
          %559 = dma.done [#allocation15], 4096
        $region96: #{tpu_custom_call.1} parent=63 // pred_fallthru
          _
        %s560 = sand.u32 %s48, 1
        %s561 = scalar_lea.sflag [#allocation3], %s560
        %s562 = sand.u32 %s48, 1
        %s563 = smul.addr %s562, 128
        %s564 = scalar_lea.vmem [#allocation2], %s563
        %p565 = pneg %p61
        %p566 = pneg %p58
        %s567 = sand.u32 %s40, 1
        %s568 = scalar_lea.sflag [#allocation6], %s567
        %s569 = sand.u32 %s82, 1
        %s570 = smul.addr %s569, 8
        %s571 = scalar_lea.vmem [#allocation5], %s570
        %p572 = pneg %p95
        %p573 = pneg %p92
        %p574 = pneg %p116
        %p575 = pneg %p113
        %p576 = pneg %p137
        %p577 = pneg %p134
        %p578 = pneg %p158
        %p579 = pneg %p155
        %p580 = pneg %p179
        %p581 = pneg %p176
        %p582 = pneg %p200
        %p583 = pneg %p197
        %p584 = pneg %p221
        %p585 = pneg %p218
        %p586 = pneg %p242
        %p587 = pneg %p239
        %p588 = pneg %p263
        %p589 = pneg %p260
        %p590 = pneg %p284
        %p591 = pneg %p281
        %p592 = pneg %p310
        %p593 = pneg %p307
        %s594 = sand.u32 %s297, 1
        %s595 = scalar_lea.sflag [#allocation4], %s594
        %s596 = sand.u32 %s297, 1
        %s597 = smul.addr %s596, 128
        %s598 = scalar_lea.vmem [#allocation16], %s597
        %p599 = pneg %p336
        %p600 = pneg %p333
        %s601 = sand.u32 %s40, 1
        %s602 = scalar_lea.sflag [#allocation18], %s601
        %s603 = sand.u32 %s323, 1
        %s604 = smul.addr %s603, 128
        %s605 = scalar_lea.vmem [#allocation17], %s604
        %p606 = pneg %p362
        %p607 = pneg %p359
        %s608 = sand.u32 %s40, 1
        %s609 = scalar_lea.sflag [#allocation18], %s608
        %s610 = sand.u32 %s349, 1
        %s611 = smul.addr %s610, 128
        %s612 = scalar_lea.vmem [#allocation19], %s611
        %s613 = smul.u32 16, %s40
        %s614 = smul.u32 %s40, 16
        %s615 = ssub.s32 %s614, 1
        %p616 = scmp.gt.s32.totalorder %s615, 0
        %s617 = scalar_select %p616, %s615, 0
        %s618 = smul.u32 16, %s40
        %s619 = smul.u32 16, %s40
        %s620 = smul.u32 16, %s40
        %v622 = vld [vmem:[%s2] sm:$0x1]
        %v623 = vld [vmem:[%s3] sm:$0x1]
        %v624 = vld [vmem:[#allocation10] sm:$0xff]
        %v625 = vld [vmem:[#allocation10 + $0x8] sm:$0xf]
        %v626 = vld [vmem:[#allocation10 + $0xc] sm:$0xff]
        %v627 = vld [vmem:[#allocation10 + $0x14] sm:$0xf]
        %v628 = vld [vmem:[#allocation10 + $0x18] sm:$0xff]
        %v629 = vld [vmem:[#allocation10 + $0x20] sm:$0xf]
        %v630 = vld [vmem:[#allocation10 + $0x24] sm:$0xff]
        %v631 = vld [vmem:[#allocation10 + $0x2c] sm:$0xf]
        %v632 = vld [vmem:[#allocation10 + $0x30] sm:$0xff]
        %v633 = vld [vmem:[#allocation10 + $0x38] sm:$0xf]
        %v634 = vld [vmem:[#allocation10 + $0x3c] sm:$0xff]
        %v635 = vld [vmem:[#allocation10 + $0x44] sm:$0xf]
        %v636 = vld [vmem:[#allocation10 + $0x48] sm:$0xff]
        %v637 = vld [vmem:[#allocation10 + $0x50] sm:$0xf]
        %v638 = vld [vmem:[#allocation10 + $0x54] sm:$0xff]
        %v639 = vld [vmem:[#allocation10 + $0x5c] sm:$0xf]
        %v640 = vld [vmem:[#allocation10 + $0x60] sm:$0xff]
        %v641 = vld [vmem:[#allocation10 + $0x68] sm:$0xf]
        %v642 = vld [vmem:[#allocation10 + $0x6c] sm:$0xff]
        %v643 = vld [vmem:[#allocation10 + $0x74] sm:$0xf]
        %v644 = vld [vmem:[#allocation10 + $0x78] sm:$0xff]
        %v645 = vld [vmem:[#allocation10 + $0x80] sm:$0xf]
        %v646 = vld [vmem:[#allocation10 + $0x84] sm:$0xff]
        %v647 = vld [vmem:[#allocation10 + $0x8c] sm:$0xf]
        %v648 = vld [vmem:[#allocation10 + $0x90] sm:$0xff]
        %v649 = vld [vmem:[#allocation10 + $0x98] sm:$0xf]
        %v650 = vld [vmem:[#allocation10 + $0x9c] sm:$0xff]
        %v651 = vld [vmem:[#allocation10 + $0xa4] sm:$0xf]
        %v652 = vld [vmem:[#allocation10 + $0xa8] sm:$0xff]
        %v653 = vld [vmem:[#allocation10 + $0xb0] sm:$0xf]
        %v654 = vld [vmem:[#allocation10 + $0xb4] sm:$0xff]
        %v655 = vld [vmem:[#allocation10 + $0xbc] sm:$0xf]
        %v656 = vld [vmem:[%s522] sm:$0xff]
        %v657 = vld [vmem:[%s522 + $0x8] sm:$0xff]
        %v658 = vld [vmem:[%s522 + $0x10] sm:$0xff]
        %v659 = vld [vmem:[%s522 + $0x18] sm:$0xff]
        %v660 = vld [vmem:[%s522 + $0x20] sm:$0xff]
        %v661 = vld [vmem:[%s522 + $0x28] sm:$0xff]
        %v662 = vld [vmem:[%s522 + $0x30] sm:$0xff]
        %v663 = vld [vmem:[%s522 + $0x38] sm:$0xff]
        %v664 = vld [vmem:[%s522 + $0x40] sm:$0xff]
        %v665 = vld [vmem:[%s522 + $0x48] sm:$0xff]
        %v666 = vld [vmem:[%s522 + $0x50] sm:$0xff]
        %v667 = vld [vmem:[%s522 + $0x58] sm:$0xff]
        %v668 = vld [vmem:[%s522 + $0x60] sm:$0xff]
        %v669 = vld [vmem:[%s522 + $0x68] sm:$0xff]
        %v670 = vld [vmem:[%s522 + $0x70] sm:$0xff]
        %v671 = vld [vmem:[%s522 + $0x78] sm:$0xff]
        %v672 = vmul.f32 %v656, %v656
        %v673 = vmul.f32 %v657, %v657
        %v674 = vmul.f32 %v658, %v658
        %v675 = vmul.f32 %v659, %v659
        %v676 = vmul.f32 %v660, %v660
        %v677 = vmul.f32 %v661, %v661
        %v678 = vmul.f32 %v662, %v662
        %v679 = vmul.f32 %v663, %v663
        %v680 = vmul.f32 %v664, %v664
        %v681 = vmul.f32 %v665, %v665
        %v682 = vmul.f32 %v666, %v666
        %v683 = vmul.f32 %v667, %v667
        %v684 = vmul.f32 %v668, %v668
        %v685 = vmul.f32 %v669, %v669
        %v686 = vmul.f32 %v670, %v670
        %v687 = vmul.f32 %v671, %v671
        %688 = vadd.xlane.f32.xlu0 %v672
        %v689 = vpop.xlane.xlu0 %688
        %690 = vadd.xlane.f32.xlu0 %v673
        %v691 = vpop.xlane.xlu0 %690
        %692 = vadd.xlane.f32.xlu0 %v674
        %v693 = vpop.xlane.xlu0 %692
        %694 = vadd.xlane.f32.xlu0 %v675
        %v695 = vpop.xlane.xlu0 %694
        %696 = vadd.xlane.f32.xlu0 %v676
        %v697 = vpop.xlane.xlu0 %696
        %698 = vadd.xlane.f32.xlu0 %v677
        %v699 = vpop.xlane.xlu0 %698
        %700 = vadd.xlane.f32.xlu0 %v678
        %v701 = vpop.xlane.xlu0 %700
        %702 = vadd.xlane.f32.xlu0 %v679
        %v703 = vpop.xlane.xlu0 %702
        %704 = vadd.xlane.f32.xlu0 %v680
        %v705 = vpop.xlane.xlu0 %704
        %706 = vadd.xlane.f32.xlu0 %v681
        %v707 = vpop.xlane.xlu0 %706
        %708 = vadd.xlane.f32.xlu0 %v682
        %v709 = vpop.xlane.xlu0 %708
        %710 = vadd.xlane.f32.xlu0 %v683
        %v711 = vpop.xlane.xlu0 %710
        %712 = vadd.xlane.f32.xlu0 %v684
        %v713 = vpop.xlane.xlu0 %712
        %714 = vadd.xlane.f32.xlu0 %v685
        %v715 = vpop.xlane.xlu0 %714
        %716 = vadd.xlane.f32.xlu0 %v686
        %v717 = vpop.xlane.xlu0 %716
        %718 = vadd.xlane.f32.xlu0 %v687
        %v719 = vpop.xlane.xlu0 %718
        %v720 = vrcp.pop 128.0
        %v721 = vmul.f32 %v689, %v720
        %v722 = vmul.f32 %v691, %v720
        %v723 = vmul.f32 %v693, %v720
        %v724 = vmul.f32 %v695, %v720
        %v725 = vmul.f32 %v697, %v720
        %v726 = vmul.f32 %v699, %v720
        %v727 = vmul.f32 %v701, %v720
        %v728 = vmul.f32 %v703, %v720
        %v729 = vmul.f32 %v705, %v720
        %v730 = vmul.f32 %v707, %v720
        %v731 = vmul.f32 %v709, %v720
        %v732 = vmul.f32 %v711, %v720
        %v733 = vmul.f32 %v713, %v720
        %v734 = vmul.f32 %v715, %v720
        %v735 = vmul.f32 %v717, %v720
        %v736 = vmul.f32 %v719, %v720
        %v737 = vadd.f32 %v721, 1e-06
        %v738 = vadd.f32 %v722, 1e-06
        %v739 = vadd.f32 %v723, 1e-06
        %v740 = vadd.f32 %v724, 1e-06
        %v741 = vadd.f32 %v725, 1e-06
        %v742 = vadd.f32 %v726, 1e-06
        %v743 = vadd.f32 %v727, 1e-06
        %v744 = vadd.f32 %v728, 1e-06
        %v745 = vadd.f32 %v729, 1e-06
        %v746 = vadd.f32 %v730, 1e-06
        %v747 = vadd.f32 %v731, 1e-06
        %v748 = vadd.f32 %v732, 1e-06
        %v749 = vadd.f32 %v733, 1e-06
        %v750 = vadd.f32 %v734, 1e-06
        %v751 = vadd.f32 %v735, 1e-06
        %v752 = vadd.f32 %v736, 1e-06
        %v753 = vrsqrt.pop %v737
        %v754 = vrsqrt.pop %v738
        %v755 = vrsqrt.pop %v739
        %v756 = vrsqrt.pop %v740
        %v757 = vrsqrt.pop %v741
        %v758 = vrsqrt.pop %v742
        %v759 = vrsqrt.pop %v743
        %v760 = vrsqrt.pop %v744
        %v761 = vrsqrt.pop %v745
        %v762 = vrsqrt.pop %v746
        %v763 = vrsqrt.pop %v747
        %v764 = vrsqrt.pop %v748
        %v765 = vrsqrt.pop %v749
        %v766 = vrsqrt.pop %v750
        %v767 = vrsqrt.pop %v751
        %v768 = vrsqrt.pop %v752
        %v769 = vmul.f32 %v656, %v753
        %v770 = vmul.f32 %v657, %v754
        %v771 = vmul.f32 %v658, %v755
        %v772 = vmul.f32 %v659, %v756
        %v773 = vmul.f32 %v660, %v757
        %v774 = vmul.f32 %v661, %v758
        %v775 = vmul.f32 %v662, %v759
        %v776 = vmul.f32 %v663, %v760
        %v777 = vmul.f32 %v664, %v761
        %v778 = vmul.f32 %v665, %v762
        %v779 = vmul.f32 %v666, %v763
        %v780 = vmul.f32 %v667, %v764
        %v781 = vmul.f32 %v668, %v765
        %v782 = vmul.f32 %v669, %v766
        %v783 = vmul.f32 %v670, %v767
        %v784 = vmul.f32 %v671, %v768
        %v786 = vlaneseq
        %v787 = vshrl.u32 %v786, 7
        %v788 = vsub.s32 0, %v787
        %v789 = vrot.slane %v622, %v788
        %v791 = vmul.f32 %v769, %v789
        %v792 = vmul.f32 %v770, %v789
        %v793 = vmul.f32 %v771, %v789
        %v794 = vmul.f32 %v772, %v789
        %v795 = vmul.f32 %v773, %v789
        %v796 = vmul.f32 %v774, %v789
        %v797 = vmul.f32 %v775, %v789
        %v798 = vmul.f32 %v776, %v789
        %v799 = vmul.f32 %v777, %v789
        %v800 = vmul.f32 %v778, %v789
        %v801 = vmul.f32 %v779, %v789
        %v802 = vmul.f32 %v780, %v789
        %v803 = vmul.f32 %v781, %v789
        %v804 = vmul.f32 %v782, %v789
        %v805 = vmul.f32 %v783, %v789
        %v806 = vmul.f32 %v784, %v789
        %v807 = vpack.c.bf16 %v792, %v791
        %v808 = vpack.c.bf16 %v794, %v793
        %v809 = vpack.c.bf16 %v796, %v795
        %v810 = vpack.c.bf16 %v798, %v797
        %v811 = vpack.c.bf16 %v800, %v799
        %v812 = vpack.c.bf16 %v802, %v801
        %v813 = vpack.c.bf16 %v804, %v803
        %v814 = vpack.c.bf16 %v806, %v805
        %v815 = vld [vmem:[#allocation7] sm:$0xf]
        %v816 = vld [vmem:[#allocation7 + $0x4] sm:$0xf]
        %v817 = vld [vmem:[#allocation7 + $0x8] sm:$0xf]
        %v818 = vld [vmem:[#allocation7 + $0xc] sm:$0xf]
        %v819 = vld [vmem:[#allocation7 + $0x10] sm:$0xf]
        %v820 = vld [vmem:[#allocation7 + $0x14] sm:$0xf]
        %v821 = vld [vmem:[#allocation7 + $0x18] sm:$0xf]
        %v822 = vld [vmem:[#allocation7 + $0x1c] sm:$0xf]
        %v823 = vld [vmem:[#allocation7 + $0x20] sm:$0xf]
        %v824 = vld [vmem:[#allocation7 + $0x24] sm:$0xf]
        %v825 = vld [vmem:[#allocation7 + $0x28] sm:$0xf]
        %v826 = vld [vmem:[#allocation7 + $0x2c] sm:$0xf]
        %v827 = vld [vmem:[#allocation7 + $0x30] sm:$0xf]
        %v828 = vld [vmem:[#allocation7 + $0x34] sm:$0xf]
        %v829 = vld [vmem:[#allocation7 + $0x38] sm:$0xf]
        %v830 = vld [vmem:[#allocation7 + $0x3c] sm:$0xf]
        %v847 = vunpack.c.l.b16 %v815
        %v848 = vunpack.c.l.b16 %v816
        %v849 = vunpack.c.l.b16 %v817
        %v850 = vunpack.c.l.b16 %v818
        %v851 = vunpack.c.l.b16 %v819
        %v852 = vunpack.c.l.b16 %v820
        %v853 = vunpack.c.l.b16 %v821
        %v854 = vunpack.c.l.b16 %v822
        %v855 = vunpack.c.l.b16 %v823
        %v856 = vunpack.c.l.b16 %v824
        %v857 = vunpack.c.l.b16 %v825
        %v858 = vunpack.c.l.b16 %v826
        %v859 = vunpack.c.l.b16 %v827
        %v860 = vunpack.c.l.b16 %v828
        %v861 = vunpack.c.l.b16 %v829
        %v862 = vunpack.c.l.b16 %v830
        %v863 = vpack.c.b16 %v848, %v847
        %v864 = vpack.c.b16 %v850, %v849
        %v865 = vpack.c.b16 %v852, %v851
        %v866 = vpack.c.b16 %v854, %v853
        %v867 = vpack.c.b16 %v856, %v855
        %v868 = vpack.c.b16 %v858, %v857
        %v869 = vpack.c.b16 %v860, %v859
        %v870 = vpack.c.b16 %v862, %v861
        %879 = vmatprep.subr.bf16.mxu0 0
        %880 = vmatpush1.bf16.msra.mxu0 %v863
        %881 = vmatprep.subr.bf16.mxu0 0
        %882 = vmatpush1.bf16.msra.mxu0 %v864
        %883 = vmatprep.subr.bf16.mxu0 0
        %884 = vmatpush1.bf16.msra.mxu0 %v865
        %885 = vmatprep.subr.bf16.mxu0 0
        %886 = vmatpush1.bf16.msra.mxu0 %v866
        %887 = vmatprep.subr.bf16.mxu0 0
        %888 = vmatpush1.bf16.msra.mxu0 %v867
        %889 = vmatprep.subr.bf16.mxu0 0
        %890 = vmatpush1.bf16.msra.mxu0 %v868
        %891 = vmatprep.subr.bf16.mxu0 0
        %892 = vmatpush1.bf16.msra.mxu0 %v869
        %893 = vmatprep.subr.bf16.mxu0 0
        %894 = vmatpush1.bf16.msra.mxu0 %v870
        %895 = vmatprep.subr.bf16.mxu0 0
        %896 = vmatpush1.bf16.msra.mxu0 0
        %897 = vmatprep.subr.bf16.mxu0 0
        %898 = vmatpush1.bf16.msra.mxu0 0
        %899 = vmatprep.subr.bf16.mxu0 0
        %900 = vmatpush1.bf16.msra.mxu0 0
        %901 = vmatprep.subr.bf16.mxu0 0
        %902 = vmatpush1.bf16.msra.mxu0 0
        %903 = vmatprep.subr.bf16.mxu0 0
        %904 = vmatpush1.bf16.msra.mxu0 0
        %905 = vmatprep.subr.bf16.mxu0 0
        %906 = vmatpush1.bf16.msra.mxu0 0
        %907 = vmatprep.subr.bf16.mxu0 0
        %908 = vmatpush1.bf16.msra.mxu0 0
        %909 = vmatprep.subr.bf16.mxu0 0
        %910 = vmatpush1.bf16.msra.mxu0 0
        %911 = vmatprep.mubr.bf16.mxu0 0
        %912 = vmatmul.mubr.bf16.gmra.mrb[0].mxu0 %v807
        %v913 = vpop.f32.mrb[0].mxu0
        %v914 = vadd.f32 0.0, %v913
        %v915 = vpop.f32.mrb[0].mxu0
        %v916 = vpop.f32.mrb[0].mxu0
        %v917 = vadd.f32 0.0, %v916
        %v918 = vpop.f32.mrb[0].mxu0
        %919 = vmatprep.mubr.bf16.mxu0 0
        %920 = vmatmul.mubr.bf16.gmra.mrb[0].mxu0 %v808
        %v921 = vpop.f32.mrb[0].mxu0
        %v922 = vadd.f32 0.0, %v921
        %v923 = vpop.f32.mrb[0].mxu0
        %v924 = vpop.f32.mrb[0].mxu0
        %v925 = vadd.f32 0.0, %v924
        %v926 = vpop.f32.mrb[0].mxu0
        %927 = vmatprep.mubr.bf16.mxu0 0
        %928 = vmatmul.mubr.bf16.gmra.mrb[0].mxu0 %v809
        %v929 = vpop.f32.mrb[0].mxu0
        %v930 = vadd.f32 0.0, %v929
        %v931 = vpop.f32.mrb[0].mxu0
        %v932 = vpop.f32.mrb[0].mxu0
        %v933 = vadd.f32 0.0, %v932
        %v934 = vpop.f32.mrb[0].mxu0
        %935 = vmatprep.mubr.bf16.mxu0 0
        %936 = vmatmul.mubr.bf16.gmra.mrb[0].mxu0 %v810
        %v937 = vpop.f32.mrb[0].mxu0
        %v938 = vadd.f32 0.0, %v937
        %v939 = vpop.f32.mrb[0].mxu0
        %v940 = vpop.f32.mrb[0].mxu0
        %v941 = vadd.f32 0.0, %v940
        %v942 = vpop.f32.mrb[0].mxu0
        %943 = vmatprep.mubr.bf16.mxu0 0
        %944 = vmatmul.mubr.bf16.gmra.mrb[0].mxu0 %v811
        %v945 = vpop.f32.mrb[0].mxu0
        %v946 = vadd.f32 0.0, %v945
        %v947 = vpop.f32.mrb[0].mxu0
        %v948 = vpop.f32.mrb[0].mxu0
        %v949 = vadd.f32 0.0, %v948
        %v950 = vpop.f32.mrb[0].mxu0
        %951 = vmatprep.mubr.bf16.mxu0 0
        %952 = vmatmul.mubr.bf16.gmra.mrb[0].mxu0 %v812
        %v953 = vpop.f32.mrb[0].mxu0
        %v954 = vadd.f32 0.0, %v953
        %v955 = vpop.f32.mrb[0].mxu0
        %v956 = vpop.f32.mrb[0].mxu0
        %v957 = vadd.f32 0.0, %v956
        %v958 = vpop.f32.mrb[0].mxu0
        %959 = vmatprep.mubr.bf16.mxu0 0
        %960 = vmatmul.mubr.bf16.gmra.mrb[0].mxu0 %v813
        %v961 = vpop.f32.mrb[0].mxu0
        %v962 = vadd.f32 0.0, %v961
        %v963 = vpop.f32.mrb[0].mxu0
        %v964 = vpop.f32.mrb[0].mxu0
        %v965 = vadd.f32 0.0, %v964
        %v966 = vpop.f32.mrb[0].mxu0
        %967 = vmatprep.mubr.bf16.mxu0 0
        %968 = vmatmul.mubr.bf16.gmra.mrb[0].mxu0 %v814
        %v969 = vpop.f32.mrb[0].mxu0
        %v970 = vadd.f32 0.0, %v969
        %v971 = vpop.f32.mrb[0].mxu0
        %v972 = vpop.f32.mrb[0].mxu0
        %v973 = vadd.f32 0.0, %v972
        %v974 = vpop.f32.mrb[0].mxu0
        %975 = vdwg.mxu0
        %v976 = vxor.u32 %v914, 2147483648
        %v977 = vxor.u32 %v917, 2147483648
        %v978 = vxor.u32 %v922, 2147483648
        %v979 = vxor.u32 %v925, 2147483648
        %v980 = vxor.u32 %v930, 2147483648
        %v981 = vxor.u32 %v933, 2147483648
        %v982 = vxor.u32 %v938, 2147483648
        %v983 = vxor.u32 %v941, 2147483648
        %v984 = vxor.u32 %v946, 2147483648
        %v985 = vxor.u32 %v949, 2147483648
        %v986 = vxor.u32 %v954, 2147483648
        %v987 = vxor.u32 %v957, 2147483648
        %v988 = vxor.u32 %v962, 2147483648
        %v989 = vxor.u32 %v965, 2147483648
        %v990 = vxor.u32 %v970, 2147483648
        %v991 = vxor.u32 %v973, 2147483648
        %v992 = vmul.f32 %v976, 1.442695
        %v993 = vpow.pop %v992
        %v994 = vmul.f32 %v977, 1.442695
        %v995 = vpow.pop %v994
        %v996 = vmul.f32 %v978, 1.442695
        %v997 = vpow.pop %v996
        %v998 = vmul.f32 %v979, 1.442695
        %v999 = vpow.pop %v998
        %v1000 = vmul.f32 %v980, 1.442695
        %v1001 = vpow.pop %v1000
        %v1002 = vmul.f32 %v981, 1.442695
        %v1003 = vpow.pop %v1002
        %v1004 = vmul.f32 %v982, 1.442695
        %v1005 = vpow.pop %v1004
        %v1006 = vmul.f32 %v983, 1.442695
        %v1007 = vpow.pop %v1006
        %v1008 = vmul.f32 %v984, 1.442695
        %v1009 = vpow.pop %v1008
        %v1010 = vmul.f32 %v985, 1.442695
        %v1011 = vpow.pop %v1010
        %v1012 = vmul.f32 %v986, 1.442695
        %v1013 = vpow.pop %v1012
        %v1014 = vmul.f32 %v987, 1.442695
        %v1015 = vpow.pop %v1014
        %v1016 = vmul.f32 %v988, 1.442695
        %v1017 = vpow.pop %v1016
        %v1018 = vmul.f32 %v989, 1.442695
        %v1019 = vpow.pop %v1018
        %v1020 = vmul.f32 %v990, 1.442695
        %v1021 = vpow.pop %v1020
        %v1022 = vmul.f32 %v991, 1.442695
        %v1023 = vpow.pop %v1022
        %v1024 = vadd.f32 %v993, 1.0
        %v1025 = vadd.f32 %v995, 1.0
        %v1026 = vadd.f32 %v997, 1.0
        %v1027 = vadd.f32 %v999, 1.0
        %v1028 = vadd.f32 %v1001, 1.0
        %v1029 = vadd.f32 %v1003, 1.0
        %v1030 = vadd.f32 %v1005, 1.0
        %v1031 = vadd.f32 %v1007, 1.0
        %v1032 = vadd.f32 %v1009, 1.0
        %v1033 = vadd.f32 %v1011, 1.0
        %v1034 = vadd.f32 %v1013, 1.0
        %v1035 = vadd.f32 %v1015, 1.0
        %v1036 = vadd.f32 %v1017, 1.0
        %v1037 = vadd.f32 %v1019, 1.0
        %v1038 = vadd.f32 %v1021, 1.0
        %v1039 = vadd.f32 %v1023, 1.0
        %v1040 = vrcp.pop %v1024
        %v1041 = vmul.f32 1.0, %v1040
        %v1042 = vrcp.pop %v1025
        %v1043 = vmul.f32 1.0, %v1042
        %v1044 = vrcp.pop %v1026
        %v1045 = vmul.f32 1.0, %v1044
        %v1046 = vrcp.pop %v1027
        %v1047 = vmul.f32 1.0, %v1046
        %v1048 = vrcp.pop %v1028
        %v1049 = vmul.f32 1.0, %v1048
        %v1050 = vrcp.pop %v1029
        %v1051 = vmul.f32 1.0, %v1050
        %v1052 = vrcp.pop %v1030
        %v1053 = vmul.f32 1.0, %v1052
        %v1054 = vrcp.pop %v1031
        %v1055 = vmul.f32 1.0, %v1054
        %v1056 = vrcp.pop %v1032
        %v1057 = vmul.f32 1.0, %v1056
        %v1058 = vrcp.pop %v1033
        %v1059 = vmul.f32 1.0, %v1058
        %v1060 = vrcp.pop %v1034
        %v1061 = vmul.f32 1.0, %v1060
        %v1062 = vrcp.pop %v1035
        %v1063 = vmul.f32 1.0, %v1062
        %v1064 = vrcp.pop %v1036
        %v1065 = vmul.f32 1.0, %v1064
        %v1066 = vrcp.pop %v1037
        %v1067 = vmul.f32 1.0, %v1066
        %v1068 = vrcp.pop %v1038
        %v1069 = vmul.f32 1.0, %v1068
        %v1070 = vrcp.pop %v1039
        %v1071 = vmul.f32 1.0, %v1070
        %v1072 = vmul.f32 %v914, %v1041
        %v1073 = vmul.f32 %v917, %v1043
        %v1074 = vmul.f32 %v922, %v1045
        %v1075 = vmul.f32 %v925, %v1047
        %v1076 = vmul.f32 %v930, %v1049
        %v1077 = vmul.f32 %v933, %v1051
        %v1078 = vmul.f32 %v938, %v1053
        %v1079 = vmul.f32 %v941, %v1055
        %v1080 = vmul.f32 %v946, %v1057
        %v1081 = vmul.f32 %v949, %v1059
        %v1082 = vmul.f32 %v954, %v1061
        %v1083 = vmul.f32 %v957, %v1063
        %v1084 = vmul.f32 %v962, %v1065
        %v1085 = vmul.f32 %v965, %v1067
        %v1086 = vmul.f32 %v970, %v1069
        %v1087 = vmul.f32 %v973, %v1071
        %v1088 = vpack.c.bf16 %v1073, %v1072
        %v1089 = vpack.c.bf16 %v1075, %v1074
        %v1090 = vpack.c.bf16 %v1077, %v1076
        %v1091 = vpack.c.bf16 %v1079, %v1078
        %v1092 = vpack.c.bf16 %v1081, %v1080
        %v1093 = vpack.c.bf16 %v1083, %v1082
        %v1094 = vpack.c.bf16 %v1085, %v1084
        %v1095 = vpack.c.bf16 %v1087, %v1086
        %v1096 = vld [vmem:[#allocation8] sm:$0xf]
        %v1097 = vld [vmem:[#allocation8 + $0x4] sm:$0xf]
        %v1098 = vld [vmem:[#allocation8 + $0x8] sm:$0xf]
        %v1099 = vld [vmem:[#allocation8 + $0xc] sm:$0xf]
        %v1100 = vld [vmem:[#allocation8 + $0x10] sm:$0xf]
        %v1101 = vld [vmem:[#allocation8 + $0x14] sm:$0xf]
        %v1102 = vld [vmem:[#allocation8 + $0x18] sm:$0xf]
        %v1103 = vld [vmem:[#allocation8 + $0x1c] sm:$0xf]
        %v1104 = vld [vmem:[#allocation8 + $0x20] sm:$0xf]
        %v1105 = vld [vmem:[#allocation8 + $0x24] sm:$0xf]
        %v1106 = vld [vmem:[#allocation8 + $0x28] sm:$0xf]
        %v1107 = vld [vmem:[#allocation8 + $0x2c] sm:$0xf]
        %v1108 = vld [vmem:[#allocation8 + $0x30] sm:$0xf]
        %v1109 = vld [vmem:[#allocation8 + $0x34] sm:$0xf]
        %v1110 = vld [vmem:[#allocation8 + $0x38] sm:$0xf]
        %v1111 = vld [vmem:[#allocation8 + $0x3c] sm:$0xf]
        %v1128 = vunpack.c.l.b16 %v1096
        %v1129 = vunpack.c.l.b16 %v1097
        %v1130 = vunpack.c.l.b16 %v1098
        %v1131 = vunpack.c.l.b16 %v1099
        %v1132 = vunpack.c.l.b16 %v1100
        %v1133 = vunpack.c.l.b16 %v1101
        %v1134 = vunpack.c.l.b16 %v1102
        %v1135 = vunpack.c.l.b16 %v1103
        %v1136 = vunpack.c.l.b16 %v1104
        %v1137 = vunpack.c.l.b16 %v1105
        %v1138 = vunpack.c.l.b16 %v1106
        %v1139 = vunpack.c.l.b16 %v1107
        %v1140 = vunpack.c.l.b16 %v1108
        %v1141 = vunpack.c.l.b16 %v1109
        %v1142 = vunpack.c.l.b16 %v1110
        %v1143 = vunpack.c.l.b16 %v1111
        %v1144 = vpack.c.b16 %v1129, %v1128
        %v1145 = vpack.c.b16 %v1131, %v1130
        %v1146 = vpack.c.b16 %v1133, %v1132
        %v1147 = vpack.c.b16 %v1135, %v1134
        %v1148 = vpack.c.b16 %v1137, %v1136
        %v1149 = vpack.c.b16 %v1139, %v1138
        %v1150 = vpack.c.b16 %v1141, %v1140
        %v1151 = vpack.c.b16 %v1143, %v1142
        %1160 = vmatprep.subr.bf16.mxu0 0
        %1161 = vmatpush1.bf16.msra.mxu0 %v1144
        %1162 = vmatprep.subr.bf16.mxu0 0
        %1163 = vmatpush1.bf16.msra.mxu0 %v1145
        %1164 = vmatprep.subr.bf16.mxu0 0
        %1165 = vmatpush1.bf16.msra.mxu0 %v1146
        %1166 = vmatprep.subr.bf16.mxu0 0
        %1167 = vmatpush1.bf16.msra.mxu0 %v1147
        %1168 = vmatprep.subr.bf16.mxu0 0
        %1169 = vmatpush1.bf16.msra.mxu0 %v1148
        %1170 = vmatprep.subr.bf16.mxu0 0
        %1171 = vmatpush1.bf16.msra.mxu0 %v1149
        %1172 = vmatprep.subr.bf16.mxu0 0
        %1173 = vmatpush1.bf16.msra.mxu0 %v1150
        %1174 = vmatprep.subr.bf16.mxu0 0
        %1175 = vmatpush1.bf16.msra.mxu0 %v1151
        %1176 = vmatprep.subr.bf16.mxu0 0
        %1177 = vmatpush1.bf16.msra.mxu0 0
        %1178 = vmatprep.subr.bf16.mxu0 0
        %1179 = vmatpush1.bf16.msra.mxu0 0
        %1180 = vmatprep.subr.bf16.mxu0 0
        %1181 = vmatpush1.bf16.msra.mxu0 0
        %1182 = vmatprep.subr.bf16.mxu0 0
        %1183 = vmatpush1.bf16.msra.mxu0 0
        %1184 = vmatprep.subr.bf16.mxu0 0
        %1185 = vmatpush1.bf16.msra.mxu0 0
        %1186 = vmatprep.subr.bf16.mxu0 0
        %1187 = vmatpush1.bf16.msra.mxu0 0
        %1188 = vmatprep.subr.bf16.mxu0 0
        %1189 = vmatpush1.bf16.msra.mxu0 0
        %1190 = vmatprep.subr.bf16.mxu0 0
        %1191 = vmatpush1.bf16.msra.mxu0 0
        %1192 = vmatprep.mubr.bf16.mxu0 0
        %1193 = vmatmul.mubr.bf16.gmra.mrb[0].mxu0 %v1088
        %v1194 = vpop.f32.mrb[0].mxu0
        %v1195 = vadd.f32 0.0, %v1194
        %v1196 = vpop.f32.mrb[0].mxu0
        %v1197 = vpop.f32.mrb[0].mxu0
        %v1198 = vadd.f32 0.0, %v1197
        %v1199 = vpop.f32.mrb[0].mxu0
        %1200 = vmatprep.mubr.bf16.mxu0 0
        %1201 = vmatmul.mubr.bf16.gmra.mrb[0].mxu0 %v1089
        %v1202 = vpop.f32.mrb[0].mxu0
        %v1203 = vadd.f32 0.0, %v1202
        %v1204 = vpop.f32.mrb[0].mxu0
        %v1205 = vpop.f32.mrb[0].mxu0
        %v1206 = vadd.f32 0.0, %v1205
        %v1207 = vpop.f32.mrb[0].mxu0
        %1208 = vmatprep.mubr.bf16.mxu0 0
        %1209 = vmatmul.mubr.bf16.gmra.mrb[0].mxu0 %v1090
        %v1210 = vpop.f32.mrb[0].mxu0
        %v1211 = vadd.f32 0.0, %v1210
        %v1212 = vpop.f32.mrb[0].mxu0
        %v1213 = vpop.f32.mrb[0].mxu0
        %v1214 = vadd.f32 0.0, %v1213
        %v1215 = vpop.f32.mrb[0].mxu0
        %1216 = vmatprep.mubr.bf16.mxu0 0
        %1217 = vmatmul.mubr.bf16.gmra.mrb[0].mxu0 %v1091
        %v1218 = vpop.f32.mrb[0].mxu0
        %v1219 = vadd.f32 0.0, %v1218
        %v1220 = vpop.f32.mrb[0].mxu0
        %v1221 = vpop.f32.mrb[0].mxu0
        %v1222 = vadd.f32 0.0, %v1221
        %v1223 = vpop.f32.mrb[0].mxu0
        %1224 = vmatprep.mubr.bf16.mxu0 0
        %1225 = vmatmul.mubr.bf16.gmra.mrb[0].mxu0 %v1092
        %v1226 = vpop.f32.mrb[0].mxu0
        %v1227 = vadd.f32 0.0, %v1226
        %v1228 = vpop.f32.mrb[0].mxu0
        %v1229 = vpop.f32.mrb[0].mxu0
        %v1230 = vadd.f32 0.0, %v1229
        %v1231 = vpop.f32.mrb[0].mxu0
        %1232 = vmatprep.mubr.bf16.mxu0 0
        %1233 = vmatmul.mubr.bf16.gmra.mrb[0].mxu0 %v1093
        %v1234 = vpop.f32.mrb[0].mxu0
        %v1235 = vadd.f32 0.0, %v1234
        %v1236 = vpop.f32.mrb[0].mxu0
        %v1237 = vpop.f32.mrb[0].mxu0
        %v1238 = vadd.f32 0.0, %v1237
        %v1239 = vpop.f32.mrb[0].mxu0
        %1240 = vmatprep.mubr.bf16.mxu0 0
        %1241 = vmatmul.mubr.bf16.gmra.mrb[0].mxu0 %v1094
        %v1242 = vpop.f32.mrb[0].mxu0
        %v1243 = vadd.f32 0.0, %v1242
        %v1244 = vpop.f32.mrb[0].mxu0
        %v1245 = vpop.f32.mrb[0].mxu0
        %v1246 = vadd.f32 0.0, %v1245
        %v1247 = vpop.f32.mrb[0].mxu0
        %1248 = vmatprep.mubr.bf16.mxu0 0
        %1249 = vmatmul.mubr.bf16.gmra.mrb[0].mxu0 %v1095
        %v1250 = vpop.f32.mrb[0].mxu0
        %v1251 = vadd.f32 0.0, %v1250
        %v1252 = vpop.f32.mrb[0].mxu0
        %v1253 = vpop.f32.mrb[0].mxu0
        %v1254 = vadd.f32 0.0, %v1253
        %v1255 = vpop.f32.mrb[0].mxu0
        %1256 = vdwg.mxu0
        %v1257 = vadd.f32 %v656, %v1195
        %v1258 = vadd.f32 %v657, %v1198
        %v1259 = vadd.f32 %v658, %v1203
        %v1260 = vadd.f32 %v659, %v1206
        %v1261 = vadd.f32 %v660, %v1211
        %v1262 = vadd.f32 %v661, %v1214
        %v1263 = vadd.f32 %v662, %v1219
        %v1264 = vadd.f32 %v663, %v1222
        %v1265 = vadd.f32 %v664, %v1227
        %v1266 = vadd.f32 %v665, %v1230
        %v1267 = vadd.f32 %v666, %v1235
        %v1268 = vadd.f32 %v667, %v1238
        %v1269 = vadd.f32 %v668, %v1243
        %v1270 = vadd.f32 %v669, %v1246
        %v1271 = vadd.f32 %v670, %v1251
        %v1272 = vadd.f32 %v671, %v1254
        %v1273 = vmul.f32 %v1257, %v1257
        %v1274 = vmul.f32 %v1258, %v1258
        %v1275 = vmul.f32 %v1259, %v1259
        %v1276 = vmul.f32 %v1260, %v1260
        %v1277 = vmul.f32 %v1261, %v1261
        %v1278 = vmul.f32 %v1262, %v1262
        %v1279 = vmul.f32 %v1263, %v1263
        %v1280 = vmul.f32 %v1264, %v1264
        %v1281 = vmul.f32 %v1265, %v1265
        %v1282 = vmul.f32 %v1266, %v1266
        %v1283 = vmul.f32 %v1267, %v1267
        %v1284 = vmul.f32 %v1268, %v1268
        %v1285 = vmul.f32 %v1269, %v1269
        %v1286 = vmul.f32 %v1270, %v1270
        %v1287 = vmul.f32 %v1271, %v1271
        %v1288 = vmul.f32 %v1272, %v1272
        %1289 = vadd.xlane.f32.xlu0 %v1273
        %v1290 = vpop.xlane.xlu0 %1289
        %1291 = vadd.xlane.f32.xlu0 %v1274
        %v1292 = vpop.xlane.xlu0 %1291
        %1293 = vadd.xlane.f32.xlu0 %v1275
        %v1294 = vpop.xlane.xlu0 %1293
        %1295 = vadd.xlane.f32.xlu0 %v1276
        %v1296 = vpop.xlane.xlu0 %1295
        %1297 = vadd.xlane.f32.xlu0 %v1277
        %v1298 = vpop.xlane.xlu0 %1297
        %1299 = vadd.xlane.f32.xlu0 %v1278
        %v1300 = vpop.xlane.xlu0 %1299
        %1301 = vadd.xlane.f32.xlu0 %v1279
        %v1302 = vpop.xlane.xlu0 %1301
        %1303 = vadd.xlane.f32.xlu0 %v1280
        %v1304 = vpop.xlane.xlu0 %1303
        %1305 = vadd.xlane.f32.xlu0 %v1281
        %v1306 = vpop.xlane.xlu0 %1305
        %1307 = vadd.xlane.f32.xlu0 %v1282
        %v1308 = vpop.xlane.xlu0 %1307
        %1309 = vadd.xlane.f32.xlu0 %v1283
        %v1310 = vpop.xlane.xlu0 %1309
        %1311 = vadd.xlane.f32.xlu0 %v1284
        %v1312 = vpop.xlane.xlu0 %1311
        %1313 = vadd.xlane.f32.xlu0 %v1285
        %v1314 = vpop.xlane.xlu0 %1313
        %1315 = vadd.xlane.f32.xlu0 %v1286
        %v1316 = vpop.xlane.xlu0 %1315
        %1317 = vadd.xlane.f32.xlu0 %v1287
        %v1318 = vpop.xlane.xlu0 %1317
        %1319 = vadd.xlane.f32.xlu0 %v1288
        %v1320 = vpop.xlane.xlu0 %1319
        %v1321 = vmul.f32 %v1290, %v720
        %v1322 = vmul.f32 %v1292, %v720
        %v1323 = vmul.f32 %v1294, %v720
        %v1324 = vmul.f32 %v1296, %v720
        %v1325 = vmul.f32 %v1298, %v720
        %v1326 = vmul.f32 %v1300, %v720
        %v1327 = vmul.f32 %v1302, %v720
        %v1328 = vmul.f32 %v1304, %v720
        %v1329 = vmul.f32 %v1306, %v720
        %v1330 = vmul.f32 %v1308, %v720
        %v1331 = vmul.f32 %v1310, %v720
        %v1332 = vmul.f32 %v1312, %v720
        %v1333 = vmul.f32 %v1314, %v720
        %v1334 = vmul.f32 %v1316, %v720
        %v1335 = vmul.f32 %v1318, %v720
        %v1336 = vmul.f32 %v1320, %v720
        %v1337 = vadd.f32 %v1321, 1e-06
        %v1338 = vadd.f32 %v1322, 1e-06
        %v1339 = vadd.f32 %v1323, 1e-06
        %v1340 = vadd.f32 %v1324, 1e-06
        %v1341 = vadd.f32 %v1325, 1e-06
        %v1342 = vadd.f32 %v1326, 1e-06
        %v1343 = vadd.f32 %v1327, 1e-06
        %v1344 = vadd.f32 %v1328, 1e-06
        %v1345 = vadd.f32 %v1329, 1e-06
        %v1346 = vadd.f32 %v1330, 1e-06
        %v1347 = vadd.f32 %v1331, 1e-06
        %v1348 = vadd.f32 %v1332, 1e-06
        %v1349 = vadd.f32 %v1333, 1e-06
        %v1350 = vadd.f32 %v1334, 1e-06
        %v1351 = vadd.f32 %v1335, 1e-06
        %v1352 = vadd.f32 %v1336, 1e-06
        %v1353 = vrsqrt.pop %v1337
        %v1354 = vrsqrt.pop %v1338
        %v1355 = vrsqrt.pop %v1339
        %v1356 = vrsqrt.pop %v1340
        %v1357 = vrsqrt.pop %v1341
        %v1358 = vrsqrt.pop %v1342
        %v1359 = vrsqrt.pop %v1343
        %v1360 = vrsqrt.pop %v1344
        %v1361 = vrsqrt.pop %v1345
        %v1362 = vrsqrt.pop %v1346
        %v1363 = vrsqrt.pop %v1347
        %v1364 = vrsqrt.pop %v1348
        %v1365 = vrsqrt.pop %v1349
        %v1366 = vrsqrt.pop %v1350
        %v1367 = vrsqrt.pop %v1351
        %v1368 = vrsqrt.pop %v1352
        %v1369 = vmul.f32 %v1257, %v1353
        %v1370 = vmul.f32 %v1258, %v1354
        %v1371 = vmul.f32 %v1259, %v1355
        %v1372 = vmul.f32 %v1260, %v1356
        %v1373 = vmul.f32 %v1261, %v1357
        %v1374 = vmul.f32 %v1262, %v1358
        %v1375 = vmul.f32 %v1263, %v1359
        %v1376 = vmul.f32 %v1264, %v1360
        %v1377 = vmul.f32 %v1265, %v1361
        %v1378 = vmul.f32 %v1266, %v1362
        %v1379 = vmul.f32 %v1267, %v1363
        %v1380 = vmul.f32 %v1268, %v1364
        %v1381 = vmul.f32 %v1269, %v1365
        %v1382 = vmul.f32 %v1270, %v1366
        %v1383 = vmul.f32 %v1271, %v1367
        %v1384 = vmul.f32 %v1272, %v1368
        %v1386 = vlaneseq
        %v1387 = vshrl.u32 %v1386, 7
        %v1388 = vsub.s32 0, %v1387
        %v1389 = vrot.slane %v623, %v1388
        %v1391 = vmul.f32 %v1369, %v1389
        %v1392 = vmul.f32 %v1370, %v1389
        %v1393 = vmul.f32 %v1371, %v1389
        %v1394 = vmul.f32 %v1372, %v1389
        %v1395 = vmul.f32 %v1373, %v1389
        %v1396 = vmul.f32 %v1374, %v1389
        %v1397 = vmul.f32 %v1375, %v1389
        %v1398 = vmul.f32 %v1376, %v1389
        %v1399 = vmul.f32 %v1377, %v1389
        %v1400 = vmul.f32 %v1378, %v1389
        %v1401 = vmul.f32 %v1379, %v1389
        %v1402 = vmul.f32 %v1380, %v1389
        %v1403 = vmul.f32 %v1381, %v1389
        %v1404 = vmul.f32 %v1382, %v1389
        %v1405 = vmul.f32 %v1383, %v1389
        %v1406 = vmul.f32 %v1384, %v1389
        %v1407 = vpack.c.bf16 %v1392, %v1391
        %v1408 = vpack.c.bf16 %v1394, %v1393
        %v1409 = vpack.c.bf16 %v1396, %v1395
        %v1410 = vpack.c.bf16 %v1398, %v1397
        %v1411 = vpack.c.bf16 %v1400, %v1399
        %v1412 = vpack.c.bf16 %v1402, %v1401
        %v1413 = vpack.c.bf16 %v1404, %v1403
        %v1414 = vpack.c.bf16 %v1406, %v1405
        %v1447 = vunpack.c.l.b16 %v624
        %v1448 = vunpack.c.h.b16 %v624
        %v1449 = vunpack.c.l.b16 %v625
        %v1450 = vunpack.c.l.b16 %v626
        %v1451 = vunpack.c.h.b16 %v626
        %v1452 = vunpack.c.l.b16 %v627
        %v1453 = vunpack.c.l.b16 %v628
        %v1454 = vunpack.c.h.b16 %v628
        %v1455 = vunpack.c.l.b16 %v629
        %v1456 = vunpack.c.l.b16 %v630
        %v1457 = vunpack.c.h.b16 %v630
        %v1458 = vunpack.c.l.b16 %v631
        %v1459 = vunpack.c.l.b16 %v632
        %v1460 = vunpack.c.h.b16 %v632
        %v1461 = vunpack.c.l.b16 %v633
        %v1462 = vunpack.c.l.b16 %v634
        %v1463 = vunpack.c.h.b16 %v634
        %v1464 = vunpack.c.l.b16 %v635
        %v1465 = vunpack.c.l.b16 %v636
        %v1466 = vunpack.c.h.b16 %v636
        %v1467 = vunpack.c.l.b16 %v637
        %v1468 = vunpack.c.l.b16 %v638
        %v1469 = vunpack.c.h.b16 %v638
        %v1470 = vunpack.c.l.b16 %v639
        %v1471 = vunpack.c.l.b16 %v640
        %v1472 = vunpack.c.h.b16 %v640
        %v1473 = vunpack.c.l.b16 %v641
        %v1474 = vunpack.c.l.b16 %v642
        %v1475 = vunpack.c.h.b16 %v642
        %v1476 = vunpack.c.l.b16 %v643
        %v1477 = vunpack.c.l.b16 %v644
        %v1478 = vunpack.c.h.b16 %v644
        %v1479 = vunpack.c.l.b16 %v645
        %v1480 = vunpack.c.l.b16 %v646
        %v1481 = vunpack.c.h.b16 %v646
        %v1482 = vunpack.c.l.b16 %v647
        %v1483 = vunpack.c.l.b16 %v648
        %v1484 = vunpack.c.h.b16 %v648
        %v1485 = vunpack.c.l.b16 %v649
        %v1486 = vunpack.c.l.b16 %v650
        %v1487 = vunpack.c.h.b16 %v650
        %v1488 = vunpack.c.l.b16 %v651
        %v1489 = vunpack.c.l.b16 %v652
        %v1490 = vunpack.c.h.b16 %v652
        %v1491 = vunpack.c.l.b16 %v653
        %v1492 = vunpack.c.l.b16 %v654
        %v1493 = vunpack.c.h.b16 %v654
        %v1494 = vunpack.c.l.b16 %v655
        %v1495 = vpack.c.b16 %v1450, %v1447
        %v1496 = vpack.c.b16 %v1451, %v1448
        %v1497 = vpack.c.b16 %v1452, %v1449
        %v1498 = vpack.c.b16 %v1456, %v1453
        %v1499 = vpack.c.b16 %v1457, %v1454
        %v1500 = vpack.c.b16 %v1458, %v1455
        %v1501 = vpack.c.b16 %v1462, %v1459
        %v1502 = vpack.c.b16 %v1463, %v1460
        %v1503 = vpack.c.b16 %v1464, %v1461
        %v1504 = vpack.c.b16 %v1468, %v1465
        %v1505 = vpack.c.b16 %v1469, %v1466
        %v1506 = vpack.c.b16 %v1470, %v1467
        %v1507 = vpack.c.b16 %v1474, %v1471
        %v1508 = vpack.c.b16 %v1475, %v1472
        %v1509 = vpack.c.b16 %v1476, %v1473
        %v1510 = vpack.c.b16 %v1480, %v1477
        %v1511 = vpack.c.b16 %v1481, %v1478
        %v1512 = vpack.c.b16 %v1482, %v1479
        %v1513 = vpack.c.b16 %v1486, %v1483
        %v1514 = vpack.c.b16 %v1487, %v1484
        %v1515 = vpack.c.b16 %v1488, %v1485
        %v1516 = vpack.c.b16 %v1492, %v1489
        %v1517 = vpack.c.b16 %v1493, %v1490
        %v1518 = vpack.c.b16 %v1494, %v1491
        %1543 = vmatprep.subr.bf16.mxu0 %v1496
        %1544 = vmatpush1.bf16.msra.mxu0 %v1495
        %1545 = vmatprep.subr.bf16.mxu0 %v1499
        %1546 = vmatpush1.bf16.msra.mxu0 %v1498
        %1547 = vmatprep.subr.bf16.mxu0 %v1502
        %1548 = vmatpush1.bf16.msra.mxu0 %v1501
        %1549 = vmatprep.subr.bf16.mxu0 %v1505
        %1550 = vmatpush1.bf16.msra.mxu0 %v1504
        %1551 = vmatprep.subr.bf16.mxu0 %v1508
        %1552 = vmatpush1.bf16.msra.mxu0 %v1507
        %1553 = vmatprep.subr.bf16.mxu0 %v1511
        %1554 = vmatpush1.bf16.msra.mxu0 %v1510
        %1555 = vmatprep.subr.bf16.mxu0 %v1514
        %1556 = vmatpush1.bf16.msra.mxu0 %v1513
        %1557 = vmatprep.subr.bf16.mxu0 %v1517
        %1558 = vmatpush1.bf16.msra.mxu0 %v1516
        %1559 = vmatprep.subr.bf16.mxu0 0
        %1560 = vmatpush1.bf16.msra.mxu0 0
        %1561 = vmatprep.subr.bf16.mxu0 0
        %1562 = vmatpush1.bf16.msra.mxu0 0
        %1563 = vmatprep.subr.bf16.mxu0 0
        %1564 = vmatpush1.bf16.msra.mxu0 0
        %1565 = vmatprep.subr.bf16.mxu0 0
        %1566 = vmatpush1.bf16.msra.mxu0 0
        %1567 = vmatprep.subr.bf16.mxu0 0
        %1568 = vmatpush1.bf16.msra.mxu0 0
        %1569 = vmatprep.subr.bf16.mxu0 0
        %1570 = vmatpush1.bf16.msra.mxu0 0
        %1571 = vmatprep.subr.bf16.mxu0 0
        %1572 = vmatpush1.bf16.msra.mxu0 0
        %1573 = vmatprep.subr.bf16.mxu0 0
        %1574 = vmatpush1.bf16.msra.mxu0 0
        %1575 = vmatprep.mubr.bf16.mxu0 0
        %1576 = vmatmul.mubr.bf16.gmra.mrb[0].mxu0 %v1407
        %v1577 = vpop.f32.mrb[0].mxu0
        %v1578 = vadd.f32 0.0, %v1577
        %v1579 = vpop.f32.mrb[0].mxu0
        %v1580 = vadd.f32 0.0, %v1579
        %v1581 = vpop.f32.mrb[0].mxu0
        %v1582 = vadd.f32 0.0, %v1581
        %v1583 = vpop.f32.mrb[0].mxu0
        %v1584 = vadd.f32 0.0, %v1583
        %1585 = vmatprep.mubr.bf16.mxu0 0
        %1586 = vmatmul.mubr.bf16.gmra.mrb[0].mxu0 %v1408
        %v1587 = vpop.f32.mrb[0].mxu0
        %v1588 = vadd.f32 0.0, %v1587
        %v1589 = vpop.f32.mrb[0].mxu0
        %v1590 = vadd.f32 0.0, %v1589
        %v1591 = vpop.f32.mrb[0].mxu0
        %v1592 = vadd.f32 0.0, %v1591
        %v1593 = vpop.f32.mrb[0].mxu0
        %v1594 = vadd.f32 0.0, %v1593
        %1595 = vmatprep.mubr.bf16.mxu0 0
        %1596 = vmatmul.mubr.bf16.gmra.mrb[0].mxu0 %v1409
        %v1597 = vpop.f32.mrb[0].mxu0
        %v1598 = vadd.f32 0.0, %v1597
        %v1599 = vpop.f32.mrb[0].mxu0
        %v1600 = vadd.f32 0.0, %v1599
        %v1601 = vpop.f32.mrb[0].mxu0
        %v1602 = vadd.f32 0.0, %v1601
        %v1603 = vpop.f32.mrb[0].mxu0
        %v1604 = vadd.f32 0.0, %v1603
        %1605 = vmatprep.mubr.bf16.mxu0 0
        %1606 = vmatmul.mubr.bf16.gmra.mrb[0].mxu0 %v1410
        %v1607 = vpop.f32.mrb[0].mxu0
        %v1608 = vadd.f32 0.0, %v1607
        %v1609 = vpop.f32.mrb[0].mxu0
        %v1610 = vadd.f32 0.0, %v1609
        %v1611 = vpop.f32.mrb[0].mxu0
        %v1612 = vadd.f32 0.0, %v1611
        %v1613 = vpop.f32.mrb[0].mxu0
        %v1614 = vadd.f32 0.0, %v1613
        %1615 = vmatprep.mubr.bf16.mxu0 0
        %1616 = vmatmul.mubr.bf16.gmra.mrb[0].mxu0 %v1411
        %v1617 = vpop.f32.mrb[0].mxu0
        %v1618 = vadd.f32 0.0, %v1617
        %v1619 = vpop.f32.mrb[0].mxu0
        %v1620 = vadd.f32 0.0, %v1619
        %v1621 = vpop.f32.mrb[0].mxu0
        %v1622 = vadd.f32 0.0, %v1621
        %v1623 = vpop.f32.mrb[0].mxu0
        %v1624 = vadd.f32 0.0, %v1623
        %1625 = vmatprep.mubr.bf16.mxu0 0
        %1626 = vmatmul.mubr.bf16.gmra.mrb[0].mxu0 %v1412
        %v1627 = vpop.f32.mrb[0].mxu0
        %v1628 = vadd.f32 0.0, %v1627
        %v1629 = vpop.f32.mrb[0].mxu0
        %v1630 = vadd.f32 0.0, %v1629
        %v1631 = vpop.f32.mrb[0].mxu0
        %v1632 = vadd.f32 0.0, %v1631
        %v1633 = vpop.f32.mrb[0].mxu0
        %v1634 = vadd.f32 0.0, %v1633
        %1635 = vmatprep.mubr.bf16.mxu0 0
        %1636 = vmatmul.mubr.bf16.gmra.mrb[0].mxu0 %v1413
        %v1637 = vpop.f32.mrb[0].mxu0
        %v1638 = vadd.f32 0.0, %v1637
        %v1639 = vpop.f32.mrb[0].mxu0
        %v1640 = vadd.f32 0.0, %v1639
        %v1641 = vpop.f32.mrb[0].mxu0
        %v1642 = vadd.f32 0.0, %v1641
        %v1643 = vpop.f32.mrb[0].mxu0
        %v1644 = vadd.f32 0.0, %v1643
        %1645 = vmatprep.mubr.bf16.mxu0 0
        %1646 = vmatmul.mubr.bf16.gmra.mrb[0].mxu0 %v1414
        %v1647 = vpop.f32.mrb[0].mxu0
        %v1648 = vadd.f32 0.0, %v1647
        %v1649 = vpop.f32.mrb[0].mxu0
        %v1650 = vadd.f32 0.0, %v1649
        %v1651 = vpop.f32.mrb[0].mxu0
        %v1652 = vadd.f32 0.0, %v1651
        %v1653 = vpop.f32.mrb[0].mxu0
        %v1654 = vadd.f32 0.0, %v1653
        %1655 = vdwg.mxu0
        %1656 = vmatprep.subr.bf16.mxu0 0
        %1657 = vmatpush1.bf16.msra.mxu0 %v1497
        %1658 = vmatprep.subr.bf16.mxu0 0
        %1659 = vmatpush1.bf16.msra.mxu0 %v1500
        %1660 = vmatprep.subr.bf16.mxu0 0
        %1661 = vmatpush1.bf16.msra.mxu0 %v1503
        %1662 = vmatprep.subr.bf16.mxu0 0
        %1663 = vmatpush1.bf16.msra.mxu0 %v1506
        %1664 = vmatprep.subr.bf16.mxu0 0
        %1665 = vmatpush1.bf16.msra.mxu0 %v1509
        %1666 = vmatprep.subr.bf16.mxu0 0
        %1667 = vmatpush1.bf16.msra.mxu0 %v1512
        %1668 = vmatprep.subr.bf16.mxu0 0
        %1669 = vmatpush1.bf16.msra.mxu0 %v1515
        %1670 = vmatprep.subr.bf16.mxu0 0
        %1671 = vmatpush1.bf16.msra.mxu0 %v1518
        %1672 = vmatprep.subr.bf16.mxu0 0
        %1673 = vmatpush1.bf16.msra.mxu0 0
        %1674 = vmatprep.subr.bf16.mxu0 0
        %1675 = vmatpush1.bf16.msra.mxu0 0
        %1676 = vmatprep.subr.bf16.mxu0 0
        %1677 = vmatpush1.bf16.msra.mxu0 0
        %1678 = vmatprep.subr.bf16.mxu0 0
        %1679 = vmatpush1.bf16.msra.mxu0 0
        %1680 = vmatprep.subr.bf16.mxu0 0
        %1681 = vmatpush1.bf16.msra.mxu0 0
        %1682 = vmatprep.subr.bf16.mxu0 0
        %1683 = vmatpush1.bf16.msra.mxu0 0
        %1684 = vmatprep.subr.bf16.mxu0 0
        %1685 = vmatpush1.bf16.msra.mxu0 0
        %1686 = vmatprep.subr.bf16.mxu0 0
        %1687 = vmatpush1.bf16.msra.mxu0 0
        %1688 = vmatprep.mubr.bf16.mxu0 0
        %1689 = vmatmul.mubr.bf16.gmra.mrb[0].mxu0 %v1407
        %v1690 = vpop.f32.mrb[0].mxu0
        %v1691 = vadd.f32 0.0, %v1690
        %v1692 = vpop.f32.mrb[0].mxu0
        %v1693 = vpop.f32.mrb[0].mxu0
        %v1694 = vadd.f32 0.0, %v1693
        %v1695 = vpop.f32.mrb[0].mxu0
        %1696 = vmatprep.mubr.bf16.mxu0 0
        %1697 = vmatmul.mubr.bf16.gmra.mrb[0].mxu0 %v1408
        %v1698 = vpop.f32.mrb[0].mxu0
        %v1699 = vadd.f32 0.0, %v1698
        %v1700 = vpop.f32.mrb[0].mxu0
        %v1701 = vpop.f32.mrb[0].mxu0
        %v1702 = vadd.f32 0.0, %v1701
        %v1703 = vpop.f32.mrb[0].mxu0
        %1704 = vmatprep.mubr.bf16.mxu0 0
        %1705 = vmatmul.mubr.bf16.gmra.mrb[0].mxu0 %v1409
        %v1706 = vpop.f32.mrb[0].mxu0
        %v1707 = vadd.f32 0.0, %v1706
        %v1708 = vpop.f32.mrb[0].mxu0
        %v1709 = vpop.f32.mrb[0].mxu0
        %v1710 = vadd.f32 0.0, %v1709
        %v1711 = vpop.f32.mrb[0].mxu0
        %1712 = vmatprep.mubr.bf16.mxu0 0
        %1713 = vmatmul.mubr.bf16.gmra.mrb[0].mxu0 %v1410
        %v1714 = vpop.f32.mrb[0].mxu0
        %v1715 = vadd.f32 0.0, %v1714
        %v1716 = vpop.f32.mrb[0].mxu0
        %v1717 = vpop.f32.mrb[0].mxu0
        %v1718 = vadd.f32 0.0, %v1717
        %v1719 = vpop.f32.mrb[0].mxu0
        %1720 = vmatprep.mubr.bf16.mxu0 0
        %1721 = vmatmul.mubr.bf16.gmra.mrb[0].mxu0 %v1411
        %v1722 = vpop.f32.mrb[0].mxu0
        %v1723 = vadd.f32 0.0, %v1722
        %v1724 = vpop.f32.mrb[0].mxu0
        %v1725 = vpop.f32.mrb[0].mxu0
        %v1726 = vadd.f32 0.0, %v1725
        %v1727 = vpop.f32.mrb[0].mxu0
        %1728 = vmatprep.mubr.bf16.mxu0 0
        %1729 = vmatmul.mubr.bf16.gmra.mrb[0].mxu0 %v1412
        %v1730 = vpop.f32.mrb[0].mxu0
        %v1731 = vadd.f32 0.0, %v1730
        %v1732 = vpop.f32.mrb[0].mxu0
        %v1733 = vpop.f32.mrb[0].mxu0
        %v1734 = vadd.f32 0.0, %v1733
        %v1735 = vpop.f32.mrb[0].mxu0
        %1736 = vmatprep.mubr.bf16.mxu0 0
        %1737 = vmatmul.mubr.bf16.gmra.mrb[0].mxu0 %v1413
        %v1738 = vpop.f32.mrb[0].mxu0
        %v1739 = vadd.f32 0.0, %v1738
        %v1740 = vpop.f32.mrb[0].mxu0
        %v1741 = vpop.f32.mrb[0].mxu0
        %v1742 = vadd.f32 0.0, %v1741
        %v1743 = vpop.f32.mrb[0].mxu0
        %1744 = vmatprep.mubr.bf16.mxu0 0
        %1745 = vmatmul.mubr.bf16.gmra.mrb[0].mxu0 %v1414
        %v1746 = vpop.f32.mrb[0].mxu0
        %v1747 = vadd.f32 0.0, %v1746
        %v1748 = vpop.f32.mrb[0].mxu0
        %v1749 = vpop.f32.mrb[0].mxu0
        %v1750 = vadd.f32 0.0, %v1749
        %v1751 = vpop.f32.mrb[0].mxu0
        %1752 = vdwg.mxu0
        %1753 = vst [vmem:[%s605] sm:$0xff] %v1580
        %1754 = vst [vmem:[%s605 + $0x8] sm:$0xff] %v1584
        %1755 = vst [vmem:[%s605 + $0x10] sm:$0xff] %v1590
        %1756 = vst [vmem:[%s605 + $0x18] sm:$0xff] %v1594
        %1757 = vst [vmem:[%s605 + $0x20] sm:$0xff] %v1600
        %1758 = vst [vmem:[%s605 + $0x28] sm:$0xff] %v1604
        %1759 = vst [vmem:[%s605 + $0x30] sm:$0xff] %v1610
        %1760 = vst [vmem:[%s605 + $0x38] sm:$0xff] %v1614
        %1761 = vst [vmem:[%s605 + $0x40] sm:$0xff] %v1620
        %1762 = vst [vmem:[%s605 + $0x48] sm:$0xff] %v1624
        %1763 = vst [vmem:[%s605 + $0x50] sm:$0xff] %v1630
        %1764 = vst [vmem:[%s605 + $0x58] sm:$0xff] %v1634
        %1765 = vst [vmem:[%s605 + $0x60] sm:$0xff] %v1640
        %1766 = vst [vmem:[%s605 + $0x68] sm:$0xff] %v1644
        %1767 = vst [vmem:[%s605 + $0x70] sm:$0xff] %v1650
        %1768 = vst [vmem:[%s605 + $0x78] sm:$0xff] %v1654
        %1769 = vst [vmem:[%s612] sm:$0xff] %v1691
        %1770 = vst [vmem:[%s612 + $0x8] sm:$0xff] %v1694
        %1771 = vst [vmem:[%s612 + $0x10] sm:$0xff] %v1699
        %1772 = vst [vmem:[%s612 + $0x18] sm:$0xff] %v1702
        %1773 = vst [vmem:[%s612 + $0x20] sm:$0xff] %v1707
        %1774 = vst [vmem:[%s612 + $0x28] sm:$0xff] %v1710
        %1775 = vst [vmem:[%s612 + $0x30] sm:$0xff] %v1715
        %1776 = vst [vmem:[%s612 + $0x38] sm:$0xff] %v1718
        %1777 = vst [vmem:[%s612 + $0x40] sm:$0xff] %v1723
        %1778 = vst [vmem:[%s612 + $0x48] sm:$0xff] %v1726
        %1779 = vst [vmem:[%s612 + $0x50] sm:$0xff] %v1731
        %1780 = vst [vmem:[%s612 + $0x58] sm:$0xff] %v1734
        %1781 = vst [vmem:[%s612 + $0x60] sm:$0xff] %v1739
        %1782 = vst [vmem:[%s612 + $0x68] sm:$0xff] %v1742
        %1783 = vst [vmem:[%s612 + $0x70] sm:$0xff] %v1747
        %1784 = vst [vmem:[%s612 + $0x78] sm:$0xff] %v1750
        %v1785 = vld [vmem:[%s531] sm:$0xff]
        %v1786 = vmul.f32 %v1785, %v1785
        %1787 = vadd.xlane.f32.xlu0 %v1786
        %v1788 = vpop.xlane.xlu0 %1787
        %v1789 = vmul.f32 %v1788, %v720
        %v1790 = vadd.f32 %v1789, 1e-06
        %v1791 = vrsqrt.pop %v1790
        %v1792 = vmul.f32 %v1785, %v1791
        %v1793 = vmul.f32 %v1792, %v789
        %v1794 = vpack.c.bf16 %v1793, %v1793
        %v1795 = vld [vmem:[#allocation7] sm:$0xf]
        %v1796 = vld [vmem:[#allocation7 + $0x4] sm:$0xf]
        %v1797 = vld [vmem:[#allocation7 + $0x8] sm:$0xf]
        %v1798 = vld [vmem:[#allocation7 + $0xc] sm:$0xf]
        %v1799 = vld [vmem:[#allocation7 + $0x10] sm:$0xf]
        %v1800 = vld [vmem:[#allocation7 + $0x14] sm:$0xf]
        %v1801 = vld [vmem:[#allocation7 + $0x18] sm:$0xf]
        %v1802 = vld [vmem:[#allocation7 + $0x1c] sm:$0xf]
        %v1803 = vld [vmem:[#allocation7 + $0x20] sm:$0xf]
        %v1804 = vld [vmem:[#allocation7 + $0x24] sm:$0xf]
        %v1805 = vld [vmem:[#allocation7 + $0x28] sm:$0xf]
        %v1806 = vld [vmem:[#allocation7 + $0x2c] sm:$0xf]
        %v1807 = vld [vmem:[#allocation7 + $0x30] sm:$0xf]
        %v1808 = vld [vmem:[#allocation7 + $0x34] sm:$0xf]
        %v1809 = vld [vmem:[#allocation7 + $0x38] sm:$0xf]
        %v1810 = vld [vmem:[#allocation7 + $0x3c] sm:$0xf]
        %v1827 = vunpack.c.l.b16 %v1795
        %v1828 = vunpack.c.l.b16 %v1796
        %v1829 = vunpack.c.l.b16 %v1797
        %v1830 = vunpack.c.l.b16 %v1798
        %v1831 = vunpack.c.l.b16 %v1799
        %v1832 = vunpack.c.l.b16 %v1800
        %v1833 = vunpack.c.l.b16 %v1801
        %v1834 = vunpack.c.l.b16 %v1802
        %v1835 = vunpack.c.l.b16 %v1803
        %v1836 = vunpack.c.l.b16 %v1804
        %v1837 = vunpack.c.l.b16 %v1805
        %v1838 = vunpack.c.l.b16 %v1806
        %v1839 = vunpack.c.l.b16 %v1807
        %v1840 = vunpack.c.l.b16 %v1808
        %v1841 = vunpack.c.l.b16 %v1809
        %v1842 = vunpack.c.l.b16 %v1810
        %v1843 = vpack.c.b16 %v1828, %v1827
        %v1844 = vpack.c.b16 %v1830, %v1829
        %v1845 = vpack.c.b16 %v1832, %v1831
        %v1846 = vpack.c.b16 %v1834, %v1833
        %v1847 = vpack.c.b16 %v1836, %v1835
        %v1848 = vpack.c.b16 %v1838, %v1837
        %v1849 = vpack.c.b16 %v1840, %v1839
        %v1850 = vpack.c.b16 %v1842, %v1841
        %1859 = vmatprep.subr.bf16.mxu0 0
        %1860 = vmatpush1.bf16.msra.mxu0 %v1843
        %1861 = vmatprep.subr.bf16.mxu0 0
        %1862 = vmatpush1.bf16.msra.mxu0 %v1844
        %1863 = vmatprep.subr.bf16.mxu0 0
        %1864 = vmatpush1.bf16.msra.mxu0 %v1845
        %1865 = vmatprep.subr.bf16.mxu0 0
        %1866 = vmatpush1.bf16.msra.mxu0 %v1846
        %1867 = vmatprep.subr.bf16.mxu0 0
        %1868 = vmatpush1.bf16.msra.mxu0 %v1847
        %1869 = vmatprep.subr.bf16.mxu0 0
        %1870 = vmatpush1.bf16.msra.mxu0 %v1848
        %1871 = vmatprep.subr.bf16.mxu0 0
        %1872 = vmatpush1.bf16.msra.mxu0 %v1849
        %1873 = vmatprep.subr.bf16.mxu0 0
        %1874 = vmatpush1.bf16.msra.mxu0 %v1850
        %1875 = vmatprep.subr.bf16.mxu0 0
        %1876 = vmatpush1.bf16.msra.mxu0 0
        %1877 = vmatprep.subr.bf16.mxu0 0
        %1878 = vmatpush1.bf16.msra.mxu0 0
        %1879 = vmatprep.subr.bf16.mxu0 0
        %1880 = vmatpush1.bf16.msra.mxu0 0
        %1881 = vmatprep.subr.bf16.mxu0 0
        %1882 = vmatpush1.bf16.msra.mxu0 0
        %1883 = vmatprep.subr.bf16.mxu0 0
        %1884 = vmatpush1.bf16.msra.mxu0 0
        %1885 = vmatprep.subr.bf16.mxu0 0
        %1886 = vmatpush1.bf16.msra.mxu0 0
        %1887 = vmatprep.subr.bf16.mxu0 0
        %1888 = vmatpush1.bf16.msra.mxu0 0
        %1889 = vmatprep.subr.bf16.mxu0 0
        %1890 = vmatpush1.bf16.msra.mxu0 0
        %1891 = vmatprep.mubr.bf16.mxu0 0
        %1892 = vmatmul.mubr.bf16.gmra.mrb[0].mxu0 %v1794
        %v1893 = vpop.f32.mrb[0].mxu0
        %v1894 = vadd.f32 0.0, %v1893
        %v1895 = vpop.f32.mrb[0].mxu0
        %v1896 = vpop.f32.mrb[0].mxu0
        %v1897 = vpop.f32.mrb[0].mxu0
        %1898 = vdwg.mxu0
        %v1899 = vxor.u32 %v1894, 2147483648
        %v1900 = vmul.f32 %v1899, 1.442695
        %v1901 = vpow.pop %v1900
        %v1902 = vadd.f32 %v1901, 1.0
        %v1903 = vrcp.pop %v1902
        %v1904 = vmul.f32 1.0, %v1903
        %v1905 = vmul.f32 %v1894, %v1904
        %v1906 = vpack.c.bf16 %v1905, %v1905
        %v1907 = vld [vmem:[#allocation8] sm:$0xf]
        %v1908 = vld [vmem:[#allocation8 + $0x4] sm:$0xf]
        %v1909 = vld [vmem:[#allocation8 + $0x8] sm:$0xf]
        %v1910 = vld [vmem:[#allocation8 + $0xc] sm:$0xf]
        %v1911 = vld [vmem:[#allocation8 + $0x10] sm:$0xf]
        %v1912 = vld [vmem:[#allocation8 + $0x14] sm:$0xf]
        %v1913 = vld [vmem:[#allocation8 + $0x18] sm:$0xf]
        %v1914 = vld [vmem:[#allocation8 + $0x1c] sm:$0xf]
        %v1915 = vld [vmem:[#allocation8 + $0x20] sm:$0xf]
        %v1916 = vld [vmem:[#allocation8 + $0x24] sm:$0xf]
        %v1917 = vld [vmem:[#allocation8 + $0x28] sm:$0xf]
        %v1918 = vld [vmem:[#allocation8 + $0x2c] sm:$0xf]
        %v1919 = vld [vmem:[#allocation8 + $0x30] sm:$0xf]
        %v1920 = vld [vmem:[#allocation8 + $0x34] sm:$0xf]
        %v1921 = vld [vmem:[#allocation8 + $0x38] sm:$0xf]
        %v1922 = vld [vmem:[#allocation8 + $0x3c] sm:$0xf]
        %v1939 = vunpack.c.l.b16 %v1907
        %v1940 = vunpack.c.l.b16 %v1908
        %v1941 = vunpack.c.l.b16 %v1909
        %v1942 = vunpack.c.l.b16 %v1910
        %v1943 = vunpack.c.l.b16 %v1911
        %v1944 = vunpack.c.l.b16 %v1912
        %v1945 = vunpack.c.l.b16 %v1913
        %v1946 = vunpack.c.l.b16 %v1914
        %v1947 = vunpack.c.l.b16 %v1915
        %v1948 = vunpack.c.l.b16 %v1916
        %v1949 = vunpack.c.l.b16 %v1917
        %v1950 = vunpack.c.l.b16 %v1918
        %v1951 = vunpack.c.l.b16 %v1919
        %v1952 = vunpack.c.l.b16 %v1920
        %v1953 = vunpack.c.l.b16 %v1921
        %v1954 = vunpack.c.l.b16 %v1922
        %v1955 = vpack.c.b16 %v1940, %v1939
        %v1956 = vpack.c.b16 %v1942, %v1941
        %v1957 = vpack.c.b16 %v1944, %v1943
        %v1958 = vpack.c.b16 %v1946, %v1945
        %v1959 = vpack.c.b16 %v1948, %v1947
        %v1960 = vpack.c.b16 %v1950, %v1949
        %v1961 = vpack.c.b16 %v1952, %v1951
        %v1962 = vpack.c.b16 %v1954, %v1953
        %1971 = vmatprep.subr.bf16.mxu0 0
        %1972 = vmatpush1.bf16.msra.mxu0 %v1955
        %1973 = vmatprep.subr.bf16.mxu0 0
        %1974 = vmatpush1.bf16.msra.mxu0 %v1956
        %1975 = vmatprep.subr.bf16.mxu0 0
        %1976 = vmatpush1.bf16.msra.mxu0 %v1957
        %1977 = vmatprep.subr.bf16.mxu0 0
        %1978 = vmatpush1.bf16.msra.mxu0 %v1958
        %1979 = vmatprep.subr.bf16.mxu0 0
        %1980 = vmatpush1.bf16.msra.mxu0 %v1959
        %1981 = vmatprep.subr.bf16.mxu0 0
        %1982 = vmatpush1.bf16.msra.mxu0 %v1960
        %1983 = vmatprep.subr.bf16.mxu0 0
        %1984 = vmatpush1.bf16.msra.mxu0 %v1961
        %1985 = vmatprep.subr.bf16.mxu0 0
        %1986 = vmatpush1.bf16.msra.mxu0 %v1962
        %1987 = vmatprep.subr.bf16.mxu0 0
        %1988 = vmatpush1.bf16.msra.mxu0 0
        %1989 = vmatprep.subr.bf16.mxu0 0
        %1990 = vmatpush1.bf16.msra.mxu0 0
        %1991 = vmatprep.subr.bf16.mxu0 0
        %1992 = vmatpush1.bf16.msra.mxu0 0
        %1993 = vmatprep.subr.bf16.mxu0 0
        %1994 = vmatpush1.bf16.msra.mxu0 0
        %1995 = vmatprep.subr.bf16.mxu0 0
        %1996 = vmatpush1.bf16.msra.mxu0 0
        %1997 = vmatprep.subr.bf16.mxu0 0
        %1998 = vmatpush1.bf16.msra.mxu0 0
        %1999 = vmatprep.subr.bf16.mxu0 0
        %2000 = vmatpush1.bf16.msra.mxu0 0
        %2001 = vmatprep.subr.bf16.mxu0 0
        %2002 = vmatpush1.bf16.msra.mxu0 0
        %2003 = vmatprep.mubr.bf16.mxu0 0
        %2004 = vmatmul.mubr.bf16.gmra.mrb[0].mxu0 %v1906
        %v2005 = vpop.f32.mrb[0].mxu0
        %v2006 = vadd.f32 0.0, %v2005
        %v2007 = vpop.f32.mrb[0].mxu0
        %v2008 = vpop.f32.mrb[0].mxu0
        %v2009 = vpop.f32.mrb[0].mxu0
        %2010 = vdwg.mxu0
        %v2011 = vadd.f32 %v1785, %v2006
        %v2012 = vmul.f32 %v2011, %v2011
        %2013 = vadd.xlane.f32.xlu0 %v2012
        %v2014 = vpop.xlane.xlu0 %2013
        %v2015 = vmul.f32 %v2014, %v720
        %v2016 = vadd.f32 %v2015, 1e-06
        %v2017 = vrsqrt.pop %v2016
        %v2018 = vmul.f32 %v2011, %v2017
        %v2019 = vmul.f32 %v2018, %v1389
        %v2020 = vpack.c.bf16 %v2019, %v2019
        %2021 = vmatprep.subr.bf16.mxu0 %v1496
        %2022 = vmatpush1.bf16.msra.mxu0 %v1495
        %2023 = vmatprep.subr.bf16.mxu0 %v1499
        %2024 = vmatpush1.bf16.msra.mxu0 %v1498
        %2025 = vmatprep.subr.bf16.mxu0 %v1502
        %2026 = vmatpush1.bf16.msra.mxu0 %v1501
        %2027 = vmatprep.subr.bf16.mxu0 %v1505
        %2028 = vmatpush1.bf16.msra.mxu0 %v1504
        %2029 = vmatprep.subr.bf16.mxu0 %v1508
        %2030 = vmatpush1.bf16.msra.mxu0 %v1507
        %2031 = vmatprep.subr.bf16.mxu0 %v1511
        %2032 = vmatpush1.bf16.msra.mxu0 %v1510
        %2033 = vmatprep.subr.bf16.mxu0 %v1514
        %2034 = vmatpush1.bf16.msra.mxu0 %v1513
        %2035 = vmatprep.subr.bf16.mxu0 %v1517
        %2036 = vmatpush1.bf16.msra.mxu0 %v1516
        %2037 = vmatprep.subr.bf16.mxu0 0
        %2038 = vmatpush1.bf16.msra.mxu0 0
        %2039 = vmatprep.subr.bf16.mxu0 0
        %2040 = vmatpush1.bf16.msra.mxu0 0
        %2041 = vmatprep.subr.bf16.mxu0 0
        %2042 = vmatpush1.bf16.msra.mxu0 0
        %2043 = vmatprep.subr.bf16.mxu0 0
        %2044 = vmatpush1.bf16.msra.mxu0 0
        %2045 = vmatprep.subr.bf16.mxu0 0
        %2046 = vmatpush1.bf16.msra.mxu0 0
        %2047 = vmatprep.subr.bf16.mxu0 0
        %2048 = vmatpush1.bf16.msra.mxu0 0
        %2049 = vmatprep.subr.bf16.mxu0 0
        %2050 = vmatpush1.bf16.msra.mxu0 0
        %2051 = vmatprep.subr.bf16.mxu0 0
        %2052 = vmatpush1.bf16.msra.mxu0 0
        %2053 = vmatprep.mubr.bf16.mxu0 0
        %2054 = vmatmul.mubr.bf16.gmra.mrb[0].mxu0 %v2020
        %v2055 = vpop.f32.mrb[0].mxu0
        %v2056 = vpop.f32.mrb[0].mxu0
        %v2057 = vadd.f32 0.0, %v2056
        %v2058 = vpop.f32.mrb[0].mxu0
        %v2059 = vpop.f32.mrb[0].mxu0
        %2060 = vdwg.mxu0
        %2061 = vmatprep.subr.bf16.mxu0 0
        %2062 = vmatpush1.bf16.msra.mxu0 %v1497
        %2063 = vmatprep.subr.bf16.mxu0 0
        %2064 = vmatpush1.bf16.msra.mxu0 %v1500
        %2065 = vmatprep.subr.bf16.mxu0 0
        %2066 = vmatpush1.bf16.msra.mxu0 %v1503
        %2067 = vmatprep.subr.bf16.mxu0 0
        %2068 = vmatpush1.bf16.msra.mxu0 %v1506
        %2069 = vmatprep.subr.bf16.mxu0 0
        %2070 = vmatpush1.bf16.msra.mxu0 %v1509
        %2071 = vmatprep.subr.bf16.mxu0 0
        %2072 = vmatpush1.bf16.msra.mxu0 %v1512
        %2073 = vmatprep.subr.bf16.mxu0 0
        %2074 = vmatpush1.bf16.msra.mxu0 %v1515
        %2075 = vmatprep.subr.bf16.mxu0 0
        %2076 = vmatpush1.bf16.msra.mxu0 %v1518
        %2077 = vmatprep.subr.bf16.mxu0 0
        %2078 = vmatpush1.bf16.msra.mxu0 0
        %2079 = vmatprep.subr.bf16.mxu0 0
        %2080 = vmatpush1.bf16.msra.mxu0 0
        %2081 = vmatprep.subr.bf16.mxu0 0
        %2082 = vmatpush1.bf16.msra.mxu0 0
        %2083 = vmatprep.subr.bf16.mxu0 0
        %2084 = vmatpush1.bf16.msra.mxu0 0
        %2085 = vmatprep.subr.bf16.mxu0 0
        %2086 = vmatpush1.bf16.msra.mxu0 0
        %2087 = vmatprep.subr.bf16.mxu0 0
        %2088 = vmatpush1.bf16.msra.mxu0 0
        %2089 = vmatprep.subr.bf16.mxu0 0
        %2090 = vmatpush1.bf16.msra.mxu0 0
        %2091 = vmatprep.subr.bf16.mxu0 0
        %2092 = vmatpush1.bf16.msra.mxu0 0
        %2093 = vmatprep.mubr.bf16.mxu0 0
        %2094 = vmatmul.mubr.bf16.gmra.mrb[0].mxu0 %v2020
        %v2095 = vpop.f32.mrb[0].mxu0
        %v2096 = vadd.f32 0.0, %v2095
        %v2097 = vpop.f32.mrb[0].mxu0
        %v2098 = vpop.f32.mrb[0].mxu0
        %v2099 = vpop.f32.mrb[0].mxu0
        %2100 = vdwg.mxu0
        %v2101 = vpack.c.bf16 %v1580, %v2057
        %v2102 = vpack.c.bf16 %v1590, %v1584
        %v2103 = vpack.c.bf16 %v1600, %v1594
        %v2104 = vpack.c.bf16 %v1610, %v1604
        %v2105 = vpack.c.bf16 %v1620, %v1614
        %v2106 = vpack.c.bf16 %v1630, %v1624
        %v2107 = vpack.c.bf16 %v1640, %v1634
        %v2108 = vpack.c.bf16 %v1650, %v1644
        %v2109 = vpack.c.bf16 %v1654, %v1654
        %v2110 = vpack.c.bf16 %v1691, %v2096
        %v2111 = vpack.c.bf16 %v1699, %v1694
        %v2112 = vpack.c.bf16 %v1707, %v1702
        %v2113 = vpack.c.bf16 %v1715, %v1710
        %v2114 = vpack.c.bf16 %v1723, %v1718
        %v2115 = vpack.c.bf16 %v1731, %v1726
        %v2116 = vpack.c.bf16 %v1739, %v1734
        %v2117 = vpack.c.bf16 %v1747, %v1742
        %v2118 = vpack.c.bf16 %v1750, %v1750
        %v2119 = vmul.f32 %v1578, 0.088388346
        %v2120 = vmul.f32 %v1582, 0.088388346
        %v2121 = vmul.f32 %v1588, 0.088388346
        %v2122 = vmul.f32 %v1592, 0.088388346
        %v2123 = vmul.f32 %v1598, 0.088388346
        %v2124 = vmul.f32 %v1602, 0.088388346
        %v2125 = vmul.f32 %v1608, 0.088388346
        %v2126 = vmul.f32 %v1612, 0.088388346
        %v2127 = vmul.f32 %v1618, 0.088388346
        %v2128 = vmul.f32 %v1622, 0.088388346
        %v2129 = vmul.f32 %v1628, 0.088388346
        %v2130 = vmul.f32 %v1632, 0.088388346
        %v2131 = vmul.f32 %v1638, 0.088388346
        %v2132 = vmul.f32 %v1642, 0.088388346
        %v2133 = vmul.f32 %v1648, 0.088388346
        %v2134 = vmul.f32 %v1652, 0.088388346
        %v2135 = vpack.c.bf16 %v2120, %v2119
        %v2136 = vpack.c.bf16 %v2122, %v2121
        %v2137 = vpack.c.bf16 %v2124, %v2123
        %v2138 = vpack.c.bf16 %v2126, %v2125
        %v2139 = vpack.c.bf16 %v2128, %v2127
        %v2140 = vpack.c.bf16 %v2130, %v2129
        %v2141 = vpack.c.bf16 %v2132, %v2131
        %v2142 = vpack.c.bf16 %v2134, %v2133
        %2143 = vmatprep.subr.bf16.mxu0 0
        %2144 = vmatpush1.bf16.xpose.msra.mxu0 %v2101
        %2145 = vmatprep.subr.bf16.mxu0 0
        %2146 = vmatpush1.bf16.xpose.msra.mxu0 %v2102
        %2147 = vmatprep.subr.bf16.mxu0 0
        %2148 = vmatpush1.bf16.xpose.msra.mxu0 %v2103
        %2149 = vmatprep.subr.bf16.mxu0 0
        %2150 = vmatpush1.bf16.xpose.msra.mxu0 %v2104
        %2151 = vmatprep.subr.bf16.mxu0 0
        %2152 = vmatpush1.bf16.xpose.msra.mxu0 %v2105
        %2153 = vmatprep.subr.bf16.mxu0 0
        %2154 = vmatpush1.bf16.xpose.msra.mxu0 %v2106
        %2155 = vmatprep.subr.bf16.mxu0 0
        %2156 = vmatpush1.bf16.xpose.msra.mxu0 %v2107
        %2157 = vmatprep.subr.bf16.mxu0 0
        %2158 = vmatpush1.bf16.xpose.msra.mxu0 %v2108
        %2159 = vmatprep.subr.bf16.mxu0 0
        %2160 = vmatpush1.bf16.xpose.msra.mxu0 %v2109
        %2161 = vmatprep.subr.bf16.mxu0 0
        %2162 = vmatpush1.bf16.xpose.msra.mxu0 0
        %2163 = vmatprep.subr.bf16.mxu0 0
        %2164 = vmatpush1.bf16.xpose.msra.mxu0 0
        %2165 = vmatprep.subr.bf16.mxu0 0
        %2166 = vmatpush1.bf16.xpose.msra.mxu0 0
        %2167 = vmatprep.subr.bf16.mxu0 0
        %2168 = vmatpush1.bf16.xpose.msra.mxu0 0
        %2169 = vmatprep.subr.bf16.mxu0 0
        %2170 = vmatpush1.bf16.xpose.msra.mxu0 0
        %2171 = vmatprep.subr.bf16.mxu0 0
        %2172 = vmatpush1.bf16.xpose.msra.mxu0 0
        %2173 = vmatprep.subr.bf16.mxu0 0
        %2174 = vmatpush1.bf16.xpose.msra.mxu0 0
        %2175 = vmatprep.mubr.bf16.mxu0 0
        %2176 = vmatmul.mubr.bf16.gmra.mrb[0].mxu0 %v2135
        %v2177 = vpop.f32.mrb[0].mxu0
        %v2178 = vadd.f32 0.0, %v2177
        %v2179 = vpop.f32.mrb[0].mxu0
        %v2180 = vadd.f32 0.0, %v2179
        %v2181 = vpop.f32.mrb[0].mxu0
        %v2182 = vadd.f32 0.0, %v2181
        %v2183 = vpop.f32.mrb[0].mxu0
        %v2184 = vadd.f32 0.0, %v2183
        %2185 = vmatprep.mubr.bf16.mxu0 0
        %2186 = vmatmul.mubr.bf16.gmra.mrb[0].mxu0 %v2136
        %v2187 = vpop.f32.mrb[0].mxu0
        %v2188 = vadd.f32 0.0, %v2187
        %v2189 = vpop.f32.mrb[0].mxu0
        %v2190 = vadd.f32 0.0, %v2189
        %v2191 = vpop.f32.mrb[0].mxu0
        %v2192 = vadd.f32 0.0, %v2191
        %v2193 = vpop.f32.mrb[0].mxu0
        %v2194 = vadd.f32 0.0, %v2193
        %2195 = vmatprep.mubr.bf16.mxu0 0
        %2196 = vmatmul.mubr.bf16.gmra.mrb[0].mxu0 %v2137
        %v2197 = vpop.f32.mrb[0].mxu0
        %v2198 = vadd.f32 0.0, %v2197
        %v2199 = vpop.f32.mrb[0].mxu0
        %v2200 = vadd.f32 0.0, %v2199
        %v2201 = vpop.f32.mrb[0].mxu0
        %v2202 = vadd.f32 0.0, %v2201
        %v2203 = vpop.f32.mrb[0].mxu0
        %v2204 = vadd.f32 0.0, %v2203
        %2205 = vmatprep.mubr.bf16.mxu0 0
        %2206 = vmatmul.mubr.bf16.gmra.mrb[0].mxu0 %v2138
        %v2207 = vpop.f32.mrb[0].mxu0
        %v2208 = vadd.f32 0.0, %v2207
        %v2209 = vpop.f32.mrb[0].mxu0
        %v2210 = vadd.f32 0.0, %v2209
        %v2211 = vpop.f32.mrb[0].mxu0
        %v2212 = vadd.f32 0.0, %v2211
        %v2213 = vpop.f32.mrb[0].mxu0
        %v2214 = vadd.f32 0.0, %v2213
        %2215 = vmatprep.mubr.bf16.mxu0 0
        %2216 = vmatmul.mubr.bf16.gmra.mrb[0].mxu0 %v2139
        %v2217 = vpop.f32.mrb[0].mxu0
        %v2218 = vadd.f32 0.0, %v2217
        %v2219 = vpop.f32.mrb[0].mxu0
        %v2220 = vadd.f32 0.0, %v2219
        %v2221 = vpop.f32.mrb[0].mxu0
        %v2222 = vadd.f32 0.0, %v2221
        %v2223 = vpop.f32.mrb[0].mxu0
        %v2224 = vadd.f32 0.0, %v2223
        %2225 = vmatprep.mubr.bf16.mxu0 0
        %2226 = vmatmul.mubr.bf16.gmra.mrb[0].mxu0 %v2140
        %v2227 = vpop.f32.mrb[0].mxu0
        %v2228 = vadd.f32 0.0, %v2227
        %v2229 = vpop.f32.mrb[0].mxu0
        %v2230 = vadd.f32 0.0, %v2229
        %v2231 = vpop.f32.mrb[0].mxu0
        %v2232 = vadd.f32 0.0, %v2231
        %v2233 = vpop.f32.mrb[0].mxu0
        %v2234 = vadd.f32 0.0, %v2233
        %2235 = vmatprep.mubr.bf16.mxu0 0
        %2236 = vmatmul.mubr.bf16.gmra.mrb[0].mxu0 %v2141
        %v2237 = vpop.f32.mrb[0].mxu0
        %v2238 = vadd.f32 0.0, %v2237
        %v2239 = vpop.f32.mrb[0].mxu0
        %v2240 = vadd.f32 0.0, %v2239
        %v2241 = vpop.f32.mrb[0].mxu0
        %v2242 = vadd.f32 0.0, %v2241
        %v2243 = vpop.f32.mrb[0].mxu0
        %v2244 = vadd.f32 0.0, %v2243
        %2245 = vmatprep.mubr.bf16.mxu0 0
        %2246 = vmatmul.mubr.bf16.gmra.mrb[0].mxu0 %v2142
        %v2247 = vpop.f32.mrb[0].mxu0
        %v2248 = vadd.f32 0.0, %v2247
        %v2249 = vpop.f32.mrb[0].mxu0
        %v2250 = vadd.f32 0.0, %v2249
        %v2251 = vpop.f32.mrb[0].mxu0
        %v2252 = vadd.f32 0.0, %v2251
        %v2253 = vpop.f32.mrb[0].mxu0
        %v2254 = vadd.f32 0.0, %v2253
        %2255 = vdwg.mxu0
        %s2256 = smul.u32 %s40, 128
        %v2257 = vlaneseq
        %v2258 = vshrl.u32 %v2257, 7
        %v2259 = vadd.s32 %v2258, 8
        %v2260 = vadd.s32 %v2258, 16
        %v2261 = vadd.s32 %v2258, 24
        %v2262 = vadd.s32 %v2258, 32
        %v2263 = vadd.s32 %v2258, 40
        %v2264 = vadd.s32 %v2258, 48
        %v2265 = vadd.s32 %v2258, 56
        %v2266 = vadd.s32 %v2258, 64
        %v2267 = vadd.s32 %v2258, 72
        %v2268 = vadd.s32 %v2258, 80
        %v2269 = vadd.s32 %v2258, 88
        %v2270 = vadd.s32 %v2258, 96
        %v2271 = vadd.s32 %v2258, 104
        %v2272 = vadd.s32 %v2258, 112
        %v2273 = vadd.s32 %v2258, 120
        %v2274 = vstv %s2256
        %v2275 = vadd.s32 %v2274, %v2258
        %v2276 = vadd.s32 %v2274, %v2259
        %v2277 = vadd.s32 %v2274, %v2260
        %v2278 = vadd.s32 %v2274, %v2261
        %v2279 = vadd.s32 %v2274, %v2262
        %v2280 = vadd.s32 %v2274, %v2263
        %v2281 = vadd.s32 %v2274, %v2264
        %v2282 = vadd.s32 %v2274, %v2265
        %v2283 = vadd.s32 %v2274, %v2266
        %v2284 = vadd.s32 %v2274, %v2267
        %v2285 = vadd.s32 %v2274, %v2268
        %v2286 = vadd.s32 %v2274, %v2269
        %v2287 = vadd.s32 %v2274, %v2270
        %v2288 = vadd.s32 %v2274, %v2271
        %v2289 = vadd.s32 %v2274, %v2272
        %v2290 = vadd.s32 %v2274, %v2273
        %v2291 = vlaneseq
        %v2292 = vand.u32 %v2291, 127
        %v2293 = vadd.s32 %v2292, 128
        %p2294 = scmp.gt.s32.totalorder %s40, 0
        %s2295 = ssub.s32 %s2256, 8
        %s2296 = scalar_select %p2294, %s2295, 3221225472
        %vm2297 = vcmp.lt.s32.totalorder %v2292, 8
        %vm2298 = vcmp.lt.s32.totalorder %v2293, 8
        %v2299 = vstv %s2296
        %v2300 = vadd.s32 %v2299, %v2292
        %v2301 = vadd.s32 %v2299, %v2293
        %v2302 = vsub.s32 %v2292, 8
        %v2303 = vsub.s32 %v2293, 8
        %v2304 = vadd.s32 %v2274, %v2302
        %v2305 = vadd.s32 %v2274, %v2303
        %v2306 = vsel %vm2297, %v2300, %v2304
        %v2307 = vsel %vm2298, %v2301, %v2305
        %vm2308 = vcmp.le.s32.totalorder %v2306, %v2275
        %vm2309 = vcmp.le.s32.totalorder %v2307, %v2275
        %vm2310 = vcmp.le.s32.totalorder %v2306, %v2276
        %vm2311 = vcmp.le.s32.totalorder %v2307, %v2276
        %vm2312 = vcmp.le.s32.totalorder %v2306, %v2277
        %vm2313 = vcmp.le.s32.totalorder %v2307, %v2277
        %vm2314 = vcmp.le.s32.totalorder %v2306, %v2278
        %vm2315 = vcmp.le.s32.totalorder %v2307, %v2278
        %vm2316 = vcmp.le.s32.totalorder %v2306, %v2279
        %vm2317 = vcmp.le.s32.totalorder %v2307, %v2279
        %vm2318 = vcmp.le.s32.totalorder %v2306, %v2280
        %vm2319 = vcmp.le.s32.totalorder %v2307, %v2280
        %vm2320 = vcmp.le.s32.totalorder %v2306, %v2281
        %vm2321 = vcmp.le.s32.totalorder %v2307, %v2281
        %vm2322 = vcmp.le.s32.totalorder %v2306, %v2282
        %vm2323 = vcmp.le.s32.totalorder %v2307, %v2282
        %vm2324 = vcmp.le.s32.totalorder %v2306, %v2283
        %vm2325 = vcmp.le.s32.totalorder %v2307, %v2283
        %vm2326 = vcmp.le.s32.totalorder %v2306, %v2284
        %vm2327 = vcmp.le.s32.totalorder %v2307, %v2284
        %vm2328 = vcmp.le.s32.totalorder %v2306, %v2285
        %vm2329 = vcmp.le.s32.totalorder %v2307, %v2285
        %vm2330 = vcmp.le.s32.totalorder %v2306, %v2286
        %vm2331 = vcmp.le.s32.totalorder %v2307, %v2286
        %vm2332 = vcmp.le.s32.totalorder %v2306, %v2287
        %vm2333 = vcmp.le.s32.totalorder %v2307, %v2287
        %vm2334 = vcmp.le.s32.totalorder %v2306, %v2288
        %vm2335 = vcmp.le.s32.totalorder %v2307, %v2288
        %vm2336 = vcmp.le.s32.totalorder %v2306, %v2289
        %vm2337 = vcmp.le.s32.totalorder %v2307, %v2289
        %vm2338 = vcmp.le.s32.totalorder %v2306, %v2290
        %vm2339 = vcmp.le.s32.totalorder %v2307, %v2290
        %v2340 = vsub.s32 %v2275, %v2306
        %v2341 = vsub.s32 %v2275, %v2307
        %v2342 = vsub.s32 %v2276, %v2306
        %v2343 = vsub.s32 %v2276, %v2307
        %v2344 = vsub.s32 %v2277, %v2306
        %v2345 = vsub.s32 %v2277, %v2307
        %v2346 = vsub.s32 %v2278, %v2306
        %v2347 = vsub.s32 %v2278, %v2307
        %v2348 = vsub.s32 %v2279, %v2306
        %v2349 = vsub.s32 %v2279, %v2307
        %v2350 = vsub.s32 %v2280, %v2306
        %v2351 = vsub.s32 %v2280, %v2307
        %v2352 = vsub.s32 %v2281, %v2306
        %v2353 = vsub.s32 %v2281, %v2307
        %v2354 = vsub.s32 %v2282, %v2306
        %v2355 = vsub.s32 %v2282, %v2307
        %v2356 = vsub.s32 %v2283, %v2306
        %v2357 = vsub.s32 %v2283, %v2307
        %v2358 = vsub.s32 %v2284, %v2306
        %v2359 = vsub.s32 %v2284, %v2307
        %v2360 = vsub.s32 %v2285, %v2306
        %v2361 = vsub.s32 %v2285, %v2307
        %v2362 = vsub.s32 %v2286, %v2306
        %v2363 = vsub.s32 %v2286, %v2307
        %v2364 = vsub.s32 %v2287, %v2306
        %v2365 = vsub.s32 %v2287, %v2307
        %v2366 = vsub.s32 %v2288, %v2306
        %v2367 = vsub.s32 %v2288, %v2307
        %v2368 = vsub.s32 %v2289, %v2306
        %v2369 = vsub.s32 %v2289, %v2307
        %v2370 = vsub.s32 %v2290, %v2306
        %v2371 = vsub.s32 %v2290, %v2307
        %vm2372 = vcmp.lt.s32.totalorder %v2340, 8
        %vm2373 = vcmp.lt.s32.totalorder %v2341, 8
        %vm2374 = vcmp.lt.s32.totalorder %v2342, 8
        %vm2375 = vcmp.lt.s32.totalorder %v2343, 8
        %vm2376 = vcmp.lt.s32.totalorder %v2344, 8
        %vm2377 = vcmp.lt.s32.totalorder %v2345, 8
        %vm2378 = vcmp.lt.s32.totalorder %v2346, 8
        %vm2379 = vcmp.lt.s32.totalorder %v2347, 8
        %vm2380 = vcmp.lt.s32.totalorder %v2348, 8
        %vm2381 = vcmp.lt.s32.totalorder %v2349, 8
        %vm2382 = vcmp.lt.s32.totalorder %v2350, 8
        %vm2383 = vcmp.lt.s32.totalorder %v2351, 8
        %vm2384 = vcmp.lt.s32.totalorder %v2352, 8
        %vm2385 = vcmp.lt.s32.totalorder %v2353, 8
        %vm2386 = vcmp.lt.s32.totalorder %v2354, 8
        %vm2387 = vcmp.lt.s32.totalorder %v2355, 8
        %vm2388 = vcmp.lt.s32.totalorder %v2356, 8
        %vm2389 = vcmp.lt.s32.totalorder %v2357, 8
        %vm2390 = vcmp.lt.s32.totalorder %v2358, 8
        %vm2391 = vcmp.lt.s32.totalorder %v2359, 8
        %vm2392 = vcmp.lt.s32.totalorder %v2360, 8
        %vm2393 = vcmp.lt.s32.totalorder %v2361, 8
        %vm2394 = vcmp.lt.s32.totalorder %v2362, 8
        %vm2395 = vcmp.lt.s32.totalorder %v2363, 8
        %vm2396 = vcmp.lt.s32.totalorder %v2364, 8
        %vm2397 = vcmp.lt.s32.totalorder %v2365, 8
        %vm2398 = vcmp.lt.s32.totalorder %v2366, 8
        %vm2399 = vcmp.lt.s32.totalorder %v2367, 8
        %vm2400 = vcmp.lt.s32.totalorder %v2368, 8
        %vm2401 = vcmp.lt.s32.totalorder %v2369, 8
        %vm2402 = vcmp.lt.s32.totalorder %v2370, 8
        %vm2403 = vcmp.lt.s32.totalorder %v2371, 8
        %vm2404 = vmand %vm2308, %vm2372
        %vm2405 = vmand %vm2309, %vm2373
        %vm2406 = vmand %vm2310, %vm2374
        %vm2407 = vmand %vm2311, %vm2375
        %vm2408 = vmand %vm2312, %vm2376
        %vm2409 = vmand %vm2313, %vm2377
        %vm2410 = vmand %vm2314, %vm2378
        %vm2411 = vmand %vm2315, %vm2379
        %vm2412 = vmand %vm2316, %vm2380
        %vm2413 = vmand %vm2317, %vm2381
        %vm2414 = vmand %vm2318, %vm2382
        %vm2415 = vmand %vm2319, %vm2383
        %vm2416 = vmand %vm2320, %vm2384
        %vm2417 = vmand %vm2321, %vm2385
        %vm2418 = vmand %vm2322, %vm2386
        %vm2419 = vmand %vm2323, %vm2387
        %vm2420 = vmand %vm2324, %vm2388
        %vm2421 = vmand %vm2325, %vm2389
        %vm2422 = vmand %vm2326, %vm2390
        %vm2423 = vmand %vm2327, %vm2391
        %vm2424 = vmand %vm2328, %vm2392
        %vm2425 = vmand %vm2329, %vm2393
        %vm2426 = vmand %vm2330, %vm2394
        %vm2427 = vmand %vm2331, %vm2395
        %vm2428 = vmand %vm2332, %vm2396
        %vm2429 = vmand %vm2333, %vm2397
        %vm2430 = vmand %vm2334, %vm2398
        %vm2431 = vmand %vm2335, %vm2399
        %vm2432 = vmand %vm2336, %vm2400
        %vm2433 = vmand %vm2337, %vm2401
        %vm2434 = vmand %vm2338, %vm2402
        %vm2435 = vmand %vm2339, %vm2403
        %v2436 = vsel %vm2404, %v2178, -1e+30
        %v2437 = vsel %vm2405, %v2180, -1e+30
        %v2438 = vsel %vm2406, %v2182, -1e+30
        %v2439 = vsel %vm2407, %v2184, -1e+30
        %v2440 = vsel %vm2408, %v2188, -1e+30
        %v2441 = vsel %vm2409, %v2190, -1e+30
        %v2442 = vsel %vm2410, %v2192, -1e+30
        %v2443 = vsel %vm2411, %v2194, -1e+30
        %v2444 = vsel %vm2412, %v2198, -1e+30
        %v2445 = vsel %vm2413, %v2200, -1e+30
        %v2446 = vsel %vm2414, %v2202, -1e+30
        %v2447 = vsel %vm2415, %v2204, -1e+30
        %v2448 = vsel %vm2416, %v2208, -1e+30
        %v2449 = vsel %vm2417, %v2210, -1e+30
        %v2450 = vsel %vm2418, %v2212, -1e+30
        %v2451 = vsel %vm2419, %v2214, -1e+30
        %v2452 = vsel %vm2420, %v2218, -1e+30
        %v2453 = vsel %vm2421, %v2220, -1e+30
        %v2454 = vsel %vm2422, %v2222, -1e+30
        %v2455 = vsel %vm2423, %v2224, -1e+30
        %v2456 = vsel %vm2424, %v2228, -1e+30
        %v2457 = vsel %vm2425, %v2230, -1e+30
        %v2458 = vsel %vm2426, %v2232, -1e+30
        %v2459 = vsel %vm2427, %v2234, -1e+30
        %v2460 = vsel %vm2428, %v2238, -1e+30
        %v2461 = vsel %vm2429, %v2240, -1e+30
        %v2462 = vsel %vm2430, %v2242, -1e+30
        %v2463 = vsel %vm2431, %v2244, -1e+30
        %v2464 = vsel %vm2432, %v2248, -1e+30
        %v2465 = vsel %vm2433, %v2250, -1e+30
        %v2466 = vsel %vm2434, %v2252, -1e+30
        %v2467 = vsel %vm2435, %v2254, -1e+30
        %vm2468 = vcmask 64512
        %v2469 = vsel %vm2468, %v2437, -inf
        %v2470 = vmax.f32 %v2436, %v2469
        %2471 = vmax.xlane.f32.xlu0 %v2470
        %v2472 = vpop.xlane.xlu0 %2471
        %v2473 = vsel %vm2468, %v2439, -inf
        %v2474 = vmax.f32 %v2438, %v2473
        %2475 = vmax.xlane.f32.xlu0 %v2474
        %v2476 = vpop.xlane.xlu0 %2475
        %v2477 = vsel %vm2468, %v2441, -inf
        %v2478 = vmax.f32 %v2440, %v2477
        %2479 = vmax.xlane.f32.xlu0 %v2478
        %v2480 = vpop.xlane.xlu0 %2479
        %v2481 = vsel %vm2468, %v2443, -inf
        %v2482 = vmax.f32 %v2442, %v2481
        %2483 = vmax.xlane.f32.xlu0 %v2482
        %v2484 = vpop.xlane.xlu0 %2483
        %v2485 = vsel %vm2468, %v2445, -inf
        %v2486 = vmax.f32 %v2444, %v2485
        %2487 = vmax.xlane.f32.xlu0 %v2486
        %v2488 = vpop.xlane.xlu0 %2487
        %v2489 = vsel %vm2468, %v2447, -inf
        %v2490 = vmax.f32 %v2446, %v2489
        %2491 = vmax.xlane.f32.xlu0 %v2490
        %v2492 = vpop.xlane.xlu0 %2491
        %v2493 = vsel %vm2468, %v2449, -inf
        %v2494 = vmax.f32 %v2448, %v2493
        %2495 = vmax.xlane.f32.xlu0 %v2494
        %v2496 = vpop.xlane.xlu0 %2495
        %v2497 = vsel %vm2468, %v2451, -inf
        %v2498 = vmax.f32 %v2450, %v2497
        %2499 = vmax.xlane.f32.xlu0 %v2498
        %v2500 = vpop.xlane.xlu0 %2499
        %v2501 = vsel %vm2468, %v2453, -inf
        %v2502 = vmax.f32 %v2452, %v2501
        %2503 = vmax.xlane.f32.xlu0 %v2502
        %v2504 = vpop.xlane.xlu0 %2503
        %v2505 = vsel %vm2468, %v2455, -inf
        %v2506 = vmax.f32 %v2454, %v2505
        %2507 = vmax.xlane.f32.xlu0 %v2506
        %v2508 = vpop.xlane.xlu0 %2507
        %v2509 = vsel %vm2468, %v2457, -inf
        %v2510 = vmax.f32 %v2456, %v2509
        %2511 = vmax.xlane.f32.xlu0 %v2510
        %v2512 = vpop.xlane.xlu0 %2511
        %v2513 = vsel %vm2468, %v2459, -inf
        %v2514 = vmax.f32 %v2458, %v2513
        %2515 = vmax.xlane.f32.xlu0 %v2514
        %v2516 = vpop.xlane.xlu0 %2515
        %v2517 = vsel %vm2468, %v2461, -inf
        %v2518 = vmax.f32 %v2460, %v2517
        %2519 = vmax.xlane.f32.xlu0 %v2518
        %v2520 = vpop.xlane.xlu0 %2519
        %v2521 = vsel %vm2468, %v2463, -inf
        %v2522 = vmax.f32 %v2462, %v2521
        %2523 = vmax.xlane.f32.xlu0 %v2522
        %v2524 = vpop.xlane.xlu0 %2523
        %v2525 = vsel %vm2468, %v2465, -inf
        %v2526 = vmax.f32 %v2464, %v2525
        %2527 = vmax.xlane.f32.xlu0 %v2526
        %v2528 = vpop.xlane.xlu0 %2527
        %v2529 = vsel %vm2468, %v2467, -inf
        %v2530 = vmax.f32 %v2466, %v2529
        %2531 = vmax.xlane.f32.xlu0 %v2530
        %v2532 = vpop.xlane.xlu0 %2531
        %v2533 = vsub.f32 %v2436, %v2472
        %v2534 = vsub.f32 %v2437, %v2472
        %v2535 = vsub.f32 %v2438, %v2476
        %v2536 = vsub.f32 %v2439, %v2476
        %v2537 = vsub.f32 %v2440, %v2480
        %v2538 = vsub.f32 %v2441, %v2480
        %v2539 = vsub.f32 %v2442, %v2484
        %v2540 = vsub.f32 %v2443, %v2484
        %v2541 = vsub.f32 %v2444, %v2488
        %v2542 = vsub.f32 %v2445, %v2488
        %v2543 = vsub.f32 %v2446, %v2492
        %v2544 = vsub.f32 %v2447, %v2492
        %v2545 = vsub.f32 %v2448, %v2496
        %v2546 = vsub.f32 %v2449, %v2496
        %v2547 = vsub.f32 %v2450, %v2500
        %v2548 = vsub.f32 %v2451, %v2500
        %v2549 = vsub.f32 %v2452, %v2504
        %v2550 = vsub.f32 %v2453, %v2504
        %v2551 = vsub.f32 %v2454, %v2508
        %v2552 = vsub.f32 %v2455, %v2508
        %v2553 = vsub.f32 %v2456, %v2512
        %v2554 = vsub.f32 %v2457, %v2512
        %v2555 = vsub.f32 %v2458, %v2516
        %v2556 = vsub.f32 %v2459, %v2516
        %v2557 = vsub.f32 %v2460, %v2520
        %v2558 = vsub.f32 %v2461, %v2520
        %v2559 = vsub.f32 %v2462, %v2524
        %v2560 = vsub.f32 %v2463, %v2524
        %v2561 = vsub.f32 %v2464, %v2528
        %v2562 = vsub.f32 %v2465, %v2528
        %v2563 = vsub.f32 %v2466, %v2532
        %v2564 = vsub.f32 %v2467, %v2532
        %v2565 = vmul.f32 %v2533, 1.442695
        %v2566 = vpow.pop %v2565
        %v2567 = vmul.f32 %v2534, 1.442695
        %v2568 = vpow.pop %v2567
        %v2569 = vmul.f32 %v2535, 1.442695
        %v2570 = vpow.pop %v2569
        %v2571 = vmul.f32 %v2536, 1.442695
        %v2572 = vpow.pop %v2571
        %v2573 = vmul.f32 %v2537, 1.442695
        %v2574 = vpow.pop %v2573
        %v2575 = vmul.f32 %v2538, 1.442695
        %v2576 = vpow.pop %v2575
        %v2577 = vmul.f32 %v2539, 1.442695
        %v2578 = vpow.pop %v2577
        %v2579 = vmul.f32 %v2540, 1.442695
        %v2580 = vpow.pop %v2579
        %v2581 = vmul.f32 %v2541, 1.442695
        %v2582 = vpow.pop %v2581
        %v2583 = vmul.f32 %v2542, 1.442695
        %v2584 = vpow.pop %v2583
        %v2585 = vmul.f32 %v2543, 1.442695
        %v2586 = vpow.pop %v2585
        %v2587 = vmul.f32 %v2544, 1.442695
        %v2588 = vpow.pop %v2587
        %v2589 = vmul.f32 %v2545, 1.442695
        %v2590 = vpow.pop %v2589
        %v2591 = vmul.f32 %v2546, 1.442695
        %v2592 = vpow.pop %v2591
        %v2593 = vmul.f32 %v2547, 1.442695
        %v2594 = vpow.pop %v2593
        %v2595 = vmul.f32 %v2548, 1.442695
        %v2596 = vpow.pop %v2595
        %v2597 = vmul.f32 %v2549, 1.442695
        %v2598 = vpow.pop %v2597
        %v2599 = vmul.f32 %v2550, 1.442695
        %v2600 = vpow.pop %v2599
        %v2601 = vmul.f32 %v2551, 1.442695
        %v2602 = vpow.pop %v2601
        %v2603 = vmul.f32 %v2552, 1.442695
        %v2604 = vpow.pop %v2603
        %v2605 = vmul.f32 %v2553, 1.442695
        %v2606 = vpow.pop %v2605
        %v2607 = vmul.f32 %v2554, 1.442695
        %v2608 = vpow.pop %v2607
        %v2609 = vmul.f32 %v2555, 1.442695
        %v2610 = vpow.pop %v2609
        %v2611 = vmul.f32 %v2556, 1.442695
        %v2612 = vpow.pop %v2611
        %v2613 = vmul.f32 %v2557, 1.442695
        %v2614 = vpow.pop %v2613
        %v2615 = vmul.f32 %v2558, 1.442695
        %v2616 = vpow.pop %v2615
        %v2617 = vmul.f32 %v2559, 1.442695
        %v2618 = vpow.pop %v2617
        %v2619 = vmul.f32 %v2560, 1.442695
        %v2620 = vpow.pop %v2619
        %v2621 = vmul.f32 %v2561, 1.442695
        %v2622 = vpow.pop %v2621
        %v2623 = vmul.f32 %v2562, 1.442695
        %v2624 = vpow.pop %v2623
        %v2625 = vmul.f32 %v2563, 1.442695
        %v2626 = vpow.pop %v2625
        %v2627 = vmul.f32 %v2564, 1.442695
        %v2628 = vpow.pop %v2627
        %v2629 = vsel %vm2468, %v2568, 0.0
        %v2630 = vadd.f32 %v2566, %v2629
        %2631 = vadd.xlane.f32.xlu0 %v2630
        %v2632 = vpop.xlane.xlu0 %2631
        %v2633 = vsel %vm2468, %v2572, 0.0
        %v2634 = vadd.f32 %v2570, %v2633
        %2635 = vadd.xlane.f32.xlu0 %v2634
        %v2636 = vpop.xlane.xlu0 %2635
        %v2637 = vsel %vm2468, %v2576, 0.0
        %v2638 = vadd.f32 %v2574, %v2637
        %2639 = vadd.xlane.f32.xlu0 %v2638
        %v2640 = vpop.xlane.xlu0 %2639
        %v2641 = vsel %vm2468, %v2580, 0.0
        %v2642 = vadd.f32 %v2578, %v2641
        %2643 = vadd.xlane.f32.xlu0 %v2642
        %v2644 = vpop.xlane.xlu0 %2643
        %v2645 = vsel %vm2468, %v2584, 0.0
        %v2646 = vadd.f32 %v2582, %v2645
        %2647 = vadd.xlane.f32.xlu0 %v2646
        %v2648 = vpop.xlane.xlu0 %2647
        %v2649 = vsel %vm2468, %v2588, 0.0
        %v2650 = vadd.f32 %v2586, %v2649
        %2651 = vadd.xlane.f32.xlu0 %v2650
        %v2652 = vpop.xlane.xlu0 %2651
        %v2653 = vsel %vm2468, %v2592, 0.0
        %v2654 = vadd.f32 %v2590, %v2653
        %2655 = vadd.xlane.f32.xlu0 %v2654
        %v2656 = vpop.xlane.xlu0 %2655
        %v2657 = vsel %vm2468, %v2596, 0.0
        %v2658 = vadd.f32 %v2594, %v2657
        %2659 = vadd.xlane.f32.xlu0 %v2658
        %v2660 = vpop.xlane.xlu0 %2659
        %v2661 = vsel %vm2468, %v2600, 0.0
        %v2662 = vadd.f32 %v2598, %v2661
        %2663 = vadd.xlane.f32.xlu0 %v2662
        %v2664 = vpop.xlane.xlu0 %2663
        %v2665 = vsel %vm2468, %v2604, 0.0
        %v2666 = vadd.f32 %v2602, %v2665
        %2667 = vadd.xlane.f32.xlu0 %v2666
        %v2668 = vpop.xlane.xlu0 %2667
        %v2669 = vsel %vm2468, %v2608, 0.0
        %v2670 = vadd.f32 %v2606, %v2669
        %2671 = vadd.xlane.f32.xlu0 %v2670
        %v2672 = vpop.xlane.xlu0 %2671
        %v2673 = vsel %vm2468, %v2612, 0.0
        %v2674 = vadd.f32 %v2610, %v2673
        %2675 = vadd.xlane.f32.xlu0 %v2674
        %v2676 = vpop.xlane.xlu0 %2675
        %v2677 = vsel %vm2468, %v2616, 0.0
        %v2678 = vadd.f32 %v2614, %v2677
        %2679 = vadd.xlane.f32.xlu0 %v2678
        %v2680 = vpop.xlane.xlu0 %2679
        %v2681 = vsel %vm2468, %v2620, 0.0
        %v2682 = vadd.f32 %v2618, %v2681
        %2683 = vadd.xlane.f32.xlu0 %v2682
        %v2684 = vpop.xlane.xlu0 %2683
        %v2685 = vsel %vm2468, %v2624, 0.0
        %v2686 = vadd.f32 %v2622, %v2685
        %2687 = vadd.xlane.f32.xlu0 %v2686
        %v2688 = vpop.xlane.xlu0 %2687
        %v2689 = vsel %vm2468, %v2628, 0.0
        %v2690 = vadd.f32 %v2626, %v2689
        %2691 = vadd.xlane.f32.xlu0 %v2690
        %v2692 = vpop.xlane.xlu0 %2691
        %v2693 = vrcp.pop %v2632
        %v2694 = vrcp.pop %v2636
        %v2695 = vrcp.pop %v2640
        %v2696 = vrcp.pop %v2644
        %v2697 = vrcp.pop %v2648
        %v2698 = vrcp.pop %v2652
        %v2699 = vrcp.pop %v2656
        %v2700 = vrcp.pop %v2660
        %v2701 = vrcp.pop %v2664
        %v2702 = vrcp.pop %v2668
        %v2703 = vrcp.pop %v2672
        %v2704 = vrcp.pop %v2676
        %v2705 = vrcp.pop %v2680
        %v2706 = vrcp.pop %v2684
        %v2707 = vrcp.pop %v2688
        %v2708 = vrcp.pop %v2692
        %v2709 = vmul.f32 %v2566, %v2693
        %v2710 = vmul.f32 %v2568, %v2693
        %v2711 = vmul.f32 %v2570, %v2694
        %v2712 = vmul.f32 %v2572, %v2694
        %v2713 = vmul.f32 %v2574, %v2695
        %v2714 = vmul.f32 %v2576, %v2695
        %v2715 = vmul.f32 %v2578, %v2696
        %v2716 = vmul.f32 %v2580, %v2696
        %v2717 = vmul.f32 %v2582, %v2697
        %v2718 = vmul.f32 %v2584, %v2697
        %v2719 = vmul.f32 %v2586, %v2698
        %v2720 = vmul.f32 %v2588, %v2698
        %v2721 = vmul.f32 %v2590, %v2699
        %v2722 = vmul.f32 %v2592, %v2699
        %v2723 = vmul.f32 %v2594, %v2700
        %v2724 = vmul.f32 %v2596, %v2700
        %v2725 = vmul.f32 %v2598, %v2701
        %v2726 = vmul.f32 %v2600, %v2701
        %v2727 = vmul.f32 %v2602, %v2702
        %v2728 = vmul.f32 %v2604, %v2702
        %v2729 = vmul.f32 %v2606, %v2703
        %v2730 = vmul.f32 %v2608, %v2703
        %v2731 = vmul.f32 %v2610, %v2704
        %v2732 = vmul.f32 %v2612, %v2704
        %v2733 = vmul.f32 %v2614, %v2705
        %v2734 = vmul.f32 %v2616, %v2705
        %v2735 = vmul.f32 %v2618, %v2706
        %v2736 = vmul.f32 %v2620, %v2706
        %v2737 = vmul.f32 %v2622, %v2707
        %v2738 = vmul.f32 %v2624, %v2707
        %v2739 = vmul.f32 %v2626, %v2708
        %v2740 = vmul.f32 %v2628, %v2708
        %v2741 = vpack.c.bf16 %v2711, %v2709
        %v2742 = vpack.c.bf16 %v2712, %v2710
        %v2743 = vpack.c.bf16 %v2715, %v2713
        %v2744 = vpack.c.bf16 %v2716, %v2714
        %v2745 = vpack.c.bf16 %v2719, %v2717
        %v2746 = vpack.c.bf16 %v2720, %v2718
        %v2747 = vpack.c.bf16 %v2723, %v2721
        %v2748 = vpack.c.bf16 %v2724, %v2722
        %v2749 = vpack.c.bf16 %v2727, %v2725
        %v2750 = vpack.c.bf16 %v2728, %v2726
        %v2751 = vpack.c.bf16 %v2731, %v2729
        %v2752 = vpack.c.bf16 %v2732, %v2730
        %v2753 = vpack.c.bf16 %v2735, %v2733
        %v2754 = vpack.c.bf16 %v2736, %v2734
        %v2755 = vpack.c.bf16 %v2739, %v2737
        %v2756 = vpack.c.bf16 %v2740, %v2738
        %v2758 = vsel %vm2468, %v2742, 0
        %v2761 = vsel %vm2468, %v2744, 0
        %v2764 = vsel %vm2468, %v2746, 0
        %v2767 = vsel %vm2468, %v2748, 0
        %v2770 = vsel %vm2468, %v2750, 0
        %v2773 = vsel %vm2468, %v2752, 0
        %v2776 = vsel %vm2468, %v2754, 0
        %v2779 = vsel %vm2468, %v2756, 0
        %vm2781 = vcmask 1043456
        %v2783 = vsel %vm2781, %v2118, 0
        %2785 = vmatprep.subr.bf16.mxu0 0
        %2786 = vmatpush1.bf16.msra.mxu0 %v2110
        %2787 = vmatprep.subr.bf16.mxu0 0
        %2788 = vmatpush1.bf16.msra.mxu0 %v2111
        %2789 = vmatprep.subr.bf16.mxu0 0
        %2790 = vmatpush1.bf16.msra.mxu0 %v2112
        %2791 = vmatprep.subr.bf16.mxu0 0
        %2792 = vmatpush1.bf16.msra.mxu0 %v2113
        %2793 = vmatprep.subr.bf16.mxu0 0
        %2794 = vmatpush1.bf16.msra.mxu0 %v2114
        %2795 = vmatprep.subr.bf16.mxu0 0
        %2796 = vmatpush1.bf16.msra.mxu0 %v2115
        %2797 = vmatprep.subr.bf16.mxu0 0
        %2798 = vmatpush1.bf16.msra.mxu0 %v2116
        %2799 = vmatprep.subr.bf16.mxu0 0
        %2800 = vmatpush1.bf16.msra.mxu0 %v2117
        %2801 = vmatprep.subr.bf16.mxu0 0
        %2802 = vmatpush1.bf16.msra.mxu0 %v2783
        %2803 = vmatprep.subr.bf16.mxu0 0
        %2804 = vmatpush1.bf16.msra.mxu0 0
        %2805 = vmatprep.subr.bf16.mxu0 0
        %2806 = vmatpush1.bf16.msra.mxu0 0
        %2807 = vmatprep.subr.bf16.mxu0 0
        %2808 = vmatpush1.bf16.msra.mxu0 0
        %2809 = vmatprep.subr.bf16.mxu0 0
        %2810 = vmatpush1.bf16.msra.mxu0 0
        %2811 = vmatprep.subr.bf16.mxu0 0
        %2812 = vmatpush1.bf16.msra.mxu0 0
        %2813 = vmatprep.subr.bf16.mxu0 0
        %2814 = vmatpush1.bf16.msra.mxu0 0
        %2815 = vmatprep.subr.bf16.mxu0 0
        %2816 = vmatpush1.bf16.msra.mxu0 0
        %2817 = vmatprep.mubr.bf16.mxu0 %v2758
        %2818 = vmatmul.mubr.bf16.gmra.mrb[0].mxu0 %v2741
        %v2819 = vpop.f32.mrb[0].mxu0
        %v2820 = vadd.f32 0.0, %v2819
        %v2821 = vpop.f32.mrb[0].mxu0
        %v2822 = vpop.f32.mrb[0].mxu0
        %v2823 = vadd.f32 0.0, %v2822
        %v2824 = vpop.f32.mrb[0].mxu0
        %2825 = vmatprep.mubr.bf16.mxu0 %v2761
        %2826 = vmatmul.mubr.bf16.gmra.mrb[0].mxu0 %v2743
        %v2827 = vpop.f32.mrb[0].mxu0
        %v2828 = vadd.f32 0.0, %v2827
        %v2829 = vpop.f32.mrb[0].mxu0
        %v2830 = vpop.f32.mrb[0].mxu0
        %v2831 = vadd.f32 0.0, %v2830
        %v2832 = vpop.f32.mrb[0].mxu0
        %2833 = vmatprep.mubr.bf16.mxu0 %v2764
        %2834 = vmatmul.mubr.bf16.gmra.mrb[0].mxu0 %v2745
        %v2835 = vpop.f32.mrb[0].mxu0
        %v2836 = vadd.f32 0.0, %v2835
        %v2837 = vpop.f32.mrb[0].mxu0
        %v2838 = vpop.f32.mrb[0].mxu0
        %v2839 = vadd.f32 0.0, %v2838
        %v2840 = vpop.f32.mrb[0].mxu0
        %2841 = vmatprep.mubr.bf16.mxu0 %v2767
        %2842 = vmatmul.mubr.bf16.gmra.mrb[0].mxu0 %v2747
        %v2843 = vpop.f32.mrb[0].mxu0
        %v2844 = vadd.f32 0.0, %v2843
        %v2845 = vpop.f32.mrb[0].mxu0
        %v2846 = vpop.f32.mrb[0].mxu0
        %v2847 = vadd.f32 0.0, %v2846
        %v2848 = vpop.f32.mrb[0].mxu0
        %2849 = vmatprep.mubr.bf16.mxu0 %v2770
        %2850 = vmatmul.mubr.bf16.gmra.mrb[0].mxu0 %v2749
        %v2851 = vpop.f32.mrb[0].mxu0
        %v2852 = vadd.f32 0.0, %v2851
        %v2853 = vpop.f32.mrb[0].mxu0
        %v2854 = vpop.f32.mrb[0].mxu0
        %v2855 = vadd.f32 0.0, %v2854
        %v2856 = vpop.f32.mrb[0].mxu0
        %2857 = vmatprep.mubr.bf16.mxu0 %v2773
        %2858 = vmatmul.mubr.bf16.gmra.mrb[0].mxu0 %v2751
        %v2859 = vpop.f32.mrb[0].mxu0
        %v2860 = vadd.f32 0.0, %v2859
        %v2861 = vpop.f32.mrb[0].mxu0
        %v2862 = vpop.f32.mrb[0].mxu0
        %v2863 = vadd.f32 0.0, %v2862
        %v2864 = vpop.f32.mrb[0].mxu0
        %2865 = vmatprep.mubr.bf16.mxu0 %v2776
        %2866 = vmatmul.mubr.bf16.gmra.mrb[0].mxu0 %v2753
        %v2867 = vpop.f32.mrb[0].mxu0
        %v2868 = vadd.f32 0.0, %v2867
        %v2869 = vpop.f32.mrb[0].mxu0
        %v2870 = vpop.f32.mrb[0].mxu0
        %v2871 = vadd.f32 0.0, %v2870
        %v2872 = vpop.f32.mrb[0].mxu0
        %2873 = vmatprep.mubr.bf16.mxu0 %v2779
        %2874 = vmatmul.mubr.bf16.gmra.mrb[0].mxu0 %v2755
        %v2875 = vpop.f32.mrb[0].mxu0
        %v2876 = vadd.f32 0.0, %v2875
        %v2877 = vpop.f32.mrb[0].mxu0
        %v2878 = vpop.f32.mrb[0].mxu0
        %v2879 = vadd.f32 0.0, %v2878
        %v2880 = vpop.f32.mrb[0].mxu0
        %2881 = vdwg.mxu0
        %v2882 = vpack.c.bf16 %v2823, %v2820
        %v2883 = vpack.c.bf16 %v2831, %v2828
        %v2884 = vpack.c.bf16 %v2839, %v2836
        %v2885 = vpack.c.bf16 %v2847, %v2844
        %v2886 = vpack.c.bf16 %v2855, %v2852
        %v2887 = vpack.c.bf16 %v2863, %v2860
        %v2888 = vpack.c.bf16 %v2871, %v2868
        %v2889 = vpack.c.bf16 %v2879, %v2876
        %v2890 = vld [vmem:[#allocation11] sm:$0xf]
        %v2891 = vld [vmem:[#allocation11 + $0x4] sm:$0xf]
        %v2892 = vld [vmem:[#allocation11 + $0x8] sm:$0xf]
        %v2893 = vld [vmem:[#allocation11 + $0xc] sm:$0xf]
        %v2894 = vld [vmem:[#allocation11 + $0x10] sm:$0xf]
        %v2895 = vld [vmem:[#allocation11 + $0x14] sm:$0xf]
        %v2896 = vld [vmem:[#allocation11 + $0x18] sm:$0xf]
        %v2897 = vld [vmem:[#allocation11 + $0x1c] sm:$0xf]
        %v2898 = vld [vmem:[#allocation11 + $0x20] sm:$0xf]
        %v2899 = vld [vmem:[#allocation11 + $0x24] sm:$0xf]
        %v2900 = vld [vmem:[#allocation11 + $0x28] sm:$0xf]
        %v2901 = vld [vmem:[#allocation11 + $0x2c] sm:$0xf]
        %v2902 = vld [vmem:[#allocation11 + $0x30] sm:$0xf]
        %v2903 = vld [vmem:[#allocation11 + $0x34] sm:$0xf]
        %v2904 = vld [vmem:[#allocation11 + $0x38] sm:$0xf]
        %v2905 = vld [vmem:[#allocation11 + $0x3c] sm:$0xf]
        %v2922 = vunpack.c.l.b16 %v2890
        %v2923 = vunpack.c.l.b16 %v2891
        %v2924 = vunpack.c.l.b16 %v2892
        %v2925 = vunpack.c.l.b16 %v2893
        %v2926 = vunpack.c.l.b16 %v2894
        %v2927 = vunpack.c.l.b16 %v2895
        %v2928 = vunpack.c.l.b16 %v2896
        %v2929 = vunpack.c.l.b16 %v2897
        %v2930 = vunpack.c.l.b16 %v2898
        %v2931 = vunpack.c.l.b16 %v2899
        %v2932 = vunpack.c.l.b16 %v2900
        %v2933 = vunpack.c.l.b16 %v2901
        %v2934 = vunpack.c.l.b16 %v2902
        %v2935 = vunpack.c.l.b16 %v2903
        %v2936 = vunpack.c.l.b16 %v2904
        %v2937 = vunpack.c.l.b16 %v2905
        %v2938 = vpack.c.b16 %v2923, %v2922
        %v2939 = vpack.c.b16 %v2925, %v2924
        %v2940 = vpack.c.b16 %v2927, %v2926
        %v2941 = vpack.c.b16 %v2929, %v2928
        %v2942 = vpack.c.b16 %v2931, %v2930
        %v2943 = vpack.c.b16 %v2933, %v2932
        %v2944 = vpack.c.b16 %v2935, %v2934
        %v2945 = vpack.c.b16 %v2937, %v2936
        %2954 = vmatprep.subr.bf16.mxu0 0
        %2955 = vmatpush1.bf16.msra.mxu0 %v2938
        %2956 = vmatprep.subr.bf16.mxu0 0
        %2957 = vmatpush1.bf16.msra.mxu0 %v2939
        %2958 = vmatprep.subr.bf16.mxu0 0
        %2959 = vmatpush1.bf16.msra.mxu0 %v2940
        %2960 = vmatprep.subr.bf16.mxu0 0
        %2961 = vmatpush1.bf16.msra.mxu0 %v2941
        %2962 = vmatprep.subr.bf16.mxu0 0
        %2963 = vmatpush1.bf16.msra.mxu0 %v2942
        %2964 = vmatprep.subr.bf16.mxu0 0
        %2965 = vmatpush1.bf16.msra.mxu0 %v2943
        %2966 = vmatprep.subr.bf16.mxu0 0
        %2967 = vmatpush1.bf16.msra.mxu0 %v2944
        %2968 = vmatprep.subr.bf16.mxu0 0
        %2969 = vmatpush1.bf16.msra.mxu0 %v2945
        %2970 = vmatprep.subr.bf16.mxu0 0
        %2971 = vmatpush1.bf16.msra.mxu0 0
        %2972 = vmatprep.subr.bf16.mxu0 0
        %2973 = vmatpush1.bf16.msra.mxu0 0
        %2974 = vmatprep.subr.bf16.mxu0 0
        %2975 = vmatpush1.bf16.msra.mxu0 0
        %2976 = vmatprep.subr.bf16.mxu0 0
        %2977 = vmatpush1.bf16.msra.mxu0 0
        %2978 = vmatprep.subr.bf16.mxu0 0
        %2979 = vmatpush1.bf16.msra.mxu0 0
        %2980 = vmatprep.subr.bf16.mxu0 0
        %2981 = vmatpush1.bf16.msra.mxu0 0
        %2982 = vmatprep.subr.bf16.mxu0 0
        %2983 = vmatpush1.bf16.msra.mxu0 0
        %2984 = vmatprep.subr.bf16.mxu0 0
        %2985 = vmatpush1.bf16.msra.mxu0 0
        %2986 = vmatprep.mubr.bf16.mxu0 0
        %2987 = vmatmul.mubr.bf16.gmra.mrb[0].mxu0 %v2882
        %v2988 = vpop.f32.mrb[0].mxu0
        %v2989 = vadd.f32 0.0, %v2988
        %v2990 = vpop.f32.mrb[0].mxu0
        %v2991 = vpop.f32.mrb[0].mxu0
        %v2992 = vadd.f32 0.0, %v2991
        %v2993 = vpop.f32.mrb[0].mxu0
        %2994 = vmatprep.mubr.bf16.mxu0 0
        %2995 = vmatmul.mubr.bf16.gmra.mrb[0].mxu0 %v2883
        %v2996 = vpop.f32.mrb[0].mxu0
        %v2997 = vadd.f32 0.0, %v2996
        %v2998 = vpop.f32.mrb[0].mxu0
        %v2999 = vpop.f32.mrb[0].mxu0
        %v3000 = vadd.f32 0.0, %v2999
        %v3001 = vpop.f32.mrb[0].mxu0
        %3002 = vmatprep.mubr.bf16.mxu0 0
        %3003 = vmatmul.mubr.bf16.gmra.mrb[0].mxu0 %v2884
        %v3004 = vpop.f32.mrb[0].mxu0
        %v3005 = vadd.f32 0.0, %v3004
        %v3006 = vpop.f32.mrb[0].mxu0
        %v3007 = vpop.f32.mrb[0].mxu0
        %v3008 = vadd.f32 0.0, %v3007
        %v3009 = vpop.f32.mrb[0].mxu0
        %3010 = vmatprep.mubr.bf16.mxu0 0
        %3011 = vmatmul.mubr.bf16.gmra.mrb[0].mxu0 %v2885
        %v3012 = vpop.f32.mrb[0].mxu0
        %v3013 = vadd.f32 0.0, %v3012
        %v3014 = vpop.f32.mrb[0].mxu0
        %v3015 = vpop.f32.mrb[0].mxu0
        %v3016 = vadd.f32 0.0, %v3015
        %v3017 = vpop.f32.mrb[0].mxu0
        %3018 = vmatprep.mubr.bf16.mxu0 0
        %3019 = vmatmul.mubr.bf16.gmra.mrb[0].mxu0 %v2886
        %v3020 = vpop.f32.mrb[0].mxu0
        %v3021 = vadd.f32 0.0, %v3020
        %v3022 = vpop.f32.mrb[0].mxu0
        %v3023 = vpop.f32.mrb[0].mxu0
        %v3024 = vadd.f32 0.0, %v3023
        %v3025 = vpop.f32.mrb[0].mxu0
        %3026 = vmatprep.mubr.bf16.mxu0 0
        %3027 = vmatmul.mubr.bf16.gmra.mrb[0].mxu0 %v2887
        %v3028 = vpop.f32.mrb[0].mxu0
        %v3029 = vadd.f32 0.0, %v3028
        %v3030 = vpop.f32.mrb[0].mxu0
        %v3031 = vpop.f32.mrb[0].mxu0
        %v3032 = vadd.f32 0.0, %v3031
        %v3033 = vpop.f32.mrb[0].mxu0
        %3034 = vmatprep.mubr.bf16.mxu0 0
        %3035 = vmatmul.mubr.bf16.gmra.mrb[0].mxu0 %v2888
        %v3036 = vpop.f32.mrb[0].mxu0
        %v3037 = vadd.f32 0.0, %v3036
        %v3038 = vpop.f32.mrb[0].mxu0
        %v3039 = vpop.f32.mrb[0].mxu0
        %v3040 = vadd.f32 0.0, %v3039
        %v3041 = vpop.f32.mrb[0].mxu0
        %3042 = vmatprep.mubr.bf16.mxu0 0
        %3043 = vmatmul.mubr.bf16.gmra.mrb[0].mxu0 %v2889
        %v3044 = vpop.f32.mrb[0].mxu0
        %v3045 = vadd.f32 0.0, %v3044
        %v3046 = vpop.f32.mrb[0].mxu0
        %v3047 = vpop.f32.mrb[0].mxu0
        %v3048 = vadd.f32 0.0, %v3047
        %v3049 = vpop.f32.mrb[0].mxu0
        %3050 = vdwg.mxu0
        %v3051 = vadd.f32 %v1257, %v2989
        %v3052 = vadd.f32 %v1258, %v2992
        %v3053 = vadd.f32 %v1259, %v2997
        %v3054 = vadd.f32 %v1260, %v3000
        %v3055 = vadd.f32 %v1261, %v3005
        %v3056 = vadd.f32 %v1262, %v3008
        %v3057 = vadd.f32 %v1263, %v3013
        %v3058 = vadd.f32 %v1264, %v3016
        %v3059 = vadd.f32 %v1265, %v3021
        %v3060 = vadd.f32 %v1266, %v3024
        %v3061 = vadd.f32 %v1267, %v3029
        %v3062 = vadd.f32 %v1268, %v3032
        %v3063 = vadd.f32 %v1269, %v3037
        %v3064 = vadd.f32 %v1270, %v3040
        %v3065 = vadd.f32 %v1271, %v3045
        %v3066 = vadd.f32 %v1272, %v3048
        %v3067 = vld [vmem:[%s4] sm:$0x1]
        %v3068 = vmul.f32 %v3051, %v3051
        %v3069 = vmul.f32 %v3052, %v3052
        %v3070 = vmul.f32 %v3053, %v3053
        %v3071 = vmul.f32 %v3054, %v3054
        %v3072 = vmul.f32 %v3055, %v3055
        %v3073 = vmul.f32 %v3056, %v3056
        %v3074 = vmul.f32 %v3057, %v3057
        %v3075 = vmul.f32 %v3058, %v3058
        %v3076 = vmul.f32 %v3059, %v3059
        %v3077 = vmul.f32 %v3060, %v3060
        %v3078 = vmul.f32 %v3061, %v3061
        %v3079 = vmul.f32 %v3062, %v3062
        %v3080 = vmul.f32 %v3063, %v3063
        %v3081 = vmul.f32 %v3064, %v3064
        %v3082 = vmul.f32 %v3065, %v3065
        %v3083 = vmul.f32 %v3066, %v3066
        %3084 = vadd.xlane.f32.xlu0 %v3068
        %v3085 = vpop.xlane.xlu0 %3084
        %3086 = vadd.xlane.f32.xlu0 %v3069
        %v3087 = vpop.xlane.xlu0 %3086
        %3088 = vadd.xlane.f32.xlu0 %v3070
        %v3089 = vpop.xlane.xlu0 %3088
        %3090 = vadd.xlane.f32.xlu0 %v3071
        %v3091 = vpop.xlane.xlu0 %3090
        %3092 = vadd.xlane.f32.xlu0 %v3072
        %v3093 = vpop.xlane.xlu0 %3092
        %3094 = vadd.xlane.f32.xlu0 %v3073
        %v3095 = vpop.xlane.xlu0 %3094
        %3096 = vadd.xlane.f32.xlu0 %v3074
        %v3097 = vpop.xlane.xlu0 %3096
        %3098 = vadd.xlane.f32.xlu0 %v3075
        %v3099 = vpop.xlane.xlu0 %3098
        %3100 = vadd.xlane.f32.xlu0 %v3076
        %v3101 = vpop.xlane.xlu0 %3100
        %3102 = vadd.xlane.f32.xlu0 %v3077
        %v3103 = vpop.xlane.xlu0 %3102
        %3104 = vadd.xlane.f32.xlu0 %v3078
        %v3105 = vpop.xlane.xlu0 %3104
        %3106 = vadd.xlane.f32.xlu0 %v3079
        %v3107 = vpop.xlane.xlu0 %3106
        %3108 = vadd.xlane.f32.xlu0 %v3080
        %v3109 = vpop.xlane.xlu0 %3108
        %3110 = vadd.xlane.f32.xlu0 %v3081
        %v3111 = vpop.xlane.xlu0 %3110
        %3112 = vadd.xlane.f32.xlu0 %v3082
        %v3113 = vpop.xlane.xlu0 %3112
        %3114 = vadd.xlane.f32.xlu0 %v3083
        %v3115 = vpop.xlane.xlu0 %3114
        %v3116 = vmul.f32 %v3085, %v720
        %v3117 = vmul.f32 %v3087, %v720
        %v3118 = vmul.f32 %v3089, %v720
        %v3119 = vmul.f32 %v3091, %v720
        %v3120 = vmul.f32 %v3093, %v720
        %v3121 = vmul.f32 %v3095, %v720
        %v3122 = vmul.f32 %v3097, %v720
        %v3123 = vmul.f32 %v3099, %v720
        %v3124 = vmul.f32 %v3101, %v720
        %v3125 = vmul.f32 %v3103, %v720
        %v3126 = vmul.f32 %v3105, %v720
        %v3127 = vmul.f32 %v3107, %v720
        %v3128 = vmul.f32 %v3109, %v720
        %v3129 = vmul.f32 %v3111, %v720
        %v3130 = vmul.f32 %v3113, %v720
        %v3131 = vmul.f32 %v3115, %v720
        %v3132 = vadd.f32 %v3116, 1e-06
        %v3133 = vadd.f32 %v3117, 1e-06
        %v3134 = vadd.f32 %v3118, 1e-06
        %v3135 = vadd.f32 %v3119, 1e-06
        %v3136 = vadd.f32 %v3120, 1e-06
        %v3137 = vadd.f32 %v3121, 1e-06
        %v3138 = vadd.f32 %v3122, 1e-06
        %v3139 = vadd.f32 %v3123, 1e-06
        %v3140 = vadd.f32 %v3124, 1e-06
        %v3141 = vadd.f32 %v3125, 1e-06
        %v3142 = vadd.f32 %v3126, 1e-06
        %v3143 = vadd.f32 %v3127, 1e-06
        %v3144 = vadd.f32 %v3128, 1e-06
        %v3145 = vadd.f32 %v3129, 1e-06
        %v3146 = vadd.f32 %v3130, 1e-06
        %v3147 = vadd.f32 %v3131, 1e-06
        %v3148 = vrsqrt.pop %v3132
        %v3149 = vrsqrt.pop %v3133
        %v3150 = vrsqrt.pop %v3134
        %v3151 = vrsqrt.pop %v3135
        %v3152 = vrsqrt.pop %v3136
        %v3153 = vrsqrt.pop %v3137
        %v3154 = vrsqrt.pop %v3138
        %v3155 = vrsqrt.pop %v3139
        %v3156 = vrsqrt.pop %v3140
        %v3157 = vrsqrt.pop %v3141
        %v3158 = vrsqrt.pop %v3142
        %v3159 = vrsqrt.pop %v3143
        %v3160 = vrsqrt.pop %v3144
        %v3161 = vrsqrt.pop %v3145
        %v3162 = vrsqrt.pop %v3146
        %v3163 = vrsqrt.pop %v3147
        %v3164 = vmul.f32 %v3051, %v3148
        %v3165 = vmul.f32 %v3052, %v3149
        %v3166 = vmul.f32 %v3053, %v3150
        %v3167 = vmul.f32 %v3054, %v3151
        %v3168 = vmul.f32 %v3055, %v3152
        %v3169 = vmul.f32 %v3056, %v3153
        %v3170 = vmul.f32 %v3057, %v3154
        %v3171 = vmul.f32 %v3058, %v3155
        %v3172 = vmul.f32 %v3059, %v3156
        %v3173 = vmul.f32 %v3060, %v3157
        %v3174 = vmul.f32 %v3061, %v3158
        %v3175 = vmul.f32 %v3062, %v3159
        %v3176 = vmul.f32 %v3063, %v3160
        %v3177 = vmul.f32 %v3064, %v3161
        %v3178 = vmul.f32 %v3065, %v3162
        %v3179 = vmul.f32 %v3066, %v3163
        %v3181 = vlaneseq
        %v3182 = vshrl.u32 %v3181, 7
        %v3183 = vsub.s32 0, %v3182
        %v3184 = vrot.slane %v3067, %v3183
        %v3186 = vmul.f32 %v3164, %v3184
        %v3187 = vmul.f32 %v3165, %v3184
        %v3188 = vmul.f32 %v3166, %v3184
        %v3189 = vmul.f32 %v3167, %v3184
        %v3190 = vmul.f32 %v3168, %v3184
        %v3191 = vmul.f32 %v3169, %v3184
        %v3192 = vmul.f32 %v3170, %v3184
        %v3193 = vmul.f32 %v3171, %v3184
        %v3194 = vmul.f32 %v3172, %v3184
        %v3195 = vmul.f32 %v3173, %v3184
        %v3196 = vmul.f32 %v3174, %v3184
        %v3197 = vmul.f32 %v3175, %v3184
        %v3198 = vmul.f32 %v3176, %v3184
        %v3199 = vmul.f32 %v3177, %v3184
        %v3200 = vmul.f32 %v3178, %v3184
        %v3201 = vmul.f32 %v3179, %v3184
        %v3202 = vpack.c.bf16 %v3187, %v3186
        %v3203 = vpack.c.bf16 %v3189, %v3188
        %v3204 = vpack.c.bf16 %v3191, %v3190
        %v3205 = vpack.c.bf16 %v3193, %v3192
        %v3206 = vpack.c.bf16 %v3195, %v3194
        %v3207 = vpack.c.bf16 %v3197, %v3196
        %v3208 = vpack.c.bf16 %v3199, %v3198
        %v3209 = vpack.c.bf16 %v3201, %v3200
        %v3210 = vld [vmem:[#allocation13] sm:$0xff]
        %v3211 = vld [vmem:[#allocation13 + $0x8] sm:$0xff]
        %v3212 = vld [vmem:[#allocation13 + $0x10] sm:$0xff]
        %v3213 = vld [vmem:[#allocation13 + $0x18] sm:$0xff]
        %v3214 = vld [vmem:[#allocation13 + $0x20] sm:$0xff]
        %v3215 = vld [vmem:[#allocation13 + $0x28] sm:$0xff]
        %v3216 = vld [vmem:[#allocation13 + $0x30] sm:$0xff]
        %v3217 = vld [vmem:[#allocation13 + $0x38] sm:$0xff]
        %v3218 = vld [vmem:[#allocation13 + $0x40] sm:$0xff]
        %v3219 = vld [vmem:[#allocation13 + $0x48] sm:$0xff]
        %v3220 = vld [vmem:[#allocation13 + $0x50] sm:$0xff]
        %v3221 = vld [vmem:[#allocation13 + $0x58] sm:$0xff]
        %v3222 = vld [vmem:[#allocation13 + $0x60] sm:$0xff]
        %v3223 = vld [vmem:[#allocation13 + $0x68] sm:$0xff]
        %v3224 = vld [vmem:[#allocation13 + $0x70] sm:$0xff]
        %v3225 = vld [vmem:[#allocation13 + $0x78] sm:$0xff]
        %v3226 = vld [vmem:[#allocation13 + $0x80] sm:$0xff]
        %v3227 = vld [vmem:[#allocation13 + $0x88] sm:$0xff]
        %v3228 = vld [vmem:[#allocation13 + $0x90] sm:$0xff]
        %v3229 = vld [vmem:[#allocation13 + $0x98] sm:$0xff]
        %v3230 = vld [vmem:[#allocation13 + $0xa0] sm:$0xff]
        %v3231 = vld [vmem:[#allocation13 + $0xa8] sm:$0xff]
        %v3232 = vld [vmem:[#allocation13 + $0xb0] sm:$0xff]
        %v3233 = vld [vmem:[#allocation13 + $0xb8] sm:$0xff]
        %v3234 = vld [vmem:[#allocation13 + $0xc0] sm:$0xff]
        %v3235 = vld [vmem:[#allocation13 + $0xc8] sm:$0xff]
        %v3236 = vld [vmem:[#allocation13 + $0xd0] sm:$0xff]
        %v3237 = vld [vmem:[#allocation13 + $0xd8] sm:$0xff]
        %v3238 = vld [vmem:[#allocation13 + $0xe0] sm:$0xff]
        %v3239 = vld [vmem:[#allocation13 + $0xe8] sm:$0xff]
        %v3240 = vld [vmem:[#allocation13 + $0xf0] sm:$0xff]
        %v3241 = vld [vmem:[#allocation13 + $0xf8] sm:$0xff]
        %v3274 = vunpack.c.l.b16 %v3210
        %v3275 = vunpack.c.h.b16 %v3210
        %v3276 = vunpack.c.l.b16 %v3211
        %v3277 = vunpack.c.h.b16 %v3211
        %v3278 = vunpack.c.l.b16 %v3212
        %v3279 = vunpack.c.h.b16 %v3212
        %v3280 = vunpack.c.l.b16 %v3213
        %v3281 = vunpack.c.h.b16 %v3213
        %v3282 = vunpack.c.l.b16 %v3214
        %v3283 = vunpack.c.h.b16 %v3214
        %v3284 = vunpack.c.l.b16 %v3215
        %v3285 = vunpack.c.h.b16 %v3215
        %v3286 = vunpack.c.l.b16 %v3216
        %v3287 = vunpack.c.h.b16 %v3216
        %v3288 = vunpack.c.l.b16 %v3217
        %v3289 = vunpack.c.h.b16 %v3217
        %v3290 = vunpack.c.l.b16 %v3218
        %v3291 = vunpack.c.h.b16 %v3218
        %v3292 = vunpack.c.l.b16 %v3219
        %v3293 = vunpack.c.h.b16 %v3219
        %v3294 = vunpack.c.l.b16 %v3220
        %v3295 = vunpack.c.h.b16 %v3220
        %v3296 = vunpack.c.l.b16 %v3221
        %v3297 = vunpack.c.h.b16 %v3221
        %v3298 = vunpack.c.l.b16 %v3222
        %v3299 = vunpack.c.h.b16 %v3222
        %v3300 = vunpack.c.l.b16 %v3223
        %v3301 = vunpack.c.h.b16 %v3223
        %v3302 = vunpack.c.l.b16 %v3224
        %v3303 = vunpack.c.h.b16 %v3224
        %v3304 = vunpack.c.l.b16 %v3225
        %v3305 = vunpack.c.h.b16 %v3225
        %v3306 = vunpack.c.l.b16 %v3226
        %v3307 = vunpack.c.h.b16 %v3226
        %v3308 = vunpack.c.l.b16 %v3227
        %v3309 = vunpack.c.h.b16 %v3227
        %v3310 = vunpack.c.l.b16 %v3228
        %v3311 = vunpack.c.h.b16 %v3228
        %v3312 = vunpack.c.l.b16 %v3229
        %v3313 = vunpack.c.h.b16 %v3229
        %v3314 = vunpack.c.l.b16 %v3230
        %v3315 = vunpack.c.h.b16 %v3230
        %v3316 = vunpack.c.l.b16 %v3231
        %v3317 = vunpack.c.h.b16 %v3231
        %v3318 = vunpack.c.l.b16 %v3232
        %v3319 = vunpack.c.h.b16 %v3232
        %v3320 = vunpack.c.l.b16 %v3233
        %v3321 = vunpack.c.h.b16 %v3233
        %v3322 = vunpack.c.l.b16 %v3234
        %v3323 = vunpack.c.h.b16 %v3234
        %v3324 = vunpack.c.l.b16 %v3235
        %v3325 = vunpack.c.h.b16 %v3235
        %v3326 = vunpack.c.l.b16 %v3236
        %v3327 = vunpack.c.h.b16 %v3236
        %v3328 = vunpack.c.l.b16 %v3237
        %v3329 = vunpack.c.h.b16 %v3237
        %v3330 = vunpack.c.l.b16 %v3238
        %v3331 = vunpack.c.h.b16 %v3238
        %v3332 = vunpack.c.l.b16 %v3239
        %v3333 = vunpack.c.h.b16 %v3239
        %v3334 = vunpack.c.l.b16 %v3240
        %v3335 = vunpack.c.h.b16 %v3240
        %v3336 = vunpack.c.l.b16 %v3241
        %v3337 = vunpack.c.h.b16 %v3241
        %v3338 = vpack.c.b16 %v3278, %v3274
        %v3339 = vpack.c.b16 %v3279, %v3275
        %v3340 = vpack.c.b16 %v3280, %v3276
        %v3341 = vpack.c.b16 %v3281, %v3277
        %v3342 = vpack.c.b16 %v3286, %v3282
        %v3343 = vpack.c.b16 %v3287, %v3283
        %v3344 = vpack.c.b16 %v3288, %v3284
        %v3345 = vpack.c.b16 %v3289, %v3285
        %v3346 = vpack.c.b16 %v3294, %v3290
        %v3347 = vpack.c.b16 %v3295, %v3291
        %v3348 = vpack.c.b16 %v3296, %v3292
        %v3349 = vpack.c.b16 %v3297, %v3293
        %v3350 = vpack.c.b16 %v3302, %v3298
        %v3351 = vpack.c.b16 %v3303, %v3299
        %v3352 = vpack.c.b16 %v3304, %v3300
        %v3353 = vpack.c.b16 %v3305, %v3301
        %v3354 = vpack.c.b16 %v3310, %v3306
        %v3355 = vpack.c.b16 %v3311, %v3307
        %v3356 = vpack.c.b16 %v3312, %v3308
        %v3357 = vpack.c.b16 %v3313, %v3309
        %v3358 = vpack.c.b16 %v3318, %v3314
        %v3359 = vpack.c.b16 %v3319, %v3315
        %v3360 = vpack.c.b16 %v3320, %v3316
        %v3361 = vpack.c.b16 %v3321, %v3317
        %v3362 = vpack.c.b16 %v3326, %v3322
        %v3363 = vpack.c.b16 %v3327, %v3323
        %v3364 = vpack.c.b16 %v3328, %v3324
        %v3365 = vpack.c.b16 %v3329, %v3325
        %v3366 = vpack.c.b16 %v3334, %v3330
        %v3367 = vpack.c.b16 %v3335, %v3331
        %v3368 = vpack.c.b16 %v3336, %v3332
        %v3369 = vpack.c.b16 %v3337, %v3333
        %3402 = vmatprep.subr.bf16.mxu0 %v3339
        %3403 = vmatpush1.bf16.msra.mxu0 %v3338
        %3404 = vmatprep.subr.bf16.mxu0 %v3343
        %3405 = vmatpush1.bf16.msra.mxu0 %v3342
        %3406 = vmatprep.subr.bf16.mxu0 %v3347
        %3407 = vmatpush1.bf16.msra.mxu0 %v3346
        %3408 = vmatprep.subr.bf16.mxu0 %v3351
        %3409 = vmatpush1.bf16.msra.mxu0 %v3350
        %3410 = vmatprep.subr.bf16.mxu0 %v3355
        %3411 = vmatpush1.bf16.msra.mxu0 %v3354
        %3412 = vmatprep.subr.bf16.mxu0 %v3359
        %3413 = vmatpush1.bf16.msra.mxu0 %v3358
        %3414 = vmatprep.subr.bf16.mxu0 %v3363
        %3415 = vmatpush1.bf16.msra.mxu0 %v3362
        %3416 = vmatprep.subr.bf16.mxu0 %v3367
        %3417 = vmatpush1.bf16.msra.mxu0 %v3366
        %3418 = vmatprep.subr.bf16.mxu0 0
        %3419 = vmatpush1.bf16.msra.mxu0 0
        %3420 = vmatprep.subr.bf16.mxu0 0
        %3421 = vmatpush1.bf16.msra.mxu0 0
        %3422 = vmatprep.subr.bf16.mxu0 0
        %3423 = vmatpush1.bf16.msra.mxu0 0
        %3424 = vmatprep.subr.bf16.mxu0 0
        %3425 = vmatpush1.bf16.msra.mxu0 0
        %3426 = vmatprep.subr.bf16.mxu0 0
        %3427 = vmatpush1.bf16.msra.mxu0 0
        %3428 = vmatprep.subr.bf16.mxu0 0
        %3429 = vmatpush1.bf16.msra.mxu0 0
        %3430 = vmatprep.subr.bf16.mxu0 0
        %3431 = vmatpush1.bf16.msra.mxu0 0
        %3432 = vmatprep.subr.bf16.mxu0 0
        %3433 = vmatpush1.bf16.msra.mxu0 0
        %3434 = vmatprep.mubr.bf16.mxu0 0
        %3435 = vmatmul.mubr.bf16.gmra.mrb[0].mxu0 %v3202
        %v3436 = vpop.f32.mrb[0].mxu0
        %v3437 = vadd.f32 0.0, %v3436
        %v3438 = vpop.f32.mrb[0].mxu0
        %v3439 = vadd.f32 0.0, %v3438
        %v3440 = vpop.f32.mrb[0].mxu0
        %v3441 = vadd.f32 0.0, %v3440
        %v3442 = vpop.f32.mrb[0].mxu0
        %v3443 = vadd.f32 0.0, %v3442
        %3444 = vmatprep.mubr.bf16.mxu0 0
        %3445 = vmatmul.mubr.bf16.gmra.mrb[0].mxu0 %v3203
        %v3446 = vpop.f32.mrb[0].mxu0
        %v3447 = vadd.f32 0.0, %v3446
        %v3448 = vpop.f32.mrb[0].mxu0
        %v3449 = vadd.f32 0.0, %v3448
        %v3450 = vpop.f32.mrb[0].mxu0
        %v3451 = vadd.f32 0.0, %v3450
        %v3452 = vpop.f32.mrb[0].mxu0
        %v3453 = vadd.f32 0.0, %v3452
        %3454 = vmatprep.mubr.bf16.mxu0 0
        %3455 = vmatmul.mubr.bf16.gmra.mrb[0].mxu0 %v3204
        %v3456 = vpop.f32.mrb[0].mxu0
        %v3457 = vadd.f32 0.0, %v3456
        %v3458 = vpop.f32.mrb[0].mxu0
        %v3459 = vadd.f32 0.0, %v3458
        %v3460 = vpop.f32.mrb[0].mxu0
        %v3461 = vadd.f32 0.0, %v3460
        %v3462 = vpop.f32.mrb[0].mxu0
        %v3463 = vadd.f32 0.0, %v3462
        %3464 = vmatprep.mubr.bf16.mxu0 0
        %3465 = vmatmul.mubr.bf16.gmra.mrb[0].mxu0 %v3205
        %v3466 = vpop.f32.mrb[0].mxu0
        %v3467 = vadd.f32 0.0, %v3466
        %v3468 = vpop.f32.mrb[0].mxu0
        %v3469 = vadd.f32 0.0, %v3468
        %v3470 = vpop.f32.mrb[0].mxu0
        %v3471 = vadd.f32 0.0, %v3470
        %v3472 = vpop.f32.mrb[0].mxu0
        %v3473 = vadd.f32 0.0, %v3472
        %3474 = vmatprep.mubr.bf16.mxu0 0
        %3475 = vmatmul.mubr.bf16.gmra.mrb[0].mxu0 %v3206
        %v3476 = vpop.f32.mrb[0].mxu0
        %v3477 = vadd.f32 0.0, %v3476
        %v3478 = vpop.f32.mrb[0].mxu0
        %v3479 = vadd.f32 0.0, %v3478
        %v3480 = vpop.f32.mrb[0].mxu0
        %v3481 = vadd.f32 0.0, %v3480
        %v3482 = vpop.f32.mrb[0].mxu0
        %v3483 = vadd.f32 0.0, %v3482
        %3484 = vmatprep.mubr.bf16.mxu0 0
        %3485 = vmatmul.mubr.bf16.gmra.mrb[0].mxu0 %v3207
        %v3486 = vpop.f32.mrb[0].mxu0
        %v3487 = vadd.f32 0.0, %v3486
        %v3488 = vpop.f32.mrb[0].mxu0
        %v3489 = vadd.f32 0.0, %v3488
        %v3490 = vpop.f32.mrb[0].mxu0
        %v3491 = vadd.f32 0.0, %v3490
        %v3492 = vpop.f32.mrb[0].mxu0
        %v3493 = vadd.f32 0.0, %v3492
        %3494 = vmatprep.mubr.bf16.mxu0 0
        %3495 = vmatmul.mubr.bf16.gmra.mrb[0].mxu0 %v3208
        %v3496 = vpop.f32.mrb[0].mxu0
        %v3497 = vadd.f32 0.0, %v3496
        %v3498 = vpop.f32.mrb[0].mxu0
        %v3499 = vadd.f32 0.0, %v3498
        %v3500 = vpop.f32.mrb[0].mxu0
        %v3501 = vadd.f32 0.0, %v3500
        %v3502 = vpop.f32.mrb[0].mxu0
        %v3503 = vadd.f32 0.0, %v3502
        %3504 = vmatprep.mubr.bf16.mxu0 0
        %3505 = vmatmul.mubr.bf16.gmra.mrb[0].mxu0 %v3209
        %v3506 = vpop.f32.mrb[0].mxu0
        %v3507 = vadd.f32 0.0, %v3506
        %v3508 = vpop.f32.mrb[0].mxu0
        %v3509 = vadd.f32 0.0, %v3508
        %v3510 = vpop.f32.mrb[0].mxu0
        %v3511 = vadd.f32 0.0, %v3510
        %v3512 = vpop.f32.mrb[0].mxu0
        %v3513 = vadd.f32 0.0, %v3512
        %3514 = vdwg.mxu0
        %3515 = vmatprep.subr.bf16.mxu0 %v3341
        %3516 = vmatpush1.bf16.msra.mxu0 %v3340
        %3517 = vmatprep.subr.bf16.mxu0 %v3345
        %3518 = vmatpush1.bf16.msra.mxu0 %v3344
        %3519 = vmatprep.subr.bf16.mxu0 %v3349
        %3520 = vmatpush1.bf16.msra.mxu0 %v3348
        %3521 = vmatprep.subr.bf16.mxu0 %v3353
        %3522 = vmatpush1.bf16.msra.mxu0 %v3352
        %3523 = vmatprep.subr.bf16.mxu0 %v3357
        %3524 = vmatpush1.bf16.msra.mxu0 %v3356
        %3525 = vmatprep.subr.bf16.mxu0 %v3361
        %3526 = vmatpush1.bf16.msra.mxu0 %v3360
        %3527 = vmatprep.subr.bf16.mxu0 %v3365
        %3528 = vmatpush1.bf16.msra.mxu0 %v3364
        %3529 = vmatprep.subr.bf16.mxu0 %v3369
        %3530 = vmatpush1.bf16.msra.mxu0 %v3368
        %3531 = vmatprep.subr.bf16.mxu0 0
        %3532 = vmatpush1.bf16.msra.mxu0 0
        %3533 = vmatprep.subr.bf16.mxu0 0
        %3534 = vmatpush1.bf16.msra.mxu0 0
        %3535 = vmatprep.subr.bf16.mxu0 0
        %3536 = vmatpush1.bf16.msra.mxu0 0
        %3537 = vmatprep.subr.bf16.mxu0 0
        %3538 = vmatpush1.bf16.msra.mxu0 0
        %3539 = vmatprep.subr.bf16.mxu0 0
        %3540 = vmatpush1.bf16.msra.mxu0 0
        %3541 = vmatprep.subr.bf16.mxu0 0
        %3542 = vmatpush1.bf16.msra.mxu0 0
        %3543 = vmatprep.subr.bf16.mxu0 0
        %3544 = vmatpush1.bf16.msra.mxu0 0
        %3545 = vmatprep.subr.bf16.mxu0 0
        %3546 = vmatpush1.bf16.msra.mxu0 0
        %3547 = vmatprep.mubr.bf16.mxu0 0
        %3548 = vmatmul.mubr.bf16.gmra.mrb[0].mxu0 %v3202
        %v3549 = vpop.f32.mrb[0].mxu0
        %v3550 = vadd.f32 0.0, %v3549
        %v3551 = vpop.f32.mrb[0].mxu0
        %v3552 = vadd.f32 0.0, %v3551
        %v3553 = vpop.f32.mrb[0].mxu0
        %v3554 = vadd.f32 0.0, %v3553
        %v3555 = vpop.f32.mrb[0].mxu0
        %v3556 = vadd.f32 0.0, %v3555
        %3557 = vmatprep.mubr.bf16.mxu0 0
        %3558 = vmatmul.mubr.bf16.gmra.mrb[0].mxu0 %v3203
        %v3559 = vpop.f32.mrb[0].mxu0
        %v3560 = vadd.f32 0.0, %v3559
        %v3561 = vpop.f32.mrb[0].mxu0
        %v3562 = vadd.f32 0.0, %v3561
        %v3563 = vpop.f32.mrb[0].mxu0
        %v3564 = vadd.f32 0.0, %v3563
        %v3565 = vpop.f32.mrb[0].mxu0
        %v3566 = vadd.f32 0.0, %v3565
        %3567 = vmatprep.mubr.bf16.mxu0 0
        %3568 = vmatmul.mubr.bf16.gmra.mrb[0].mxu0 %v3204
        %v3569 = vpop.f32.mrb[0].mxu0
        %v3570 = vadd.f32 0.0, %v3569
        %v3571 = vpop.f32.mrb[0].mxu0
        %v3572 = vadd.f32 0.0, %v3571
        %v3573 = vpop.f32.mrb[0].mxu0
        %v3574 = vadd.f32 0.0, %v3573
        %v3575 = vpop.f32.mrb[0].mxu0
        %v3576 = vadd.f32 0.0, %v3575
        %3577 = vmatprep.mubr.bf16.mxu0 0
        %3578 = vmatmul.mubr.bf16.gmra.mrb[0].mxu0 %v3205
        %v3579 = vpop.f32.mrb[0].mxu0
        %v3580 = vadd.f32 0.0, %v3579
        %v3581 = vpop.f32.mrb[0].mxu0
        %v3582 = vadd.f32 0.0, %v3581
        %v3583 = vpop.f32.mrb[0].mxu0
        %v3584 = vadd.f32 0.0, %v3583
        %v3585 = vpop.f32.mrb[0].mxu0
        %v3586 = vadd.f32 0.0, %v3585
        %3587 = vmatprep.mubr.bf16.mxu0 0
        %3588 = vmatmul.mubr.bf16.gmra.mrb[0].mxu0 %v3206
        %v3589 = vpop.f32.mrb[0].mxu0
        %v3590 = vadd.f32 0.0, %v3589
        %v3591 = vpop.f32.mrb[0].mxu0
        %v3592 = vadd.f32 0.0, %v3591
        %v3593 = vpop.f32.mrb[0].mxu0
        %v3594 = vadd.f32 0.0, %v3593
        %v3595 = vpop.f32.mrb[0].mxu0
        %v3596 = vadd.f32 0.0, %v3595
        %3597 = vmatprep.mubr.bf16.mxu0 0
        %3598 = vmatmul.mubr.bf16.gmra.mrb[0].mxu0 %v3207
        %v3599 = vpop.f32.mrb[0].mxu0
        %v3600 = vadd.f32 0.0, %v3599
        %v3601 = vpop.f32.mrb[0].mxu0
        %v3602 = vadd.f32 0.0, %v3601
        %v3603 = vpop.f32.mrb[0].mxu0
        %v3604 = vadd.f32 0.0, %v3603
        %v3605 = vpop.f32.mrb[0].mxu0
        %v3606 = vadd.f32 0.0, %v3605
        %3607 = vmatprep.mubr.bf16.mxu0 0
        %3608 = vmatmul.mubr.bf16.gmra.mrb[0].mxu0 %v3208
        %v3609 = vpop.f32.mrb[0].mxu0
        %v3610 = vadd.f32 0.0, %v3609
        %v3611 = vpop.f32.mrb[0].mxu0
        %v3612 = vadd.f32 0.0, %v3611
        %v3613 = vpop.f32.mrb[0].mxu0
        %v3614 = vadd.f32 0.0, %v3613
        %v3615 = vpop.f32.mrb[0].mxu0
        %v3616 = vadd.f32 0.0, %v3615
        %3617 = vmatprep.mubr.bf16.mxu0 0
        %3618 = vmatmul.mubr.bf16.gmra.mrb[0].mxu0 %v3209
        %v3619 = vpop.f32.mrb[0].mxu0
        %v3620 = vadd.f32 0.0, %v3619
        %v3621 = vpop.f32.mrb[0].mxu0
        %v3622 = vadd.f32 0.0, %v3621
        %v3623 = vpop.f32.mrb[0].mxu0
        %v3624 = vadd.f32 0.0, %v3623
        %v3625 = vpop.f32.mrb[0].mxu0
        %v3626 = vadd.f32 0.0, %v3625
        %3627 = vdwg.mxu0
        %v3628 = vmul.f32 %v3437, %v3437
        %v3629 = vmul.f32 %v3439, %v3439
        %v3630 = vmul.f32 %v3550, %v3550
        %v3631 = vmul.f32 %v3552, %v3552
        %v3632 = vmul.f32 %v3441, %v3441
        %v3633 = vmul.f32 %v3443, %v3443
        %v3634 = vmul.f32 %v3554, %v3554
        %v3635 = vmul.f32 %v3556, %v3556
        %v3636 = vmul.f32 %v3447, %v3447
        %v3637 = vmul.f32 %v3449, %v3449
        %v3638 = vmul.f32 %v3560, %v3560
        %v3639 = vmul.f32 %v3562, %v3562
        %v3640 = vmul.f32 %v3451, %v3451
        %v3641 = vmul.f32 %v3453, %v3453
        %v3642 = vmul.f32 %v3564, %v3564
        %v3643 = vmul.f32 %v3566, %v3566
        %v3644 = vmul.f32 %v3457, %v3457
        %v3645 = vmul.f32 %v3459, %v3459
        %v3646 = vmul.f32 %v3570, %v3570
        %v3647 = vmul.f32 %v3572, %v3572
        %v3648 = vmul.f32 %v3461, %v3461
        %v3649 = vmul.f32 %v3463, %v3463
        %v3650 = vmul.f32 %v3574, %v3574
        %v3651 = vmul.f32 %v3576, %v3576
        %v3652 = vmul.f32 %v3467, %v3467
        %v3653 = vmul.f32 %v3469, %v3469
        %v3654 = vmul.f32 %v3580, %v3580
        %v3655 = vmul.f32 %v3582, %v3582
        %v3656 = vmul.f32 %v3471, %v3471
        %v3657 = vmul.f32 %v3473, %v3473
        %v3658 = vmul.f32 %v3584, %v3584
        %v3659 = vmul.f32 %v3586, %v3586
        %v3660 = vmul.f32 %v3477, %v3477
        %v3661 = vmul.f32 %v3479, %v3479
        %v3662 = vmul.f32 %v3590, %v3590
        %v3663 = vmul.f32 %v3592, %v3592
        %v3664 = vmul.f32 %v3481, %v3481
        %v3665 = vmul.f32 %v3483, %v3483
        %v3666 = vmul.f32 %v3594, %v3594
        %v3667 = vmul.f32 %v3596, %v3596
        %v3668 = vmul.f32 %v3487, %v3487
        %v3669 = vmul.f32 %v3489, %v3489
        %v3670 = vmul.f32 %v3600, %v3600
        %v3671 = vmul.f32 %v3602, %v3602
        %v3672 = vmul.f32 %v3491, %v3491
        %v3673 = vmul.f32 %v3493, %v3493
        %v3674 = vmul.f32 %v3604, %v3604
        %v3675 = vmul.f32 %v3606, %v3606
        %v3676 = vmul.f32 %v3497, %v3497
        %v3677 = vmul.f32 %v3499, %v3499
        %v3678 = vmul.f32 %v3610, %v3610
        %v3679 = vmul.f32 %v3612, %v3612
        %v3680 = vmul.f32 %v3501, %v3501
        %v3681 = vmul.f32 %v3503, %v3503
        %v3682 = vmul.f32 %v3614, %v3614
        %v3683 = vmul.f32 %v3616, %v3616
        %v3684 = vmul.f32 %v3507, %v3507
        %v3685 = vmul.f32 %v3509, %v3509
        %v3686 = vmul.f32 %v3620, %v3620
        %v3687 = vmul.f32 %v3622, %v3622
        %v3688 = vmul.f32 %v3511, %v3511
        %v3689 = vmul.f32 %v3513, %v3513
        %v3690 = vmul.f32 %v3624, %v3624
        %v3691 = vmul.f32 %v3626, %v3626
        %v3692 = vmul.f32 %v3437, %v3628
        %v3693 = vmul.f32 %v3439, %v3629
        %v3694 = vmul.f32 %v3550, %v3630
        %v3695 = vmul.f32 %v3552, %v3631
        %v3696 = vmul.f32 %v3441, %v3632
        %v3697 = vmul.f32 %v3443, %v3633
        %v3698 = vmul.f32 %v3554, %v3634
        %v3699 = vmul.f32 %v3556, %v3635
        %v3700 = vmul.f32 %v3447, %v3636
        %v3701 = vmul.f32 %v3449, %v3637
        %v3702 = vmul.f32 %v3560, %v3638
        %v3703 = vmul.f32 %v3562, %v3639
        %v3704 = vmul.f32 %v3451, %v3640
        %v3705 = vmul.f32 %v3453, %v3641
        %v3706 = vmul.f32 %v3564, %v3642
        %v3707 = vmul.f32 %v3566, %v3643
        %v3708 = vmul.f32 %v3457, %v3644
        %v3709 = vmul.f32 %v3459, %v3645
        %v3710 = vmul.f32 %v3570, %v3646
        %v3711 = vmul.f32 %v3572, %v3647
        %v3712 = vmul.f32 %v3461, %v3648
        %v3713 = vmul.f32 %v3463, %v3649
        %v3714 = vmul.f32 %v3574, %v3650
        %v3715 = vmul.f32 %v3576, %v3651
        %v3716 = vmul.f32 %v3467, %v3652
        %v3717 = vmul.f32 %v3469, %v3653
        %v3718 = vmul.f32 %v3580, %v3654
        %v3719 = vmul.f32 %v3582, %v3655
        %v3720 = vmul.f32 %v3471, %v3656
        %v3721 = vmul.f32 %v3473, %v3657
        %v3722 = vmul.f32 %v3584, %v3658
        %v3723 = vmul.f32 %v3586, %v3659
        %v3724 = vmul.f32 %v3477, %v3660
        %v3725 = vmul.f32 %v3479, %v3661
        %v3726 = vmul.f32 %v3590, %v3662
        %v3727 = vmul.f32 %v3592, %v3663
        %v3728 = vmul.f32 %v3481, %v3664
        %v3729 = vmul.f32 %v3483, %v3665
        %v3730 = vmul.f32 %v3594, %v3666
        %v3731 = vmul.f32 %v3596, %v3667
        %v3732 = vmul.f32 %v3487, %v3668
        %v3733 = vmul.f32 %v3489, %v3669
        %v3734 = vmul.f32 %v3600, %v3670
        %v3735 = vmul.f32 %v3602, %v3671
        %v3736 = vmul.f32 %v3491, %v3672
        %v3737 = vmul.f32 %v3493, %v3673
        %v3738 = vmul.f32 %v3604, %v3674
        %v3739 = vmul.f32 %v3606, %v3675
        %v3740 = vmul.f32 %v3497, %v3676
        %v3741 = vmul.f32 %v3499, %v3677
        %v3742 = vmul.f32 %v3610, %v3678
        %v3743 = vmul.f32 %v3612, %v3679
        %v3744 = vmul.f32 %v3501, %v3680
        %v3745 = vmul.f32 %v3503, %v3681
        %v3746 = vmul.f32 %v3614, %v3682
        %v3747 = vmul.f32 %v3616, %v3683
        %v3748 = vmul.f32 %v3507, %v3684
        %v3749 = vmul.f32 %v3509, %v3685
        %v3750 = vmul.f32 %v3620, %v3686
        %v3751 = vmul.f32 %v3622, %v3687
        %v3752 = vmul.f32 %v3511, %v3688
        %v3753 = vmul.f32 %v3513, %v3689
        %v3754 = vmul.f32 %v3624, %v3690
        %v3755 = vmul.f32 %v3626, %v3691
        %v3756 = vmul.f32 %v3692, 0.044715
        %v3757 = vmul.f32 %v3693, 0.044715
        %v3758 = vmul.f32 %v3694, 0.044715
        %v3759 = vmul.f32 %v3695, 0.044715
        %v3760 = vmul.f32 %v3696, 0.044715
        %v3761 = vmul.f32 %v3697, 0.044715
        %v3762 = vmul.f32 %v3698, 0.044715
        %v3763 = vmul.f32 %v3699, 0.044715
        %v3764 = vmul.f32 %v3700, 0.044715
        %v3765 = vmul.f32 %v3701, 0.044715
        %v3766 = vmul.f32 %v3702, 0.044715
        %v3767 = vmul.f32 %v3703, 0.044715
        %v3768 = vmul.f32 %v3704, 0.044715
        %v3769 = vmul.f32 %v3705, 0.044715
        %v3770 = vmul.f32 %v3706, 0.044715
        %v3771 = vmul.f32 %v3707, 0.044715
        %v3772 = vmul.f32 %v3708, 0.044715
        %v3773 = vmul.f32 %v3709, 0.044715
        %v3774 = vmul.f32 %v3710, 0.044715
        %v3775 = vmul.f32 %v3711, 0.044715
        %v3776 = vmul.f32 %v3712, 0.044715
        %v3777 = vmul.f32 %v3713, 0.044715
        %v3778 = vmul.f32 %v3714, 0.044715
        %v3779 = vmul.f32 %v3715, 0.044715
        %v3780 = vmul.f32 %v3716, 0.044715
        %v3781 = vmul.f32 %v3717, 0.044715
        %v3782 = vmul.f32 %v3718, 0.044715
        %v3783 = vmul.f32 %v3719, 0.044715
        %v3784 = vmul.f32 %v3720, 0.044715
        %v3785 = vmul.f32 %v3721, 0.044715
        %v3786 = vmul.f32 %v3722, 0.044715
        %v3787 = vmul.f32 %v3723, 0.044715
        %v3788 = vmul.f32 %v3724, 0.044715
        %v3789 = vmul.f32 %v3725, 0.044715
        %v3790 = vmul.f32 %v3726, 0.044715
        %v3791 = vmul.f32 %v3727, 0.044715
        %v3792 = vmul.f32 %v3728, 0.044715
        %v3793 = vmul.f32 %v3729, 0.044715
        %v3794 = vmul.f32 %v3730, 0.044715
        %v3795 = vmul.f32 %v3731, 0.044715
        %v3796 = vmul.f32 %v3732, 0.044715
        %v3797 = vmul.f32 %v3733, 0.044715
        %v3798 = vmul.f32 %v3734, 0.044715
        %v3799 = vmul.f32 %v3735, 0.044715
        %v3800 = vmul.f32 %v3736, 0.044715
        %v3801 = vmul.f32 %v3737, 0.044715
        %v3802 = vmul.f32 %v3738, 0.044715
        %v3803 = vmul.f32 %v3739, 0.044715
        %v3804 = vmul.f32 %v3740, 0.044715
        %v3805 = vmul.f32 %v3741, 0.044715
        %v3806 = vmul.f32 %v3742, 0.044715
        %v3807 = vmul.f32 %v3743, 0.044715
        %v3808 = vmul.f32 %v3744, 0.044715
        %v3809 = vmul.f32 %v3745, 0.044715
        %v3810 = vmul.f32 %v3746, 0.044715
        %v3811 = vmul.f32 %v3747, 0.044715
        %v3812 = vmul.f32 %v3748, 0.044715
        %v3813 = vmul.f32 %v3749, 0.044715
        %v3814 = vmul.f32 %v3750, 0.044715
        %v3815 = vmul.f32 %v3751, 0.044715
        %v3816 = vmul.f32 %v3752, 0.044715
        %v3817 = vmul.f32 %v3753, 0.044715
        %v3818 = vmul.f32 %v3754, 0.044715
        %v3819 = vmul.f32 %v3755, 0.044715
        %v3820 = vadd.f32 %v3437, %v3756
        %v3821 = vadd.f32 %v3439, %v3757
        %v3822 = vadd.f32 %v3550, %v3758
        %v3823 = vadd.f32 %v3552, %v3759
        %v3824 = vadd.f32 %v3441, %v3760
        %v3825 = vadd.f32 %v3443, %v3761
        %v3826 = vadd.f32 %v3554, %v3762
        %v3827 = vadd.f32 %v3556, %v3763
        %v3828 = vadd.f32 %v3447, %v3764
        %v3829 = vadd.f32 %v3449, %v3765
        %v3830 = vadd.f32 %v3560, %v3766
        %v3831 = vadd.f32 %v3562, %v3767
        %v3832 = vadd.f32 %v3451, %v3768
        %v3833 = vadd.f32 %v3453, %v3769
        %v3834 = vadd.f32 %v3564, %v3770
        %v3835 = vadd.f32 %v3566, %v3771
        %v3836 = vadd.f32 %v3457, %v3772
        %v3837 = vadd.f32 %v3459, %v3773
        %v3838 = vadd.f32 %v3570, %v3774
        %v3839 = vadd.f32 %v3572, %v3775
        %v3840 = vadd.f32 %v3461, %v3776
        %v3841 = vadd.f32 %v3463, %v3777
        %v3842 = vadd.f32 %v3574, %v3778
        %v3843 = vadd.f32 %v3576, %v3779
        %v3844 = vadd.f32 %v3467, %v3780
        %v3845 = vadd.f32 %v3469, %v3781
        %v3846 = vadd.f32 %v3580, %v3782
        %v3847 = vadd.f32 %v3582, %v3783
        %v3848 = vadd.f32 %v3471, %v3784
        %v3849 = vadd.f32 %v3473, %v3785
        %v3850 = vadd.f32 %v3584, %v3786
        %v3851 = vadd.f32 %v3586, %v3787
        %v3852 = vadd.f32 %v3477, %v3788
        %v3853 = vadd.f32 %v3479, %v3789
        %v3854 = vadd.f32 %v3590, %v3790
        %v3855 = vadd.f32 %v3592, %v3791
        %v3856 = vadd.f32 %v3481, %v3792
        %v3857 = vadd.f32 %v3483, %v3793
        %v3858 = vadd.f32 %v3594, %v3794
        %v3859 = vadd.f32 %v3596, %v3795
        %v3860 = vadd.f32 %v3487, %v3796
        %v3861 = vadd.f32 %v3489, %v3797
        %v3862 = vadd.f32 %v3600, %v3798
        %v3863 = vadd.f32 %v3602, %v3799
        %v3864 = vadd.f32 %v3491, %v3800
        %v3865 = vadd.f32 %v3493, %v3801
        %v3866 = vadd.f32 %v3604, %v3802
        %v3867 = vadd.f32 %v3606, %v3803
        %v3868 = vadd.f32 %v3497, %v3804
        %v3869 = vadd.f32 %v3499, %v3805
        %v3870 = vadd.f32 %v3610, %v3806
        %v3871 = vadd.f32 %v3612, %v3807
        %v3872 = vadd.f32 %v3501, %v3808
        %v3873 = vadd.f32 %v3503, %v3809
        %v3874 = vadd.f32 %v3614, %v3810
        %v3875 = vadd.f32 %v3616, %v3811
        %v3876 = vadd.f32 %v3507, %v3812
        %v3877 = vadd.f32 %v3509, %v3813
        %v3878 = vadd.f32 %v3620, %v3814
        %v3879 = vadd.f32 %v3622, %v3815
        %v3880 = vadd.f32 %v3511, %v3816
        %v3881 = vadd.f32 %v3513, %v3817
        %v3882 = vadd.f32 %v3624, %v3818
        %v3883 = vadd.f32 %v3626, %v3819
        %v3884 = vmul.f32 %v3820, 0.7978846
        %v3885 = vmul.f32 %v3821, 0.7978846
        %v3886 = vmul.f32 %v3822, 0.7978846
        %v3887 = vmul.f32 %v3823, 0.7978846
        %v3888 = vmul.f32 %v3824, 0.7978846
        %v3889 = vmul.f32 %v3825, 0.7978846
        %v3890 = vmul.f32 %v3826, 0.7978846
        %v3891 = vmul.f32 %v3827, 0.7978846
        %v3892 = vmul.f32 %v3828, 0.7978846
        %v3893 = vmul.f32 %v3829, 0.7978846
        %v3894 = vmul.f32 %v3830, 0.7978846
        %v3895 = vmul.f32 %v3831, 0.7978846
        %v3896 = vmul.f32 %v3832, 0.7978846
        %v3897 = vmul.f32 %v3833, 0.7978846
        %v3898 = vmul.f32 %v3834, 0.7978846
        %v3899 = vmul.f32 %v3835, 0.7978846
        %v3900 = vmul.f32 %v3836, 0.7978846
        %v3901 = vmul.f32 %v3837, 0.7978846
        %v3902 = vmul.f32 %v3838, 0.7978846
        %v3903 = vmul.f32 %v3839, 0.7978846
        %v3904 = vmul.f32 %v3840, 0.7978846
        %v3905 = vmul.f32 %v3841, 0.7978846
        %v3906 = vmul.f32 %v3842, 0.7978846
        %v3907 = vmul.f32 %v3843, 0.7978846
        %v3908 = vmul.f32 %v3844, 0.7978846
        %v3909 = vmul.f32 %v3845, 0.7978846
        %v3910 = vmul.f32 %v3846, 0.7978846
        %v3911 = vmul.f32 %v3847, 0.7978846
        %v3912 = vmul.f32 %v3848, 0.7978846
        %v3913 = vmul.f32 %v3849, 0.7978846
        %v3914 = vmul.f32 %v3850, 0.7978846
        %v3915 = vmul.f32 %v3851, 0.7978846
        %v3916 = vmul.f32 %v3852, 0.7978846
        %v3917 = vmul.f32 %v3853, 0.7978846
        %v3918 = vmul.f32 %v3854, 0.7978846
        %v3919 = vmul.f32 %v3855, 0.7978846
        %v3920 = vmul.f32 %v3856, 0.7978846
        %v3921 = vmul.f32 %v3857, 0.7978846
        %v3922 = vmul.f32 %v3858, 0.7978846
        %v3923 = vmul.f32 %v3859, 0.7978846
        %v3924 = vmul.f32 %v3860, 0.7978846
        %v3925 = vmul.f32 %v3861, 0.7978846
        %v3926 = vmul.f32 %v3862, 0.7978846
        %v3927 = vmul.f32 %v3863, 0.7978846
        %v3928 = vmul.f32 %v3864, 0.7978846
        %v3929 = vmul.f32 %v3865, 0.7978846
        %v3930 = vmul.f32 %v3866, 0.7978846
        %v3931 = vmul.f32 %v3867, 0.7978846
        %v3932 = vmul.f32 %v3868, 0.7978846
        %v3933 = vmul.f32 %v3869, 0.7978846
        %v3934 = vmul.f32 %v3870, 0.7978846
        %v3935 = vmul.f32 %v3871, 0.7978846
        %v3936 = vmul.f32 %v3872, 0.7978846
        %v3937 = vmul.f32 %v3873, 0.7978846
        %v3938 = vmul.f32 %v3874, 0.7978846
        %v3939 = vmul.f32 %v3875, 0.7978846
        %v3940 = vmul.f32 %v3876, 0.7978846
        %v3941 = vmul.f32 %v3877, 0.7978846
        %v3942 = vmul.f32 %v3878, 0.7978846
        %v3943 = vmul.f32 %v3879, 0.7978846
        %v3944 = vmul.f32 %v3880, 0.7978846
        %v3945 = vmul.f32 %v3881, 0.7978846
        %v3946 = vmul.f32 %v3882, 0.7978846
        %v3947 = vmul.f32 %v3883, 0.7978846
        %v3948 = vtanh.pop %v3884
        %v3949 = vtanh.pop %v3885
        %v3950 = vtanh.pop %v3886
        %v3951 = vtanh.pop %v3887
        %v3952 = vtanh.pop %v3888
        %v3953 = vtanh.pop %v3889
        %v3954 = vtanh.pop %v3890
        %v3955 = vtanh.pop %v3891
        %v3956 = vtanh.pop %v3892
        %v3957 = vtanh.pop %v3893
        %v3958 = vtanh.pop %v3894
        %v3959 = vtanh.pop %v3895
        %v3960 = vtanh.pop %v3896
        %v3961 = vtanh.pop %v3897
        %v3962 = vtanh.pop %v3898
        %v3963 = vtanh.pop %v3899
        %v3964 = vtanh.pop %v3900
        %v3965 = vtanh.pop %v3901
        %v3966 = vtanh.pop %v3902
        %v3967 = vtanh.pop %v3903
        %v3968 = vtanh.pop %v3904
        %v3969 = vtanh.pop %v3905
        %v3970 = vtanh.pop %v3906
        %v3971 = vtanh.pop %v3907
        %v3972 = vtanh.pop %v3908
        %v3973 = vtanh.pop %v3909
        %v3974 = vtanh.pop %v3910
        %v3975 = vtanh.pop %v3911
        %v3976 = vtanh.pop %v3912
        %v3977 = vtanh.pop %v3913
        %v3978 = vtanh.pop %v3914
        %v3979 = vtanh.pop %v3915
        %v3980 = vtanh.pop %v3916
        %v3981 = vtanh.pop %v3917
        %v3982 = vtanh.pop %v3918
        %v3983 = vtanh.pop %v3919
        %v3984 = vtanh.pop %v3920
        %v3985 = vtanh.pop %v3921
        %v3986 = vtanh.pop %v3922
        %v3987 = vtanh.pop %v3923
        %v3988 = vtanh.pop %v3924
        %v3989 = vtanh.pop %v3925
        %v3990 = vtanh.pop %v3926
        %v3991 = vtanh.pop %v3927
        %v3992 = vtanh.pop %v3928
        %v3993 = vtanh.pop %v3929
        %v3994 = vtanh.pop %v3930
        %v3995 = vtanh.pop %v3931
        %v3996 = vtanh.pop %v3932
        %v3997 = vtanh.pop %v3933
        %v3998 = vtanh.pop %v3934
        %v3999 = vtanh.pop %v3935
        %v4000 = vtanh.pop %v3936
        %v4001 = vtanh.pop %v3937
        %v4002 = vtanh.pop %v3938
        %v4003 = vtanh.pop %v3939
        %v4004 = vtanh.pop %v3940
        %v4005 = vtanh.pop %v3941
        %v4006 = vtanh.pop %v3942
        %v4007 = vtanh.pop %v3943
        %v4008 = vtanh.pop %v3944
        %v4009 = vtanh.pop %v3945
        %v4010 = vtanh.pop %v3946
        %v4011 = vtanh.pop %v3947
        %v4012 = vadd.f32 %v3948, 1.0
        %v4013 = vadd.f32 %v3949, 1.0
        %v4014 = vadd.f32 %v3950, 1.0
        %v4015 = vadd.f32 %v3951, 1.0
        %v4016 = vadd.f32 %v3952, 1.0
        %v4017 = vadd.f32 %v3953, 1.0
        %v4018 = vadd.f32 %v3954, 1.0
        %v4019 = vadd.f32 %v3955, 1.0
        %v4020 = vadd.f32 %v3956, 1.0
        %v4021 = vadd.f32 %v3957, 1.0
        %v4022 = vadd.f32 %v3958, 1.0
        %v4023 = vadd.f32 %v3959, 1.0
        %v4024 = vadd.f32 %v3960, 1.0
        %v4025 = vadd.f32 %v3961, 1.0
        %v4026 = vadd.f32 %v3962, 1.0
        %v4027 = vadd.f32 %v3963, 1.0
        %v4028 = vadd.f32 %v3964, 1.0
        %v4029 = vadd.f32 %v3965, 1.0
        %v4030 = vadd.f32 %v3966, 1.0
        %v4031 = vadd.f32 %v3967, 1.0
        %v4032 = vadd.f32 %v3968, 1.0
        %v4033 = vadd.f32 %v3969, 1.0
        %v4034 = vadd.f32 %v3970, 1.0
        %v4035 = vadd.f32 %v3971, 1.0
        %v4036 = vadd.f32 %v3972, 1.0
        %v4037 = vadd.f32 %v3973, 1.0
        %v4038 = vadd.f32 %v3974, 1.0
        %v4039 = vadd.f32 %v3975, 1.0
        %v4040 = vadd.f32 %v3976, 1.0
        %v4041 = vadd.f32 %v3977, 1.0
        %v4042 = vadd.f32 %v3978, 1.0
        %v4043 = vadd.f32 %v3979, 1.0
        %v4044 = vadd.f32 %v3980, 1.0
        %v4045 = vadd.f32 %v3981, 1.0
        %v4046 = vadd.f32 %v3982, 1.0
        %v4047 = vadd.f32 %v3983, 1.0
        %v4048 = vadd.f32 %v3984, 1.0
        %v4049 = vadd.f32 %v3985, 1.0
        %v4050 = vadd.f32 %v3986, 1.0
        %v4051 = vadd.f32 %v3987, 1.0
        %v4052 = vadd.f32 %v3988, 1.0
        %v4053 = vadd.f32 %v3989, 1.0
        %v4054 = vadd.f32 %v3990, 1.0
        %v4055 = vadd.f32 %v3991, 1.0
        %v4056 = vadd.f32 %v3992, 1.0
        %v4057 = vadd.f32 %v3993, 1.0
        %v4058 = vadd.f32 %v3994, 1.0
        %v4059 = vadd.f32 %v3995, 1.0
        %v4060 = vadd.f32 %v3996, 1.0
        %v4061 = vadd.f32 %v3997, 1.0
        %v4062 = vadd.f32 %v3998, 1.0
        %v4063 = vadd.f32 %v3999, 1.0
        %v4064 = vadd.f32 %v4000, 1.0
        %v4065 = vadd.f32 %v4001, 1.0
        %v4066 = vadd.f32 %v4002, 1.0
        %v4067 = vadd.f32 %v4003, 1.0
        %v4068 = vadd.f32 %v4004, 1.0
        %v4069 = vadd.f32 %v4005, 1.0
        %v4070 = vadd.f32 %v4006, 1.0
        %v4071 = vadd.f32 %v4007, 1.0
        %v4072 = vadd.f32 %v4008, 1.0
        %v4073 = vadd.f32 %v4009, 1.0
        %v4074 = vadd.f32 %v4010, 1.0
        %v4075 = vadd.f32 %v4011, 1.0
        %v4076 = vmul.f32 %v4012, 0.5
        %v4077 = vmul.f32 %v4013, 0.5
        %v4078 = vmul.f32 %v4014, 0.5
        %v4079 = vmul.f32 %v4015, 0.5
        %v4080 = vmul.f32 %v4016, 0.5
        %v4081 = vmul.f32 %v4017, 0.5
        %v4082 = vmul.f32 %v4018, 0.5
        %v4083 = vmul.f32 %v4019, 0.5
        %v4084 = vmul.f32 %v4020, 0.5
        %v4085 = vmul.f32 %v4021, 0.5
        %v4086 = vmul.f32 %v4022, 0.5
        %v4087 = vmul.f32 %v4023, 0.5
        %v4088 = vmul.f32 %v4024, 0.5
        %v4089 = vmul.f32 %v4025, 0.5
        %v4090 = vmul.f32 %v4026, 0.5
        %v4091 = vmul.f32 %v4027, 0.5
        %v4092 = vmul.f32 %v4028, 0.5
        %v4093 = vmul.f32 %v4029, 0.5
        %v4094 = vmul.f32 %v4030, 0.5
        %v4095 = vmul.f32 %v4031, 0.5
        %v4096 = vmul.f32 %v4032, 0.5
        %v4097 = vmul.f32 %v4033, 0.5
        %v4098 = vmul.f32 %v4034, 0.5
        %v4099 = vmul.f32 %v4035, 0.5
        %v4100 = vmul.f32 %v4036, 0.5
        %v4101 = vmul.f32 %v4037, 0.5
        %v4102 = vmul.f32 %v4038, 0.5
        %v4103 = vmul.f32 %v4039, 0.5
        %v4104 = vmul.f32 %v4040, 0.5
        %v4105 = vmul.f32 %v4041, 0.5
        %v4106 = vmul.f32 %v4042, 0.5
        %v4107 = vmul.f32 %v4043, 0.5
        %v4108 = vmul.f32 %v4044, 0.5
        %v4109 = vmul.f32 %v4045, 0.5
        %v4110 = vmul.f32 %v4046, 0.5
        %v4111 = vmul.f32 %v4047, 0.5
        %v4112 = vmul.f32 %v4048, 0.5
        %v4113 = vmul.f32 %v4049, 0.5
        %v4114 = vmul.f32 %v4050, 0.5
        %v4115 = vmul.f32 %v4051, 0.5
        %v4116 = vmul.f32 %v4052, 0.5
        %v4117 = vmul.f32 %v4053, 0.5
        %v4118 = vmul.f32 %v4054, 0.5
        %v4119 = vmul.f32 %v4055, 0.5
        %v4120 = vmul.f32 %v4056, 0.5
        %v4121 = vmul.f32 %v4057, 0.5
        %v4122 = vmul.f32 %v4058, 0.5
        %v4123 = vmul.f32 %v4059, 0.5
        %v4124 = vmul.f32 %v4060, 0.5
        %v4125 = vmul.f32 %v4061, 0.5
        %v4126 = vmul.f32 %v4062, 0.5
        %v4127 = vmul.f32 %v4063, 0.5
        %v4128 = vmul.f32 %v4064, 0.5
        %v4129 = vmul.f32 %v4065, 0.5
        %v4130 = vmul.f32 %v4066, 0.5
        %v4131 = vmul.f32 %v4067, 0.5
        %v4132 = vmul.f32 %v4068, 0.5
        %v4133 = vmul.f32 %v4069, 0.5
        %v4134 = vmul.f32 %v4070, 0.5
        %v4135 = vmul.f32 %v4071, 0.5
        %v4136 = vmul.f32 %v4072, 0.5
        %v4137 = vmul.f32 %v4073, 0.5
        %v4138 = vmul.f32 %v4074, 0.5
        %v4139 = vmul.f32 %v4075, 0.5
        %v4140 = vmul.f32 %v3437, %v4076
        %v4141 = vmul.f32 %v3439, %v4077
        %v4142 = vmul.f32 %v3550, %v4078
        %v4143 = vmul.f32 %v3552, %v4079
        %v4144 = vmul.f32 %v3441, %v4080
        %v4145 = vmul.f32 %v3443, %v4081
        %v4146 = vmul.f32 %v3554, %v4082
        %v4147 = vmul.f32 %v3556, %v4083
        %v4148 = vmul.f32 %v3447, %v4084
        %v4149 = vmul.f32 %v3449, %v4085
        %v4150 = vmul.f32 %v3560, %v4086
        %v4151 = vmul.f32 %v3562, %v4087
        %v4152 = vmul.f32 %v3451, %v4088
        %v4153 = vmul.f32 %v3453, %v4089
        %v4154 = vmul.f32 %v3564, %v4090
        %v4155 = vmul.f32 %v3566, %v4091
        %v4156 = vmul.f32 %v3457, %v4092
        %v4157 = vmul.f32 %v3459, %v4093
        %v4158 = vmul.f32 %v3570, %v4094
        %v4159 = vmul.f32 %v3572, %v4095
        %v4160 = vmul.f32 %v3461, %v4096
        %v4161 = vmul.f32 %v3463, %v4097
        %v4162 = vmul.f32 %v3574, %v4098
        %v4163 = vmul.f32 %v3576, %v4099
        %v4164 = vmul.f32 %v3467, %v4100
        %v4165 = vmul.f32 %v3469, %v4101
        %v4166 = vmul.f32 %v3580, %v4102
        %v4167 = vmul.f32 %v3582, %v4103
        %v4168 = vmul.f32 %v3471, %v4104
        %v4169 = vmul.f32 %v3473, %v4105
        %v4170 = vmul.f32 %v3584, %v4106
        %v4171 = vmul.f32 %v3586, %v4107
        %v4172 = vmul.f32 %v3477, %v4108
        %v4173 = vmul.f32 %v3479, %v4109
        %v4174 = vmul.f32 %v3590, %v4110
        %v4175 = vmul.f32 %v3592, %v4111
        %v4176 = vmul.f32 %v3481, %v4112
        %v4177 = vmul.f32 %v3483, %v4113
        %v4178 = vmul.f32 %v3594, %v4114
        %v4179 = vmul.f32 %v3596, %v4115
        %v4180 = vmul.f32 %v3487, %v4116
        %v4181 = vmul.f32 %v3489, %v4117
        %v4182 = vmul.f32 %v3600, %v4118
        %v4183 = vmul.f32 %v3602, %v4119
        %v4184 = vmul.f32 %v3491, %v4120
        %v4185 = vmul.f32 %v3493, %v4121
        %v4186 = vmul.f32 %v3604, %v4122
        %v4187 = vmul.f32 %v3606, %v4123
        %v4188 = vmul.f32 %v3497, %v4124
        %v4189 = vmul.f32 %v3499, %v4125
        %v4190 = vmul.f32 %v3610, %v4126
        %v4191 = vmul.f32 %v3612, %v4127
        %v4192 = vmul.f32 %v3501, %v4128
        %v4193 = vmul.f32 %v3503, %v4129
        %v4194 = vmul.f32 %v3614, %v4130
        %v4195 = vmul.f32 %v3616, %v4131
        %v4196 = vmul.f32 %v3507, %v4132
        %v4197 = vmul.f32 %v3509, %v4133
        %v4198 = vmul.f32 %v3620, %v4134
        %v4199 = vmul.f32 %v3622, %v4135
        %v4200 = vmul.f32 %v3511, %v4136
        %v4201 = vmul.f32 %v3513, %v4137
        %v4202 = vmul.f32 %v3624, %v4138
        %v4203 = vmul.f32 %v3626, %v4139
        %v4204 = vpack.c.bf16 %v4144, %v4140
        %v4205 = vpack.c.bf16 %v4145, %v4141
        %v4206 = vpack.c.bf16 %v4146, %v4142
        %v4207 = vpack.c.bf16 %v4147, %v4143
        %v4208 = vpack.c.bf16 %v4152, %v4148
        %v4209 = vpack.c.bf16 %v4153, %v4149
        %v4210 = vpack.c.bf16 %v4154, %v4150
        %v4211 = vpack.c.bf16 %v4155, %v4151
        %v4212 = vpack.c.bf16 %v4160, %v4156
        %v4213 = vpack.c.bf16 %v4161, %v4157
        %v4214 = vpack.c.bf16 %v4162, %v4158
        %v4215 = vpack.c.bf16 %v4163, %v4159
        %v4216 = vpack.c.bf16 %v4168, %v4164
        %v4217 = vpack.c.bf16 %v4169, %v4165
        %v4218 = vpack.c.bf16 %v4170, %v4166
        %v4219 = vpack.c.bf16 %v4171, %v4167
        %v4220 = vpack.c.bf16 %v4176, %v4172
        %v4221 = vpack.c.bf16 %v4177, %v4173
        %v4222 = vpack.c.bf16 %v4178, %v4174
        %v4223 = vpack.c.bf16 %v4179, %v4175
        %v4224 = vpack.c.bf16 %v4184, %v4180
        %v4225 = vpack.c.bf16 %v4185, %v4181
        %v4226 = vpack.c.bf16 %v4186, %v4182
        %v4227 = vpack.c.bf16 %v4187, %v4183
        %v4228 = vpack.c.bf16 %v4192, %v4188
        %v4229 = vpack.c.bf16 %v4193, %v4189
        %v4230 = vpack.c.bf16 %v4194, %v4190
        %v4231 = vpack.c.bf16 %v4195, %v4191
        %v4232 = vpack.c.bf16 %v4200, %v4196
        %v4233 = vpack.c.bf16 %v4201, %v4197
        %v4234 = vpack.c.bf16 %v4202, %v4198
        %v4235 = vpack.c.bf16 %v4203, %v4199
        %v4236 = vld [vmem:[#allocation14] sm:$0xf]
        %v4237 = vld [vmem:[#allocation14 + $0x4] sm:$0xf]
        %v4238 = vld [vmem:[#allocation14 + $0x8] sm:$0xf]
        %v4239 = vld [vmem:[#allocation14 + $0xc] sm:$0xf]
        %v4240 = vld [vmem:[#allocation14 + $0x10] sm:$0xf]
        %v4241 = vld [vmem:[#allocation14 + $0x14] sm:$0xf]
        %v4242 = vld [vmem:[#allocation14 + $0x18] sm:$0xf]
        %v4243 = vld [vmem:[#allocation14 + $0x1c] sm:$0xf]
        %v4244 = vld [vmem:[#allocation14 + $0x20] sm:$0xf]
        %v4245 = vld [vmem:[#allocation14 + $0x24] sm:$0xf]
        %v4246 = vld [vmem:[#allocation14 + $0x28] sm:$0xf]
        %v4247 = vld [vmem:[#allocation14 + $0x2c] sm:$0xf]
        %v4248 = vld [vmem:[#allocation14 + $0x30] sm:$0xf]
        %v4249 = vld [vmem:[#allocation14 + $0x34] sm:$0xf]
        %v4250 = vld [vmem:[#allocation14 + $0x38] sm:$0xf]
        %v4251 = vld [vmem:[#allocation14 + $0x3c] sm:$0xf]
        %v4252 = vld [vmem:[#allocation14 + $0x40] sm:$0xf]
        %v4253 = vld [vmem:[#allocation14 + $0x44] sm:$0xf]
        %v4254 = vld [vmem:[#allocation14 + $0x48] sm:$0xf]
        %v4255 = vld [vmem:[#allocation14 + $0x4c] sm:$0xf]
        %v4256 = vld [vmem:[#allocation14 + $0x50] sm:$0xf]
        %v4257 = vld [vmem:[#allocation14 + $0x54] sm:$0xf]
        %v4258 = vld [vmem:[#allocation14 + $0x58] sm:$0xf]
        %v4259 = vld [vmem:[#allocation14 + $0x5c] sm:$0xf]
        %v4260 = vld [vmem:[#allocation14 + $0x60] sm:$0xf]
        %v4261 = vld [vmem:[#allocation14 + $0x64] sm:$0xf]
        %v4262 = vld [vmem:[#allocation14 + $0x68] sm:$0xf]
        %v4263 = vld [vmem:[#allocation14 + $0x6c] sm:$0xf]
        %v4264 = vld [vmem:[#allocation14 + $0x70] sm:$0xf]
        %v4265 = vld [vmem:[#allocation14 + $0x74] sm:$0xf]
        %v4266 = vld [vmem:[#allocation14 + $0x78] sm:$0xf]
        %v4267 = vld [vmem:[#allocation14 + $0x7c] sm:$0xf]
        %v4268 = vld [vmem:[#allocation14 + $0x80] sm:$0xf]
        %v4269 = vld [vmem:[#allocation14 + $0x84] sm:$0xf]
        %v4270 = vld [vmem:[#allocation14 + $0x88] sm:$0xf]
        %v4271 = vld [vmem:[#allocation14 + $0x8c] sm:$0xf]
        %v4272 = vld [vmem:[#allocation14 + $0x90] sm:$0xf]
        %v4273 = vld [vmem:[#allocation14 + $0x94] sm:$0xf]
        %v4274 = vld [vmem:[#allocation14 + $0x98] sm:$0xf]
        %v4275 = vld [vmem:[#allocation14 + $0x9c] sm:$0xf]
        %v4276 = vld [vmem:[#allocation14 + $0xa0] sm:$0xf]
        %v4277 = vld [vmem:[#allocation14 + $0xa4] sm:$0xf]
        %v4278 = vld [vmem:[#allocation14 + $0xa8] sm:$0xf]
        %v4279 = vld [vmem:[#allocation14 + $0xac] sm:$0xf]
        %v4280 = vld [vmem:[#allocation14 + $0xb0] sm:$0xf]
        %v4281 = vld [vmem:[#allocation14 + $0xb4] sm:$0xf]
        %v4282 = vld [vmem:[#allocation14 + $0xb8] sm:$0xf]
        %v4283 = vld [vmem:[#allocation14 + $0xbc] sm:$0xf]
        %v4284 = vld [vmem:[#allocation14 + $0xc0] sm:$0xf]
        %v4285 = vld [vmem:[#allocation14 + $0xc4] sm:$0xf]
        %v4286 = vld [vmem:[#allocation14 + $0xc8] sm:$0xf]
        %v4287 = vld [vmem:[#allocation14 + $0xcc] sm:$0xf]
        %v4288 = vld [vmem:[#allocation14 + $0xd0] sm:$0xf]
        %v4289 = vld [vmem:[#allocation14 + $0xd4] sm:$0xf]
        %v4290 = vld [vmem:[#allocation14 + $0xd8] sm:$0xf]
        %v4291 = vld [vmem:[#allocation14 + $0xdc] sm:$0xf]
        %v4292 = vld [vmem:[#allocation14 + $0xe0] sm:$0xf]
        %v4293 = vld [vmem:[#allocation14 + $0xe4] sm:$0xf]
        %v4294 = vld [vmem:[#allocation14 + $0xe8] sm:$0xf]
        %v4295 = vld [vmem:[#allocation14 + $0xec] sm:$0xf]
        %v4296 = vld [vmem:[#allocation14 + $0xf0] sm:$0xf]
        %v4297 = vld [vmem:[#allocation14 + $0xf4] sm:$0xf]
        %v4298 = vld [vmem:[#allocation14 + $0xf8] sm:$0xf]
        %v4299 = vld [vmem:[#allocation14 + $0xfc] sm:$0xf]
        %v4364 = vunpack.c.l.b16 %v4236
        %v4365 = vunpack.c.l.b16 %v4237
        %v4366 = vunpack.c.l.b16 %v4238
        %v4367 = vunpack.c.l.b16 %v4239
        %v4368 = vunpack.c.l.b16 %v4240
        %v4369 = vunpack.c.l.b16 %v4241
        %v4370 = vunpack.c.l.b16 %v4242
        %v4371 = vunpack.c.l.b16 %v4243
        %v4372 = vunpack.c.l.b16 %v4244
        %v4373 = vunpack.c.l.b16 %v4245
        %v4374 = vunpack.c.l.b16 %v4246
        %v4375 = vunpack.c.l.b16 %v4247
        %v4376 = vunpack.c.l.b16 %v4248
        %v4377 = vunpack.c.l.b16 %v4249
        %v4378 = vunpack.c.l.b16 %v4250
        %v4379 = vunpack.c.l.b16 %v4251
        %v4380 = vunpack.c.l.b16 %v4252
        %v4381 = vunpack.c.l.b16 %v4253
        %v4382 = vunpack.c.l.b16 %v4254
        %v4383 = vunpack.c.l.b16 %v4255
        %v4384 = vunpack.c.l.b16 %v4256
        %v4385 = vunpack.c.l.b16 %v4257
        %v4386 = vunpack.c.l.b16 %v4258
        %v4387 = vunpack.c.l.b16 %v4259
        %v4388 = vunpack.c.l.b16 %v4260
        %v4389 = vunpack.c.l.b16 %v4261
        %v4390 = vunpack.c.l.b16 %v4262
        %v4391 = vunpack.c.l.b16 %v4263
        %v4392 = vunpack.c.l.b16 %v4264
        %v4393 = vunpack.c.l.b16 %v4265
        %v4394 = vunpack.c.l.b16 %v4266
        %v4395 = vunpack.c.l.b16 %v4267
        %v4396 = vunpack.c.l.b16 %v4268
        %v4397 = vunpack.c.l.b16 %v4269
        %v4398 = vunpack.c.l.b16 %v4270
        %v4399 = vunpack.c.l.b16 %v4271
        %v4400 = vunpack.c.l.b16 %v4272
        %v4401 = vunpack.c.l.b16 %v4273
        %v4402 = vunpack.c.l.b16 %v4274
        %v4403 = vunpack.c.l.b16 %v4275
        %v4404 = vunpack.c.l.b16 %v4276
        %v4405 = vunpack.c.l.b16 %v4277
        %v4406 = vunpack.c.l.b16 %v4278
        %v4407 = vunpack.c.l.b16 %v4279
        %v4408 = vunpack.c.l.b16 %v4280
        %v4409 = vunpack.c.l.b16 %v4281
        %v4410 = vunpack.c.l.b16 %v4282
        %v4411 = vunpack.c.l.b16 %v4283
        %v4412 = vunpack.c.l.b16 %v4284
        %v4413 = vunpack.c.l.b16 %v4285
        %v4414 = vunpack.c.l.b16 %v4286
        %v4415 = vunpack.c.l.b16 %v4287
        %v4416 = vunpack.c.l.b16 %v4288
        %v4417 = vunpack.c.l.b16 %v4289
        %v4418 = vunpack.c.l.b16 %v4290
        %v4419 = vunpack.c.l.b16 %v4291
        %v4420 = vunpack.c.l.b16 %v4292
        %v4421 = vunpack.c.l.b16 %v4293
        %v4422 = vunpack.c.l.b16 %v4294
        %v4423 = vunpack.c.l.b16 %v4295
        %v4424 = vunpack.c.l.b16 %v4296
        %v4425 = vunpack.c.l.b16 %v4297
        %v4426 = vunpack.c.l.b16 %v4298
        %v4427 = vunpack.c.l.b16 %v4299
        %v4428 = vpack.c.b16 %v4365, %v4364
        %v4429 = vpack.c.b16 %v4367, %v4366
        %v4430 = vpack.c.b16 %v4369, %v4368
        %v4431 = vpack.c.b16 %v4371, %v4370
        %v4432 = vpack.c.b16 %v4373, %v4372
        %v4433 = vpack.c.b16 %v4375, %v4374
        %v4434 = vpack.c.b16 %v4377, %v4376
        %v4435 = vpack.c.b16 %v4379, %v4378
        %v4436 = vpack.c.b16 %v4381, %v4380
        %v4437 = vpack.c.b16 %v4383, %v4382
        %v4438 = vpack.c.b16 %v4385, %v4384
        %v4439 = vpack.c.b16 %v4387, %v4386
        %v4440 = vpack.c.b16 %v4389, %v4388
        %v4441 = vpack.c.b16 %v4391, %v4390
        %v4442 = vpack.c.b16 %v4393, %v4392
        %v4443 = vpack.c.b16 %v4395, %v4394
        %v4444 = vpack.c.b16 %v4397, %v4396
        %v4445 = vpack.c.b16 %v4399, %v4398
        %v4446 = vpack.c.b16 %v4401, %v4400
        %v4447 = vpack.c.b16 %v4403, %v4402
        %v4448 = vpack.c.b16 %v4405, %v4404
        %v4449 = vpack.c.b16 %v4407, %v4406
        %v4450 = vpack.c.b16 %v4409, %v4408
        %v4451 = vpack.c.b16 %v4411, %v4410
        %v4452 = vpack.c.b16 %v4413, %v4412
        %v4453 = vpack.c.b16 %v4415, %v4414
        %v4454 = vpack.c.b16 %v4417, %v4416
        %v4455 = vpack.c.b16 %v4419, %v4418
        %v4456 = vpack.c.b16 %v4421, %v4420
        %v4457 = vpack.c.b16 %v4423, %v4422
        %v4458 = vpack.c.b16 %v4425, %v4424
        %v4459 = vpack.c.b16 %v4427, %v4426
        %4492 = vmatprep.subr.bf16.mxu0 0
        %4493 = vmatpush1.bf16.msra.mxu0 %v4428
        %4494 = vmatprep.subr.bf16.mxu0 0
        %4495 = vmatpush1.bf16.msra.mxu0 %v4429
        %4496 = vmatprep.subr.bf16.mxu0 0
        %4497 = vmatpush1.bf16.msra.mxu0 %v4430
        %4498 = vmatprep.subr.bf16.mxu0 0
        %4499 = vmatpush1.bf16.msra.mxu0 %v4431
        %4500 = vmatprep.subr.bf16.mxu0 0
        %4501 = vmatpush1.bf16.msra.mxu0 %v4432
        %4502 = vmatprep.subr.bf16.mxu0 0
        %4503 = vmatpush1.bf16.msra.mxu0 %v4433
        %4504 = vmatprep.subr.bf16.mxu0 0
        %4505 = vmatpush1.bf16.msra.mxu0 %v4434
        %4506 = vmatprep.subr.bf16.mxu0 0
        %4507 = vmatpush1.bf16.msra.mxu0 %v4435
        %4508 = vmatprep.subr.bf16.mxu0 0
        %4509 = vmatpush1.bf16.msra.mxu0 %v4436
        %4510 = vmatprep.subr.bf16.mxu0 0
        %4511 = vmatpush1.bf16.msra.mxu0 %v4437
        %4512 = vmatprep.subr.bf16.mxu0 0
        %4513 = vmatpush1.bf16.msra.mxu0 %v4438
        %4514 = vmatprep.subr.bf16.mxu0 0
        %4515 = vmatpush1.bf16.msra.mxu0 %v4439
        %4516 = vmatprep.subr.bf16.mxu0 0
        %4517 = vmatpush1.bf16.msra.mxu0 %v4440
        %4518 = vmatprep.subr.bf16.mxu0 0
        %4519 = vmatpush1.bf16.msra.mxu0 %v4441
        %4520 = vmatprep.subr.bf16.mxu0 0
        %4521 = vmatpush1.bf16.msra.mxu0 %v4442
        %4522 = vmatprep.subr.bf16.mxu0 0
        %4523 = vmatpush1.bf16.msra.mxu0 %v4443
        %4524 = vmatprep.mubr.bf16.mxu0 %v4205
        %4525 = vmatmul.mubr.bf16.gmra.mrb[0].mxu0 %v4204
        %v4526 = vpop.f32.mrb[0].mxu0
        %v4527 = vadd.f32 0.0, %v4526
        %v4528 = vpop.f32.mrb[0].mxu0
        %v4529 = vpop.f32.mrb[0].mxu0
        %v4530 = vadd.f32 0.0, %v4529
        %v4531 = vpop.f32.mrb[0].mxu0
        %4532 = vmatprep.mubr.bf16.mxu0 %v4209
        %4533 = vmatmul.mubr.bf16.gmra.mrb[0].mxu0 %v4208
        %v4534 = vpop.f32.mrb[0].mxu0
        %v4535 = vadd.f32 0.0, %v4534
        %v4536 = vpop.f32.mrb[0].mxu0
        %v4537 = vpop.f32.mrb[0].mxu0
        %v4538 = vadd.f32 0.0, %v4537
        %v4539 = vpop.f32.mrb[0].mxu0
        %4540 = vmatprep.mubr.bf16.mxu0 %v4213
        %4541 = vmatmul.mubr.bf16.gmra.mrb[0].mxu0 %v4212
        %v4542 = vpop.f32.mrb[0].mxu0
        %v4543 = vadd.f32 0.0, %v4542
        %v4544 = vpop.f32.mrb[0].mxu0
        %v4545 = vpop.f32.mrb[0].mxu0
        %v4546 = vadd.f32 0.0, %v4545
        %v4547 = vpop.f32.mrb[0].mxu0
        %4548 = vmatprep.mubr.bf16.mxu0 %v4217
        %4549 = vmatmul.mubr.bf16.gmra.mrb[0].mxu0 %v4216
        %v4550 = vpop.f32.mrb[0].mxu0
        %v4551 = vadd.f32 0.0, %v4550
        %v4552 = vpop.f32.mrb[0].mxu0
        %v4553 = vpop.f32.mrb[0].mxu0
        %v4554 = vadd.f32 0.0, %v4553
        %v4555 = vpop.f32.mrb[0].mxu0
        %4556 = vmatprep.mubr.bf16.mxu0 %v4221
        %4557 = vmatmul.mubr.bf16.gmra.mrb[0].mxu0 %v4220
        %v4558 = vpop.f32.mrb[0].mxu0
        %v4559 = vadd.f32 0.0, %v4558
        %v4560 = vpop.f32.mrb[0].mxu0
        %v4561 = vpop.f32.mrb[0].mxu0
        %v4562 = vadd.f32 0.0, %v4561
        %v4563 = vpop.f32.mrb[0].mxu0
        %4564 = vmatprep.mubr.bf16.mxu0 %v4225
        %4565 = vmatmul.mubr.bf16.gmra.mrb[0].mxu0 %v4224
        %v4566 = vpop.f32.mrb[0].mxu0
        %v4567 = vadd.f32 0.0, %v4566
        %v4568 = vpop.f32.mrb[0].mxu0
        %v4569 = vpop.f32.mrb[0].mxu0
        %v4570 = vadd.f32 0.0, %v4569
        %v4571 = vpop.f32.mrb[0].mxu0
        %4572 = vmatprep.mubr.bf16.mxu0 %v4229
        %4573 = vmatmul.mubr.bf16.gmra.mrb[0].mxu0 %v4228
        %v4574 = vpop.f32.mrb[0].mxu0
        %v4575 = vadd.f32 0.0, %v4574
        %v4576 = vpop.f32.mrb[0].mxu0
        %v4577 = vpop.f32.mrb[0].mxu0
        %v4578 = vadd.f32 0.0, %v4577
        %v4579 = vpop.f32.mrb[0].mxu0
        %4580 = vmatprep.mubr.bf16.mxu0 %v4233
        %4581 = vmatmul.mubr.bf16.gmra.mrb[0].mxu0 %v4232
        %v4582 = vpop.f32.mrb[0].mxu0
        %v4583 = vadd.f32 0.0, %v4582
        %v4584 = vpop.f32.mrb[0].mxu0
        %v4585 = vpop.f32.mrb[0].mxu0
        %v4586 = vadd.f32 0.0, %v4585
        %v4587 = vpop.f32.mrb[0].mxu0
        %4588 = vdwg.mxu0
        %4589 = vmatprep.subr.bf16.mxu0 0
        %4590 = vmatpush1.bf16.msra.mxu0 %v4444
        %4591 = vmatprep.subr.bf16.mxu0 0
        %4592 = vmatpush1.bf16.msra.mxu0 %v4445
        %4593 = vmatprep.subr.bf16.mxu0 0
        %4594 = vmatpush1.bf16.msra.mxu0 %v4446
        %4595 = vmatprep.subr.bf16.mxu0 0
        %4596 = vmatpush1.bf16.msra.mxu0 %v4447
        %4597 = vmatprep.subr.bf16.mxu0 0
        %4598 = vmatpush1.bf16.msra.mxu0 %v4448
        %4599 = vmatprep.subr.bf16.mxu0 0
        %4600 = vmatpush1.bf16.msra.mxu0 %v4449
        %4601 = vmatprep.subr.bf16.mxu0 0
        %4602 = vmatpush1.bf16.msra.mxu0 %v4450
        %4603 = vmatprep.subr.bf16.mxu0 0
        %4604 = vmatpush1.bf16.msra.mxu0 %v4451
        %4605 = vmatprep.subr.bf16.mxu0 0
        %4606 = vmatpush1.bf16.msra.mxu0 %v4452
        %4607 = vmatprep.subr.bf16.mxu0 0
        %4608 = vmatpush1.bf16.msra.mxu0 %v4453
        %4609 = vmatprep.subr.bf16.mxu0 0
        %4610 = vmatpush1.bf16.msra.mxu0 %v4454
        %4611 = vmatprep.subr.bf16.mxu0 0
        %4612 = vmatpush1.bf16.msra.mxu0 %v4455
        %4613 = vmatprep.subr.bf16.mxu0 0
        %4614 = vmatpush1.bf16.msra.mxu0 %v4456
        %4615 = vmatprep.subr.bf16.mxu0 0
        %4616 = vmatpush1.bf16.msra.mxu0 %v4457
        %4617 = vmatprep.subr.bf16.mxu0 0
        %4618 = vmatpush1.bf16.msra.mxu0 %v4458
        %4619 = vmatprep.subr.bf16.mxu0 0
        %4620 = vmatpush1.bf16.msra.mxu0 %v4459
        %4621 = vmatprep.mubr.bf16.mxu0 %v4207
        %4622 = vmatmul.mubr.bf16.gmra.mrb[0].mxu0 %v4206
        %v4623 = vpop.f32.mrb[0].mxu0
        %v4624 = vadd.f32 %v4527, %v4623
        %v4625 = vpop.f32.mrb[0].mxu0
        %v4626 = vpop.f32.mrb[0].mxu0
        %v4627 = vadd.f32 %v4530, %v4626
        %v4628 = vpop.f32.mrb[0].mxu0
        %4629 = vmatprep.mubr.bf16.mxu0 %v4211
        %4630 = vmatmul.mubr.bf16.gmra.mrb[0].mxu0 %v4210
        %v4631 = vpop.f32.mrb[0].mxu0
        %v4632 = vadd.f32 %v4535, %v4631
        %v4633 = vpop.f32.mrb[0].mxu0
        %v4634 = vpop.f32.mrb[0].mxu0
        %v4635 = vadd.f32 %v4538, %v4634
        %v4636 = vpop.f32.mrb[0].mxu0
        %4637 = vmatprep.mubr.bf16.mxu0 %v4215
        %4638 = vmatmul.mubr.bf16.gmra.mrb[0].mxu0 %v4214
        %v4639 = vpop.f32.mrb[0].mxu0
        %v4640 = vadd.f32 %v4543, %v4639
        %v4641 = vpop.f32.mrb[0].mxu0
        %v4642 = vpop.f32.mrb[0].mxu0
        %v4643 = vadd.f32 %v4546, %v4642
        %v4644 = vpop.f32.mrb[0].mxu0
        %4645 = vmatprep.mubr.bf16.mxu0 %v4219
        %4646 = vmatmul.mubr.bf16.gmra.mrb[0].mxu0 %v4218
        %v4647 = vpop.f32.mrb[0].mxu0
        %v4648 = vadd.f32 %v4551, %v4647
        %v4649 = vpop.f32.mrb[0].mxu0
        %v4650 = vpop.f32.mrb[0].mxu0
        %v4651 = vadd.f32 %v4554, %v4650
        %v4652 = vpop.f32.mrb[0].mxu0
        %4653 = vmatprep.mubr.bf16.mxu0 %v4223
        %4654 = vmatmul.mubr.bf16.gmra.mrb[0].mxu0 %v4222
        %v4655 = vpop.f32.mrb[0].mxu0
        %v4656 = vadd.f32 %v4559, %v4655
        %v4657 = vpop.f32.mrb[0].mxu0
        %v4658 = vpop.f32.mrb[0].mxu0
        %v4659 = vadd.f32 %v4562, %v4658
        %v4660 = vpop.f32.mrb[0].mxu0
        %4661 = vmatprep.mubr.bf16.mxu0 %v4227
        %4662 = vmatmul.mubr.bf16.gmra.mrb[0].mxu0 %v4226
        %v4663 = vpop.f32.mrb[0].mxu0
        %v4664 = vadd.f32 %v4567, %v4663
        %v4665 = vpop.f32.mrb[0].mxu0
        %v4666 = vpop.f32.mrb[0].mxu0
        %v4667 = vadd.f32 %v4570, %v4666
        %v4668 = vpop.f32.mrb[0].mxu0
        %4669 = vmatprep.mubr.bf16.mxu0 %v4231
        %4670 = vmatmul.mubr.bf16.gmra.mrb[0].mxu0 %v4230
        %v4671 = vpop.f32.mrb[0].mxu0
        %v4672 = vadd.f32 %v4575, %v4671
        %v4673 = vpop.f32.mrb[0].mxu0
        %v4674 = vpop.f32.mrb[0].mxu0
        %v4675 = vadd.f32 %v4578, %v4674
        %v4676 = vpop.f32.mrb[0].mxu0
        %4677 = vmatprep.mubr.bf16.mxu0 %v4235
        %4678 = vmatmul.mubr.bf16.gmra.mrb[0].mxu0 %v4234
        %v4679 = vpop.f32.mrb[0].mxu0
        %v4680 = vadd.f32 %v4583, %v4679
        %v4681 = vpop.f32.mrb[0].mxu0
        %v4682 = vpop.f32.mrb[0].mxu0
        %v4683 = vadd.f32 %v4586, %v4682
        %v4684 = vpop.f32.mrb[0].mxu0
        %4685 = vdwg.mxu0
        %v4686 = vadd.f32 %v3051, %v4624
        %v4687 = vadd.f32 %v3052, %v4627
        %v4688 = vadd.f32 %v3053, %v4632
        %v4689 = vadd.f32 %v3054, %v4635
        %v4690 = vadd.f32 %v3055, %v4640
        %v4691 = vadd.f32 %v3056, %v4643
        %v4692 = vadd.f32 %v3057, %v4648
        %v4693 = vadd.f32 %v3058, %v4651
        %v4694 = vadd.f32 %v3059, %v4656
        %v4695 = vadd.f32 %v3060, %v4659
        %v4696 = vadd.f32 %v3061, %v4664
        %v4697 = vadd.f32 %v3062, %v4667
        %v4698 = vadd.f32 %v3063, %v4672
        %v4699 = vadd.f32 %v3064, %v4675
        %v4700 = vadd.f32 %v3065, %v4680
        %v4701 = vadd.f32 %v3066, %v4683
        %4702 = vst [vmem:[%s598] sm:$0xff] %v4686
        %4703 = vst [vmem:[%s598 + $0x8] sm:$0xff] %v4687
        %4704 = vst [vmem:[%s598 + $0x10] sm:$0xff] %v4688
        %4705 = vst [vmem:[%s598 + $0x18] sm:$0xff] %v4689
        %4706 = vst [vmem:[%s598 + $0x20] sm:$0xff] %v4690
        %4707 = vst [vmem:[%s598 + $0x28] sm:$0xff] %v4691
        %4708 = vst [vmem:[%s598 + $0x30] sm:$0xff] %v4692
        %4709 = vst [vmem:[%s598 + $0x38] sm:$0xff] %v4693
        %4710 = vst [vmem:[%s598 + $0x40] sm:$0xff] %v4694
        %4711 = vst [vmem:[%s598 + $0x48] sm:$0xff] %v4695
        %4712 = vst [vmem:[%s598 + $0x50] sm:$0xff] %v4696
        %4713 = vst [vmem:[%s598 + $0x58] sm:$0xff] %v4697
        %4714 = vst [vmem:[%s598 + $0x60] sm:$0xff] %v4698
        %4715 = vst [vmem:[%s598 + $0x68] sm:$0xff] %v4699
        %4716 = vst [vmem:[%s598 + $0x70] sm:$0xff] %v4700
        %4717 = vst [vmem:[%s598 + $0x78] sm:$0xff] %v4701
        %s4718 = sand.u32 %s297, 1
        %s4719 = scalar_lea.sflag [#allocation4], %s4718
        %s4720 = sand.u32 %s297, 1
        %s4721 = smul.addr %s4720, 128
        %s4722 = scalar_lea.vmem [#allocation16], %s4721
        %s4723 = sand.u32 %s40, 1
        %s4724 = scalar_lea.sflag [#allocation18], %s4723
        %s4725 = sand.u32 %s323, 1
        %s4726 = smul.addr %s4725, 128
        %s4727 = scalar_lea.vmem [#allocation17], %s4726
        %s4728 = sand.u32 %s40, 1
        %s4729 = scalar_lea.sflag [#allocation18], %s4728
        %s4730 = sand.u32 %s349, 1
        %s4731 = smul.addr %s4730, 128
        %s4732 = scalar_lea.vmem [#allocation19], %s4731
        // Predicated region
        $region97: #{tpu_custom_call.1} parent=63 // pred_check
          %p4733 = pneg %p307
        $region98: #{tpu_custom_call.1} parent=63 // pred_check_branch
          %4735 = sbr.rel (%p4733) target = $region100
        $region99: #{tpu_custom_call.1} parent=63 // pred_region
          %s4736 = smul.u32 16, %s40
          %s4738 = ssub.s32 2048, 2048
          %4739 = vsyncadd %s4719, %s4738
          %s4740 = smul.addr %s4736, 128
          %s4741 = scalar_lea.hbm %s11, %s4740
          %s4742 = sshll.u32 %s4722, 4
          %s4743 = int_to_ptr.vmem [resolvable:$true] %s4742
          %4748 = dma.vmem_to_hbm [thread:$0]  %s4743, 2048, %s4741, %s4719, 128, 128, 8
        $region100: #{tpu_custom_call.1} parent=63 // pred_fallthru
          _
        // Predicated region
        $region101: #{tpu_custom_call.1} parent=63 // pred_check
          %p4749 = pneg %p333
        $region102: #{tpu_custom_call.1} parent=63 // pred_check_branch
          %4751 = sbr.rel (%p4749) target = $region104
        $region103: #{tpu_custom_call.1} parent=63 // pred_region
          %s4752 = smul.u32 16, %s40
          %s4754 = ssub.s32 2048, 2048
          %4755 = vsyncadd %s4724, %s4754
          %s4756 = smul.addr %s4752, 128
          %s4757 = scalar_lea.hbm %s12, %s4756
          %s4758 = sshll.u32 %s4727, 4
          %s4759 = int_to_ptr.vmem [resolvable:$true] %s4758
          %4764 = dma.vmem_to_hbm [thread:$0]  %s4759, 2048, %s4757, %s4724, 128, 128, 8
        $region104: #{tpu_custom_call.1} parent=63 // pred_fallthru
          _
        // Predicated region
        $region105: #{tpu_custom_call.1} parent=63 // pred_check
          %p4765 = pneg %p359
        $region106: #{tpu_custom_call.1} parent=63 // pred_check_branch
          %4767 = sbr.rel (%p4765) target = $region108
        $region107: #{tpu_custom_call.1} parent=63 // pred_region
          %s4768 = smul.u32 16, %s40
          %s4770 = ssub.s32 2048, 2048
          %4771 = vsyncadd %s4729, %s4770
          %s4772 = smul.addr %s4768, 128
          %s4773 = scalar_lea.hbm %s13, %s4772
          %s4774 = sshll.u32 %s4732, 4
          %s4775 = int_to_ptr.vmem [resolvable:$true] %s4774
          %4780 = dma.vmem_to_hbm [thread:$0]  %s4775, 2048, %s4773, %s4729, 128, 128, 8
        $region108: #{tpu_custom_call.1} parent=63 // pred_fallthru
          _
      $region64: #{tpu_custom_call.1} parent=5 // pred_fallthru
        _
      %p4781 = scmp.le.s32.totalorder 2, %s35
      // Predicated region
      $region109: #{tpu_custom_call.1} parent=5 // pred_check
        %p4782 = pneg %p4781
      $region110: #{tpu_custom_call.1} parent=5 // pred_check_branch
        %4784 = sbr.rel (%p4782) target = $region112
      $region111: #{tpu_custom_call.1} parent=5 // pred_region
        %s4785 = ssub.s32 %s35, 2
        // Predicated region
        $region113: #{tpu_custom_call.1} parent=111 // pred_check
          %p4786 = pneg %p313
        $region114: #{tpu_custom_call.1} parent=111 // pred_check_branch
          %4788 = sbr.rel (%p4786) target = $region116
        $region115: #{tpu_custom_call.1} parent=111 // pred_region
          %s4789 = sand.u32 %s298, 1
          %s4790 = scalar_lea.sflag [#allocation4], %s4789
          %s4791 = sand.u32 %s298, 1
          %s4792 = smul.addr %s4791, 128
          %s4793 = scalar_lea.vmem [#allocation16], %s4792
          %4794 = dma.done %s4790, 2048
        $region116: #{tpu_custom_call.1} parent=111 // pred_fallthru
          _
        // Predicated region
        $region117: #{tpu_custom_call.1} parent=111 // pred_check
          %p4795 = pneg %p339
        $region118: #{tpu_custom_call.1} parent=111 // pred_check_branch
          %4797 = sbr.rel (%p4795) target = $region120
        $region119: #{tpu_custom_call.1} parent=111 // pred_region
          %s4798 = sand.u32 %s41, 1
          %s4799 = scalar_lea.sflag [#allocation18], %s4798
          %s4800 = sand.u32 %s324, 1
          %s4801 = smul.addr %s4800, 128
          %s4802 = scalar_lea.vmem [#allocation17], %s4801
          %4803 = dma.done %s4799, 2048
        $region120: #{tpu_custom_call.1} parent=111 // pred_fallthru
          _
        // Predicated region
        $region121: #{tpu_custom_call.1} parent=111 // pred_check
          %p4804 = pneg %p365
        $region122: #{tpu_custom_call.1} parent=111 // pred_check_branch
          %4806 = sbr.rel (%p4804) target = $region124
        $region123: #{tpu_custom_call.1} parent=111 // pred_region
          %s4807 = sand.u32 %s41, 1
          %s4808 = scalar_lea.sflag [#allocation18], %s4807
          %s4809 = sand.u32 %s350, 1
          %s4810 = smul.addr %s4809, 128
          %s4811 = scalar_lea.vmem [#allocation19], %s4810
          %4812 = dma.done %s4808, 2048
        $region124: #{tpu_custom_call.1} parent=111 // pred_fallthru
          _
      $region112: #{tpu_custom_call.1} parent=5 // pred_fallthru
        _
    $region6: #{tpu_custom_call.1} parent=1 // loop_footer
      %s39 = sadd.s32 1, %s35
    $region7: #{tpu_custom_call.1} parent=1 // loop_footer_branch
      %34 = sbr.rel target = $region3
    $region8: #{tpu_custom_call.1} parent=1 // loop_exit
      _
    %4813 = vsyncpa [#allocation3], 1
    %s4814 = scalar_lea.sflag [#allocation3], 1
    %4815 = vsyncpa %s4814, 1
    %4816 = vsyncpa [#allocation6], 1
    %s4817 = scalar_lea.sflag [#allocation6], 1
    %4818 = vsyncpa %s4817, 1
    %4819 = vsyncpa [#allocation9], 1
    %4820 = vsyncpa [#allocation12], 1
    %4821 = vsyncpa [#allocation15], 1
    %4822 = vsyncpa [#allocation4], 1
    %s4823 = scalar_lea.sflag [#allocation4], 1
    %4824 = vsyncpa %s4823, 1
    %4825 = vsyncpa [#allocation18], 1
    %s4826 = scalar_lea.sflag [#allocation18], 1
    %4827 = vsyncpa %s4826, 1

</llo_original>
